<compile_context>
chip_gen: v5e
topology: v5e:2x2
jax: 0.10.0
libtpu: 0.0.40
codegen_flags: <defaults>
</compile_context>

<pallas_src>
import functools

import jax
import jax.numpy as jnp
from jax.experimental import pallas as pl
from jax.experimental.pallas import tpu as pltpu


def _lstm_batchy_kernel(x_ref, h0_ref, c0_ref,
                        wih0_ref, whh0_ref, b0_ref,
                        wf1_ref, b1_ref,
                        wf2_ref, b2_ref,
                        wout_ref, bout_ref,
                        y_ref, hn_ref, cn_ref,
                        gx0_s, h2hist_s,
                        *, seq_len, batch_pad, temperature):
    H = whh0_ref.shape[0]
    B = batch_pad

    # ---- Hoisted (non-recurrent) work: layer-0 input projection for ALL steps at once. ----
    gx0_s[...] = (jnp.dot(x_ref[...], wih0_ref[...], preferred_element_type=jnp.float32)
                  + b0_ref[...])

    # Hoist bias broadcasts out of the time loop.
    b1 = jnp.broadcast_to(b1_ref[...], (B, 4 * H))
    b2 = jnp.broadcast_to(b2_ref[...], (B, 4 * H))

    def gates_to_hc(gates, c_prev):
        i = jax.nn.sigmoid(gates[:, 0 * H:1 * H])
        f = jax.nn.sigmoid(gates[:, 1 * H:2 * H])
        g = jnp.tanh(gates[:, 2 * H:3 * H])
        o = jax.nn.sigmoid(gates[:, 3 * H:4 * H])
        c_new = f * c_prev + i * g
        h_new = o * jnp.tanh(c_new)
        return h_new, c_new

    # Carry hidden/cell state in registers across the (fully unrolled) time loop.
    h0 = h0_ref[0]; h1 = h0_ref[1]; h2 = h0_ref[2]
    c0 = c0_ref[0]; c1 = c0_ref[1]; c2 = c0_ref[2]

    for t in range(seq_len):                                  # static, fully unrolled
        # Layer 0: input term precomputed; only recurrent matmul on the chain.
        g0 = gx0_s[t * B:(t + 1) * B, :] + jnp.dot(
            h0, whh0_ref[...], preferred_element_type=jnp.float32)
        h0, c0 = gates_to_hc(g0, c0)

        # Layers 1/2: fused [input ; hidden] @ [W_ih ; W_hh] (one matmul per cell).
        g1 = jnp.dot(jnp.concatenate([h0, h1], axis=-1), wf1_ref[...],
                     preferred_element_type=jnp.float32) + b1
        h1, c1 = gates_to_hc(g1, c1)

        g2 = jnp.dot(jnp.concatenate([h1, h2], axis=-1), wf2_ref[...],
                     preferred_element_type=jnp.float32) + b2
        h2, c2 = gates_to_hc(g2, c2)

        h2hist_s[t * B:(t + 1) * B, :] = h2

    hn_ref[0] = h0; hn_ref[1] = h1; hn_ref[2] = h2
    cn_ref[0] = c0; cn_ref[1] = c1; cn_ref[2] = c2

    # ---- Hoisted output head: one big matmul + vectorized log-softmax + single slab store. ----
    logits = (jnp.dot(h2hist_s[...], wout_ref[...], preferred_element_type=jnp.float32)
              + bout_ref[...]) * (1.0 / temperature)
    m = jnp.max(logits, axis=-1, keepdims=True)
    lse = m + jnp.log(jnp.sum(jnp.exp(logits - m), axis=-1, keepdims=True))
    y_ref[...] = logits - lse


def lstm_batchy_forward(x, h0, c0, params, temperature=1.0):
    """Pallas forward pass. Returns (log_probs, (hn, cn))."""
    seq_len, batch, in_size = x.shape
    num_layers, _, hidden = h0.shape
    out_size = params["w_out"].shape[0]

    # Pad batch to full f32 sublanes and the output width to full lanes.
    B_pad = ((batch + 7) // 8) * 8
    OUT_pad = ((out_size + 127) // 128) * 128
    pad_b = B_pad - batch
    if pad_b:
        x = jnp.pad(x, ((0, 0), (0, pad_b), (0, 0)))
        h0 = jnp.pad(h0, ((0, 0), (0, pad_b), (0, 0)))
        c0 = jnp.pad(c0, ((0, 0), (0, pad_b), (0, 0)))
    x2d = x.reshape(seq_len * B_pad, in_size)

    # Layer 0: keep W_ih / W_hh separate (input projection is hoisted in-kernel).
    wih0 = params["w_ih0"].T                                        # (in, 4H)
    whh0 = params["w_hh0"].T                                        # (H, 4H)
    b0 = (params["b_ih0"] + params["b_hh0"]).reshape(1, 4 * hidden)

    # Layers 1/2: fuse [W_ih ; W_hh] into one (2H, 4H) matrix; fold biases.
    def fuse(l):
        wf = jnp.concatenate([params[f"w_ih{l}"].T, params[f"w_hh{l}"].T], axis=0)
        b = (params[f"b_ih{l}"] + params[f"b_hh{l}"]).reshape(1, 4 * hidden)
        return wf, b

    wf1, b1 = fuse(1)
    wf2, b2 = fuse(2)

    # Lane-dense output head: pad columns with zero weights and -1e30 bias so the
    # log-softmax over the padded row equals the log-softmax over the valid lanes.
    w_out = jnp.zeros((hidden, OUT_pad), jnp.float32).at[:, :out_size].set(params["w_out"].T)
    b_out = jnp.full((1, OUT_pad), -1e30, jnp.float32).at[0, :out_size].set(params["b_out"])

    kernel = functools.partial(_lstm_batchy_kernel, seq_len=seq_len,
                               batch_pad=B_pad, temperature=float(temperature))
    vmem = pl.BlockSpec(memory_space=pltpu.MemorySpace.VMEM)

    y2d, hn, cn = pl.pallas_call(
        kernel,
        out_shape=(
            jax.ShapeDtypeStruct((seq_len * B_pad, OUT_pad), jnp.float32),
            jax.ShapeDtypeStruct((num_layers, B_pad, hidden), jnp.float32),
            jax.ShapeDtypeStruct((num_layers, B_pad, hidden), jnp.float32),
        ),
        in_specs=[vmem] * 12,
        out_specs=(vmem, vmem, vmem),
        scratch_shapes=[
            pltpu.VMEM((seq_len * B_pad, 4 * hidden), jnp.float32),  # hoisted layer-0 input proj
            pltpu.VMEM((seq_len * B_pad, hidden), jnp.float32),      # h2 history for output head
        ],
    )(x2d, h0, c0, wih0, whh0, b0, wf1, b1, wf2, b2, w_out, b_out)

    y = y2d.reshape(seq_len, B_pad, OUT_pad)[:, :batch, :out_size]
    return y, (hn[:, :batch, :], cn[:, :batch, :])


def _reference_forward(x, h0, c0, params, temperature=1.0):
    """Pure-JAX reference of the same semantics (for verification)."""
    def cell(x_t, h, c, w_ih, w_hh, b_ih, b_hh):
        gates = x_t @ w_ih.T + h @ w_hh.T + b_ih + b_hh
        i, f, g, o = jnp.split(gates, 4, axis=-1)
        c_new = jax.nn.sigmoid(f) * c + jax.nn.sigmoid(i) * jnp.tanh(g)
        h_new = jax.nn.sigmoid(o) * jnp.tanh(c_new)
        return h_new, c_new

    def step(carry, x_t):
        hs, cs = carry
        new_h, new_c = [], []
        inp = x_t
        for l in range(3):
            h, c = cell(inp, hs[l], cs[l],
                        params[f"w_ih{l}"], params[f"w_hh{l}"],
                        params[f"b_ih{l}"], params[f"b_hh{l}"])
            new_h.append(h); new_c.append(c)
            inp = h
        return (jnp.stack(new_h), jnp.stack(new_c)), inp

    (hn, cn), outs = jax.lax.scan(step, (h0, c0), x)
    logits = (outs @ params["w_out"].T + params["b_out"]) / temperature
    logp = logits - jax.scipy.special.logsumexp(logits, axis=-1, keepdims=True)
    return logp, (hn, cn)


if __name__ == "__main__":
    # Small shapes consistent with the module's forward.
    SEQ, BATCH = 8, 4
    INPUT_SIZE, HIDDEN_SIZE, OUTPUT_SIZE = 16, 32, 16
    TEMPERATURE = 1.0

    key = jax.random.PRNGKey(0)
    keys = jax.random.split(key, 16)
    k = iter(keys)
    scale = 1.0 / jnp.sqrt(HIDDEN_SIZE)

    params = {}
    in_sizes = [INPUT_SIZE, HIDDEN_SIZE, HIDDEN_SIZE]
    for l in range(3):
        params[f"w_ih{l}"] = jax.random.uniform(next(k), (4 * HIDDEN_SIZE, in_sizes[l]),
                                                jnp.float32, -scale, scale)
        params[f"w_hh{l}"] = jax.random.uniform(next(k), (4 * HIDDEN_SIZE, HIDDEN_SIZE),
                                                jnp.float32, -scale, scale)
        params[f"b_ih{l}"] = jax.random.uniform(next(k), (4 * HIDDEN_SIZE,),
                                                jnp.float32, -scale, scale)
        params[f"b_hh{l}"] = jax.random.uniform(next(k), (4 * HIDDEN_SIZE,),
                                                jnp.float32, -scale, scale)
    params["w_out"] = jax.random.uniform(next(k), (OUTPUT_SIZE, HIDDEN_SIZE),
                                         jnp.float32, -scale, scale)
    params["b_out"] = jax.random.uniform(next(k), (OUTPUT_SIZE,),
                                         jnp.float32, -scale, scale)

    x = jax.random.normal(next(k), (SEQ, BATCH, INPUT_SIZE), jnp.float32)
    h0 = jnp.zeros((3, BATCH, HIDDEN_SIZE), jnp.float32)   # initHidden(batch_size)
    c0 = jnp.zeros((3, BATCH, HIDDEN_SIZE), jnp.float32)

    y, (hn, cn) = lstm_batchy_forward(x, h0, c0, params, TEMPERATURE)
    jax.block_until_ready((y, hn, cn))

    y_ref, (hn_ref, cn_ref) = _reference_forward(x, h0, c0, params, TEMPERATURE)
    assert jnp.allclose(y, y_ref, atol=1e-4, rtol=1e-4), "output mismatch"
    assert jnp.allclose(hn, hn_ref, atol=1e-4, rtol=1e-4), "hn mismatch"
    assert jnp.allclose(cn, cn_ref, atol=1e-4, rtol=1e-4), "cn mismatch"

    # TODO(synk): nn.Dropout(0.1) exists on the module but is unused in forward(); omitted.
    print("KERNEL_OK")
</pallas_src>

<mosaic_0001>
module attributes {stable_mosaic.version = 11 : i64} {
  func.func @_lstm_batchy_kernel(%arg0: memref<64x16xf32, #tpu.memory_space<vmem>>, %arg1: memref<3x8x32xf32, #tpu.memory_space<vmem>>, %arg2: memref<3x8x32xf32, #tpu.memory_space<vmem>>, %arg3: memref<16x128xf32, #tpu.memory_space<vmem>>, %arg4: memref<32x128xf32, #tpu.memory_space<vmem>>, %arg5: memref<1x128xf32, #tpu.memory_space<vmem>>, %arg6: memref<64x128xf32, #tpu.memory_space<vmem>>, %arg7: memref<1x128xf32, #tpu.memory_space<vmem>>, %arg8: memref<64x128xf32, #tpu.memory_space<vmem>>, %arg9: memref<1x128xf32, #tpu.memory_space<vmem>>, %arg10: memref<32x128xf32, #tpu.memory_space<vmem>>, %arg11: memref<1x128xf32, #tpu.memory_space<vmem>>, %arg12: memref<64x128xf32, #tpu.memory_space<vmem>>, %arg13: memref<3x8x32xf32, #tpu.memory_space<vmem>>, %arg14: memref<3x8x32xf32, #tpu.memory_space<vmem>>, %arg15: memref<64x128xf32, #tpu.memory_space<vmem>>, %arg16: memref<64x32xf32, #tpu.memory_space<vmem>>) attributes {dimension_semantics = [], scalar_prefetch = 0 : i64, scratch_operands = 2 : i64, tpu.core_type = #tpu.core_type<tc>} {
    %c0 = arith.constant 0 : index
    %c0_0 = arith.constant 0 : index
    %0 = vector.load %arg0[%c0, %c0_0] : memref<64x16xf32, #tpu.memory_space<vmem>>, vector<64x16xf32>
    %c0_1 = arith.constant 0 : index
    %c0_2 = arith.constant 0 : index
    %1 = vector.load %arg3[%c0_1, %c0_2] : memref<16x128xf32, #tpu.memory_space<vmem>>, vector<16x128xf32>
    %cst = arith.constant dense<0.000000e+00> : vector<64x128xf32>
    %2 = tpu.matmul %0, %1, %cst {dimension_numbers = #tpu.dot_dimension_numbers<[1], [0], [0], [1], [0, 0, 1, 1], [], []>} : vector<64x16xf32>, vector<16x128xf32>, vector<64x128xf32> -> vector<64x128xf32>
    %c0_3 = arith.constant 0 : index
    %c0_4 = arith.constant 0 : index
    %3 = vector.load %arg5[%c0_3, %c0_4] : memref<1x128xf32, #tpu.memory_space<vmem>>, vector<1x128xf32>
    %4 = vector.broadcast %3 : vector<1x128xf32> to vector<64x128xf32>
    %5 = arith.addf %2, %4 : vector<64x128xf32>
    %c0_5 = arith.constant 0 : index
    %c0_6 = arith.constant 0 : index
    %6 = vector.load %arg15[%c0_5, %c0_6] : memref<64x128xf32, #tpu.memory_space<vmem>>, vector<64x128xf32>
    tpu.vector_store %arg15[%c0_5, %c0_6], %5 {strides = array<i32>} : memref<64x128xf32, #tpu.memory_space<vmem>>, vector<64x128xf32>,
    %c0_7 = arith.constant 0 : index
    %c0_8 = arith.constant 0 : index
    %7 = vector.load %arg7[%c0_7, %c0_8] : memref<1x128xf32, #tpu.memory_space<vmem>>, vector<1x128xf32>
    %8 = vector.shape_cast %7 : vector<1x128xf32> to vector<1x128xf32>
    %9 = vector.broadcast %8 : vector<1x128xf32> to vector<8x128xf32>
    %c0_9 = arith.constant 0 : index
    %c0_10 = arith.constant 0 : index
    %10 = vector.load %arg9[%c0_9, %c0_10] : memref<1x128xf32, #tpu.memory_space<vmem>>, vector<1x128xf32>
    %11 = vector.shape_cast %10 : vector<1x128xf32> to vector<1x128xf32>
    %12 = vector.broadcast %11 : vector<1x128xf32> to vector<8x128xf32>
    %c0_11 = arith.constant 0 : index
    %c0_12 = arith.constant 0 : index
    %c0_13 = arith.constant 0 : index
    %13 = vector.load %arg1[%c0_11, %c0_12, %c0_13] : memref<3x8x32xf32, #tpu.memory_space<vmem>>, vector<1x8x32xf32>
    %14 = vector.shape_cast %13 : vector<1x8x32xf32> to vector<8x32xf32>
    %c1 = arith.constant 1 : index
    %c0_14 = arith.constant 0 : index
    %c0_15 = arith.constant 0 : index
    %15 = vector.load %arg1[%c1, %c0_14, %c0_15] : memref<3x8x32xf32, #tpu.memory_space<vmem>>, vector<1x8x32xf32>
    %16 = vector.shape_cast %15 : vector<1x8x32xf32> to vector<8x32xf32>
    %c2 = arith.constant 2 : index
    %c0_16 = arith.constant 0 : index
    %c0_17 = arith.constant 0 : index
    %17 = vector.load %arg1[%c2, %c0_16, %c0_17] : memref<3x8x32xf32, #tpu.memory_space<vmem>>, vector<1x8x32xf32>
    %18 = vector.shape_cast %17 : vector<1x8x32xf32> to vector<8x32xf32>
    %c0_18 = arith.constant 0 : index
    %c0_19 = arith.constant 0 : index
    %c0_20 = arith.constant 0 : index
    %19 = vector.load %arg2[%c0_18, %c0_19, %c0_20] : memref<3x8x32xf32, #tpu.memory_space<vmem>>, vector<1x8x32xf32>
    %20 = vector.shape_cast %19 : vector<1x8x32xf32> to vector<8x32xf32>
    %c1_21 = arith.constant 1 : index
    %c0_22 = arith.constant 0 : index
    %c0_23 = arith.constant 0 : index
    %21 = vector.load %arg2[%c1_21, %c0_22, %c0_23] : memref<3x8x32xf32, #tpu.memory_space<vmem>>, vector<1x8x32xf32>
    %22 = vector.shape_cast %21 : vector<1x8x32xf32> to vector<8x32xf32>
    %c2_24 = arith.constant 2 : index
    %c0_25 = arith.constant 0 : index
    %c0_26 = arith.constant 0 : index
    %23 = vector.load %arg2[%c2_24, %c0_25, %c0_26] : memref<3x8x32xf32, #tpu.memory_space<vmem>>, vector<1x8x32xf32>
    %24 = vector.shape_cast %23 : vector<1x8x32xf32> to vector<8x32xf32>
    %c0_27 = arith.constant 0 : index
    %c0_28 = arith.constant 0 : index
    %25 = vector.load %arg15[%c0_27, %c0_28] : memref<64x128xf32, #tpu.memory_space<vmem>>, vector<8x128xf32>
    %c0_29 = arith.constant 0 : index
    %c0_30 = arith.constant 0 : index
    %26 = vector.load %arg4[%c0_29, %c0_30] : memref<32x128xf32, #tpu.memory_space<vmem>>, vector<32x128xf32>
    %cst_31 = arith.constant dense<0.000000e+00> : vector<8x128xf32>
    %27 = tpu.matmul %14, %26, %cst_31 {dimension_numbers = #tpu.dot_dimension_numbers<[1], [0], [0], [1], [0, 0, 1, 1], [], []>} : vector<8x32xf32>, vector<32x128xf32>, vector<8x128xf32> -> vector<8x128xf32>
    %28 = arith.addf %25, %27 : vector<8x128xf32>
    %29 = vector.extract_strided_slice %28 {offsets = [0, 0], sizes = [8, 32], strides = [1, 1]} : vector<8x128xf32> to vector<8x32xf32>
    %30 = arith.negf %29 : vector<8x32xf32>
    %31 = math.exp %30 : vector<8x32xf32>
    %cst_32 = arith.constant 1.000000e+00 : f32
    %32 = vector.broadcast %cst_32 : f32 to vector<8x32xf32>
    %33 = arith.addf %32, %31 : vector<8x32xf32>
    %34 = arith.divf %32, %33 : vector<8x32xf32>
    %35 = vector.extract_strided_slice %28 {offsets = [0, 32], sizes = [8, 32], strides = [1, 1]} : vector<8x128xf32> to vector<8x32xf32>
    %36 = arith.negf %35 : vector<8x32xf32>
    %37 = math.exp %36 : vector<8x32xf32>
    %cst_33 = arith.constant 1.000000e+00 : f32
    %38 = vector.broadcast %cst_33 : f32 to vector<8x32xf32>
    %39 = arith.addf %38, %37 : vector<8x32xf32>
    %40 = arith.divf %38, %39 : vector<8x32xf32>
    %41 = vector.extract_strided_slice %28 {offsets = [0, 64], sizes = [8, 32], strides = [1, 1]} : vector<8x128xf32> to vector<8x32xf32>
    %42 = math.tanh %41 : vector<8x32xf32>
    %43 = vector.extract_strided_slice %28 {offsets = [0, 96], sizes = [8, 32], strides = [1, 1]} : vector<8x128xf32> to vector<8x32xf32>
    %44 = arith.negf %43 : vector<8x32xf32>
    %45 = math.exp %44 : vector<8x32xf32>
    %cst_34 = arith.constant 1.000000e+00 : f32
    %46 = vector.broadcast %cst_34 : f32 to vector<8x32xf32>
    %47 = arith.addf %46, %45 : vector<8x32xf32>
    %48 = arith.divf %46, %47 : vector<8x32xf32>
    %49 = arith.mulf %40, %20 : vector<8x32xf32>
    %50 = arith.mulf %34, %42 : vector<8x32xf32>
    %51 = arith.addf %49, %50 : vector<8x32xf32>
    %52 = math.tanh %51 : vector<8x32xf32>
    %53 = arith.mulf %48, %52 : vector<8x32xf32>
    %54 = tpu.concatenate %53, %16 in 1 : vector<8x32xf32>, vector<8x32xf32> -> vector<8x64xf32>
    %c0_35 = arith.constant 0 : index
    %c0_36 = arith.constant 0 : index
    %55 = vector.load %arg6[%c0_35, %c0_36] : memref<64x128xf32, #tpu.memory_space<vmem>>, vector<64x128xf32>
    %cst_37 = arith.constant dense<0.000000e+00> : vector<8x128xf32>
    %56 = tpu.matmul %54, %55, %cst_37 {dimension_numbers = #tpu.dot_dimension_numbers<[1], [0], [0], [1], [0, 0, 1, 1], [], []>} : vector<8x64xf32>, vector<64x128xf32>, vector<8x128xf32> -> vector<8x128xf32>
    %57 = arith.addf %56, %9 : vector<8x128xf32>
    %58 = vector.extract_strided_slice %57 {offsets = [0, 0], sizes = [8, 32], strides = [1, 1]} : vector<8x128xf32> to vector<8x32xf32>
    %59 = arith.negf %58 : vector<8x32xf32>
    %60 = math.exp %59 : vector<8x32xf32>
    %cst_38 = arith.constant 1.000000e+00 : f32
    %61 = vector.broadcast %cst_38 : f32 to vector<8x32xf32>
    %62 = arith.addf %61, %60 : vector<8x32xf32>
    %63 = arith.divf %61, %62 : vector<8x32xf32>
    %64 = vector.extract_strided_slice %57 {offsets = [0, 32], sizes = [8, 32], strides = [1, 1]} : vector<8x128xf32> to vector<8x32xf32>
    %65 = arith.negf %64 : vector<8x32xf32>
    %66 = math.exp %65 : vector<8x32xf32>
    %cst_39 = arith.constant 1.000000e+00 : f32
    %67 = vector.broadcast %cst_39 : f32 to vector<8x32xf32>
    %68 = arith.addf %67, %66 : vector<8x32xf32>
    %69 = arith.divf %67, %68 : vector<8x32xf32>
    %70 = vector.extract_strided_slice %57 {offsets = [0, 64], sizes = [8, 32], strides = [1, 1]} : vector<8x128xf32> to vector<8x32xf32>
    %71 = math.tanh %70 : vector<8x32xf32>
    %72 = vector.extract_strided_slice %57 {offsets = [0, 96], sizes = [8, 32], strides = [1, 1]} : vector<8x128xf32> to vector<8x32xf32>
    %73 = arith.negf %72 : vector<8x32xf32>
    %74 = math.exp %73 : vector<8x32xf32>
    %cst_40 = arith.constant 1.000000e+00 : f32
    %75 = vector.broadcast %cst_40 : f32 to vector<8x32xf32>
    %76 = arith.addf %75, %74 : vector<8x32xf32>
    %77 = arith.divf %75, %76 : vector<8x32xf32>
    %78 = arith.mulf %69, %22 : vector<8x32xf32>
    %79 = arith.mulf %63, %71 : vector<8x32xf32>
    %80 = arith.addf %78, %79 : vector<8x32xf32>
    %81 = math.tanh %80 : vector<8x32xf32>
    %82 = arith.mulf %77, %81 : vector<8x32xf32>
    %83 = tpu.concatenate %82, %18 in 1 : vector<8x32xf32>, vector<8x32xf32> -> vector<8x64xf32>
    %c0_41 = arith.constant 0 : index
    %c0_42 = arith.constant 0 : index
    %84 = vector.load %arg8[%c0_41, %c0_42] : memref<64x128xf32, #tpu.memory_space<vmem>>, vector<64x128xf32>
    %cst_43 = arith.constant dense<0.000000e+00> : vector<8x128xf32>
    %85 = tpu.matmul %83, %84, %cst_43 {dimension_numbers = #tpu.dot_dimension_numbers<[1], [0], [0], [1], [0, 0, 1, 1], [], []>} : vector<8x64xf32>, vector<64x128xf32>, vector<8x128xf32> -> vector<8x128xf32>
    %86 = arith.addf %85, %12 : vector<8x128xf32>
    %87 = vector.extract_strided_slice %86 {offsets = [0, 0], sizes = [8, 32], strides = [1, 1]} : vector<8x128xf32> to vector<8x32xf32>
    %88 = arith.negf %87 : vector<8x32xf32>
    %89 = math.exp %88 : vector<8x32xf32>
    %cst_44 = arith.constant 1.000000e+00 : f32
    %90 = vector.broadcast %cst_44 : f32 to vector<8x32xf32>
    %91 = arith.addf %90, %89 : vector<8x32xf32>
    %92 = arith.divf %90, %91 : vector<8x32xf32>
    %93 = vector.extract_strided_slice %86 {offsets = [0, 32], sizes = [8, 32], strides = [1, 1]} : vector<8x128xf32> to vector<8x32xf32>
    %94 = arith.negf %93 : vector<8x32xf32>
    %95 = math.exp %94 : vector<8x32xf32>
    %cst_45 = arith.constant 1.000000e+00 : f32
    %96 = vector.broadcast %cst_45 : f32 to vector<8x32xf32>
    %97 = arith.addf %96, %95 : vector<8x32xf32>
    %98 = arith.divf %96, %97 : vector<8x32xf32>
    %99 = vector.extract_strided_slice %86 {offsets = [0, 64], sizes = [8, 32], strides = [1, 1]} : vector<8x128xf32> to vector<8x32xf32>
    %100 = math.tanh %99 : vector<8x32xf32>
    %101 = vector.extract_strided_slice %86 {offsets = [0, 96], sizes = [8, 32], strides = [1, 1]} : vector<8x128xf32> to vector<8x32xf32>
    %102 = arith.negf %101 : vector<8x32xf32>
    %103 = math.exp %102 : vector<8x32xf32>
    %cst_46 = arith.constant 1.000000e+00 : f32
    %104 = vector.broadcast %cst_46 : f32 to vector<8x32xf32>
    %105 = arith.addf %104, %103 : vector<8x32xf32>
    %106 = arith.divf %104, %105 : vector<8x32xf32>
    %107 = arith.mulf %98, %24 : vector<8x32xf32>
    %108 = arith.mulf %92, %100 : vector<8x32xf32>
    %109 = arith.addf %107, %108 : vector<8x32xf32>
    %110 = math.tanh %109 : vector<8x32xf32>
    %111 = arith.mulf %106, %110 : vector<8x32xf32>
    %c0_47 = arith.constant 0 : index
    %c0_48 = arith.constant 0 : index
    %112 = vector.load %arg16[%c0_47, %c0_48] : memref<64x32xf32, #tpu.memory_space<vmem>>, vector<8x32xf32>
    tpu.vector_store %arg16[%c0_47, %c0_48], %111 {strides = array<i32>} : memref<64x32xf32, #tpu.memory_space<vmem>>, vector<8x32xf32>,
    %c8 = arith.constant 8 : index
    %c0_49 = arith.constant 0 : index
    %113 = vector.load %arg15[%c8, %c0_49] : memref<64x128xf32, #tpu.memory_space<vmem>>, vector<8x128xf32>
    %c0_50 = arith.constant 0 : index
    %c0_51 = arith.constant 0 : index
    %114 = vector.load %arg4[%c0_50, %c0_51] : memref<32x128xf32, #tpu.memory_space<vmem>>, vector<32x128xf32>
    %cst_52 = arith.constant dense<0.000000e+00> : vector<8x128xf32>
    %115 = tpu.matmul %53, %114, %cst_52 {dimension_numbers = #tpu.dot_dimension_numbers<[1], [0], [0], [1], [0, 0, 1, 1], [], []>} : vector<8x32xf32>, vector<32x128xf32>, vector<8x128xf32> -> vector<8x128xf32>
    %116 = arith.addf %113, %115 : vector<8x128xf32>
    %117 = vector.extract_strided_slice %116 {offsets = [0, 0], sizes = [8, 32], strides = [1, 1]} : vector<8x128xf32> to vector<8x32xf32>
    %118 = arith.negf %117 : vector<8x32xf32>
    %119 = math.exp %118 : vector<8x32xf32>
    %cst_53 = arith.constant 1.000000e+00 : f32
    %120 = vector.broadcast %cst_53 : f32 to vector<8x32xf32>
    %121 = arith.addf %120, %119 : vector<8x32xf32>
    %122 = arith.divf %120, %121 : vector<8x32xf32>
    %123 = vector.extract_strided_slice %116 {offsets = [0, 32], sizes = [8, 32], strides = [1, 1]} : vector<8x128xf32> to vector<8x32xf32>
    %124 = arith.negf %123 : vector<8x32xf32>
    %125 = math.exp %124 : vector<8x32xf32>
    %cst_54 = arith.constant 1.000000e+00 : f32
    %126 = vector.broadcast %cst_54 : f32 to vector<8x32xf32>
    %127 = arith.addf %126, %125 : vector<8x32xf32>
    %128 = arith.divf %126, %127 : vector<8x32xf32>
    %129 = vector.extract_strided_slice %116 {offsets = [0, 64], sizes = [8, 32], strides = [1, 1]} : vector<8x128xf32> to vector<8x32xf32>
    %130 = math.tanh %129 : vector<8x32xf32>
    %131 = vector.extract_strided_slice %116 {offsets = [0, 96], sizes = [8, 32], strides = [1, 1]} : vector<8x128xf32> to vector<8x32xf32>
    %132 = arith.negf %131 : vector<8x32xf32>
    %133 = math.exp %132 : vector<8x32xf32>
    %cst_55 = arith.constant 1.000000e+00 : f32
    %134 = vector.broadcast %cst_55 : f32 to vector<8x32xf32>
    %135 = arith.addf %134, %133 : vector<8x32xf32>
    %136 = arith.divf %134, %135 : vector<8x32xf32>
    %137 = arith.mulf %128, %51 : vector<8x32xf32>
    %138 = arith.mulf %122, %130 : vector<8x32xf32>
    %139 = arith.addf %137, %138 : vector<8x32xf32>
    %140 = math.tanh %139 : vector<8x32xf32>
    %141 = arith.mulf %136, %140 : vector<8x32xf32>
    %142 = tpu.concatenate %141, %82 in 1 : vector<8x32xf32>, vector<8x32xf32> -> vector<8x64xf32>
    %c0_56 = arith.constant 0 : index
    %c0_57 = arith.constant 0 : index
    %143 = vector.load %arg6[%c0_56, %c0_57] : memref<64x128xf32, #tpu.memory_space<vmem>>, vector<64x128xf32>
    %cst_58 = arith.constant dense<0.000000e+00> : vector<8x128xf32>
    %144 = tpu.matmul %142, %143, %cst_58 {dimension_numbers = #tpu.dot_dimension_numbers<[1], [0], [0], [1], [0, 0, 1, 1], [], []>} : vector<8x64xf32>, vector<64x128xf32>, vector<8x128xf32> -> vector<8x128xf32>
    %145 = arith.addf %144, %9 : vector<8x128xf32>
    %146 = vector.extract_strided_slice %145 {offsets = [0, 0], sizes = [8, 32], strides = [1, 1]} : vector<8x128xf32> to vector<8x32xf32>
    %147 = arith.negf %146 : vector<8x32xf32>
    %148 = math.exp %147 : vector<8x32xf32>
    %cst_59 = arith.constant 1.000000e+00 : f32
    %149 = vector.broadcast %cst_59 : f32 to vector<8x32xf32>
    %150 = arith.addf %149, %148 : vector<8x32xf32>
    %151 = arith.divf %149, %150 : vector<8x32xf32>
    %152 = vector.extract_strided_slice %145 {offsets = [0, 32], sizes = [8, 32], strides = [1, 1]} : vector<8x128xf32> to vector<8x32xf32>
    %153 = arith.negf %152 : vector<8x32xf32>
    %154 = math.exp %153 : vector<8x32xf32>
    %cst_60 = arith.constant 1.000000e+00 : f32
    %155 = vector.broadcast %cst_60 : f32 to vector<8x32xf32>
    %156 = arith.addf %155, %154 : vector<8x32xf32>
    %157 = arith.divf %155, %156 : vector<8x32xf32>
    %158 = vector.extract_strided_slice %145 {offsets = [0, 64], sizes = [8, 32], strides = [1, 1]} : vector<8x128xf32> to vector<8x32xf32>
    %159 = math.tanh %158 : vector<8x32xf32>
    %160 = vector.extract_strided_slice %145 {offsets = [0, 96], sizes = [8, 32], strides = [1, 1]} : vector<8x128xf32> to vector<8x32xf32>
    %161 = arith.negf %160 : vector<8x32xf32>
    %162 = math.exp %161 : vector<8x32xf32>
    %cst_61 = arith.constant 1.000000e+00 : f32
    %163 = vector.broadcast %cst_61 : f32 to vector<8x32xf32>
    %164 = arith.addf %163, %162 : vector<8x32xf32>
    %165 = arith.divf %163, %164 : vector<8x32xf32>
    %166 = arith.mulf %157, %80 : vector<8x32xf32>
    %167 = arith.mulf %151, %159 : vector<8x32xf32>
    %168 = arith.addf %166, %167 : vector<8x32xf32>
    %169 = math.tanh %168 : vector<8x32xf32>
    %170 = arith.mulf %165, %169 : vector<8x32xf32>
    %171 = tpu.concatenate %170, %111 in 1 : vector<8x32xf32>, vector<8x32xf32> -> vector<8x64xf32>
    %c0_62 = arith.constant 0 : index
    %c0_63 = arith.constant 0 : index
    %172 = vector.load %arg8[%c0_62, %c0_63] : memref<64x128xf32, #tpu.memory_space<vmem>>, vector<64x128xf32>
    %cst_64 = arith.constant dense<0.000000e+00> : vector<8x128xf32>
    %173 = tpu.matmul %171, %172, %cst_64 {dimension_numbers = #tpu.dot_dimension_numbers<[1], [0], [0], [1], [0, 0, 1, 1], [], []>} : vector<8x64xf32>, vector<64x128xf32>, vector<8x128xf32> -> vector<8x128xf32>
    %174 = arith.addf %173, %12 : vector<8x128xf32>
    %175 = vector.extract_strided_slice %174 {offsets = [0, 0], sizes = [8, 32], strides = [1, 1]} : vector<8x128xf32> to vector<8x32xf32>
    %176 = arith.negf %175 : vector<8x32xf32>
    %177 = math.exp %176 : vector<8x32xf32>
    %cst_65 = arith.constant 1.000000e+00 : f32
    %178 = vector.broadcast %cst_65 : f32 to vector<8x32xf32>
    %179 = arith.addf %178, %177 : vector<8x32xf32>
    %180 = arith.divf %178, %179 : vector<8x32xf32>
    %181 = vector.extract_strided_slice %174 {offsets = [0, 32], sizes = [8, 32], strides = [1, 1]} : vector<8x128xf32> to vector<8x32xf32>
    %182 = arith.negf %181 : vector<8x32xf32>
    %183 = math.exp %182 : vector<8x32xf32>
    %cst_66 = arith.constant 1.000000e+00 : f32
    %184 = vector.broadcast %cst_66 : f32 to vector<8x32xf32>
    %185 = arith.addf %184, %183 : vector<8x32xf32>
    %186 = arith.divf %184, %185 : vector<8x32xf32>
    %187 = vector.extract_strided_slice %174 {offsets = [0, 64], sizes = [8, 32], strides = [1, 1]} : vector<8x128xf32> to vector<8x32xf32>
    %188 = math.tanh %187 : vector<8x32xf32>
    %189 = vector.extract_strided_slice %174 {offsets = [0, 96], sizes = [8, 32], strides = [1, 1]} : vector<8x128xf32> to vector<8x32xf32>
    %190 = arith.negf %189 : vector<8x32xf32>
    %191 = math.exp %190 : vector<8x32xf32>
    %cst_67 = arith.constant 1.000000e+00 : f32
    %192 = vector.broadcast %cst_67 : f32 to vector<8x32xf32>
    %193 = arith.addf %192, %191 : vector<8x32xf32>
    %194 = arith.divf %192, %193 : vector<8x32xf32>
    %195 = arith.mulf %186, %109 : vector<8x32xf32>
    %196 = arith.mulf %180, %188 : vector<8x32xf32>
    %197 = arith.addf %195, %196 : vector<8x32xf32>
    %198 = math.tanh %197 : vector<8x32xf32>
    %199 = arith.mulf %194, %198 : vector<8x32xf32>
    %c8_68 = arith.constant 8 : index
    %c0_69 = arith.constant 0 : index
    %200 = vector.load %arg16[%c8_68, %c0_69] : memref<64x32xf32, #tpu.memory_space<vmem>>, vector<8x32xf32>
    tpu.vector_store %arg16[%c8_68, %c0_69], %199 {strides = array<i32>} : memref<64x32xf32, #tpu.memory_space<vmem>>, vector<8x32xf32>,
    %c16 = arith.constant 16 : index
    %c0_70 = arith.constant 0 : index
    %201 = vector.load %arg15[%c16, %c0_70] : memref<64x128xf32, #tpu.memory_space<vmem>>, vector<8x128xf32>
    %c0_71 = arith.constant 0 : index
    %c0_72 = arith.constant 0 : index
    %202 = vector.load %arg4[%c0_71, %c0_72] : memref<32x128xf32, #tpu.memory_space<vmem>>, vector<32x128xf32>
    %cst_73 = arith.constant dense<0.000000e+00> : vector<8x128xf32>
    %203 = tpu.matmul %141, %202, %cst_73 {dimension_numbers = #tpu.dot_dimension_numbers<[1], [0], [0], [1], [0, 0, 1, 1], [], []>} : vector<8x32xf32>, vector<32x128xf32>, vector<8x128xf32> -> vector<8x128xf32>
    %204 = arith.addf %201, %203 : vector<8x128xf32>
    %205 = vector.extract_strided_slice %204 {offsets = [0, 0], sizes = [8, 32], strides = [1, 1]} : vector<8x128xf32> to vector<8x32xf32>
    %206 = arith.negf %205 : vector<8x32xf32>
    %207 = math.exp %206 : vector<8x32xf32>
    %cst_74 = arith.constant 1.000000e+00 : f32
    %208 = vector.broadcast %cst_74 : f32 to vector<8x32xf32>
    %209 = arith.addf %208, %207 : vector<8x32xf32>
    %210 = arith.divf %208, %209 : vector<8x32xf32>
    %211 = vector.extract_strided_slice %204 {offsets = [0, 32], sizes = [8, 32], strides = [1, 1]} : vector<8x128xf32> to vector<8x32xf32>
    %212 = arith.negf %211 : vector<8x32xf32>
    %213 = math.exp %212 : vector<8x32xf32>
    %cst_75 = arith.constant 1.000000e+00 : f32
    %214 = vector.broadcast %cst_75 : f32 to vector<8x32xf32>
    %215 = arith.addf %214, %213 : vector<8x32xf32>
    %216 = arith.divf %214, %215 : vector<8x32xf32>
    %217 = vector.extract_strided_slice %204 {offsets = [0, 64], sizes = [8, 32], strides = [1, 1]} : vector<8x128xf32> to vector<8x32xf32>
    %218 = math.tanh %217 : vector<8x32xf32>
    %219 = vector.extract_strided_slice %204 {offsets = [0, 96], sizes = [8, 32], strides = [1, 1]} : vector<8x128xf32> to vector<8x32xf32>
    %220 = arith.negf %219 : vector<8x32xf32>
    %221 = math.exp %220 : vector<8x32xf32>
    %cst_76 = arith.constant 1.000000e+00 : f32
    %222 = vector.broadcast %cst_76 : f32 to vector<8x32xf32>
    %223 = arith.addf %222, %221 : vector<8x32xf32>
    %224 = arith.divf %222, %223 : vector<8x32xf32>
    %225 = arith.mulf %216, %139 : vector<8x32xf32>
    %226 = arith.mulf %210, %218 : vector<8x32xf32>
    %227 = arith.addf %225, %226 : vector<8x32xf32>
    %228 = math.tanh %227 : vector<8x32xf32>
    %229 = arith.mulf %224, %228 : vector<8x32xf32>
    %230 = tpu.concatenate %229, %170 in 1 : vector<8x32xf32>, vector<8x32xf32> -> vector<8x64xf32>
    %c0_77 = arith.constant 0 : index
    %c0_78 = arith.constant 0 : index
    %231 = vector.load %arg6[%c0_77, %c0_78] : memref<64x128xf32, #tpu.memory_space<vmem>>, vector<64x128xf32>
    %cst_79 = arith.constant dense<0.000000e+00> : vector<8x128xf32>
    %232 = tpu.matmul %230, %231, %cst_79 {dimension_numbers = #tpu.dot_dimension_numbers<[1], [0], [0], [1], [0, 0, 1, 1], [], []>} : vector<8x64xf32>, vector<64x128xf32>, vector<8x128xf32> -> vector<8x128xf32>
    %233 = arith.addf %232, %9 : vector<8x128xf32>
    %234 = vector.extract_strided_slice %233 {offsets = [0, 0], sizes = [8, 32], strides = [1, 1]} : vector<8x128xf32> to vector<8x32xf32>
    %235 = arith.negf %234 : vector<8x32xf32>
    %236 = math.exp %235 : vector<8x32xf32>
    %cst_80 = arith.constant 1.000000e+00 : f32
    %237 = vector.broadcast %cst_80 : f32 to vector<8x32xf32>
    %238 = arith.addf %237, %236 : vector<8x32xf32>
    %239 = arith.divf %237, %238 : vector<8x32xf32>
    %240 = vector.extract_strided_slice %233 {offsets = [0, 32], sizes = [8, 32], strides = [1, 1]} : vector<8x128xf32> to vector<8x32xf32>
    %241 = arith.negf %240 : vector<8x32xf32>
    %242 = math.exp %241 : vector<8x32xf32>
    %cst_81 = arith.constant 1.000000e+00 : f32
    %243 = vector.broadcast %cst_81 : f32 to vector<8x32xf32>
    %244 = arith.addf %243, %242 : vector<8x32xf32>
    %245 = arith.divf %243, %244 : vector<8x32xf32>
    %246 = vector.extract_strided_slice %233 {offsets = [0, 64], sizes = [8, 32], strides = [1, 1]} : vector<8x128xf32> to vector<8x32xf32>
    %247 = math.tanh %246 : vector<8x32xf32>
    %248 = vector.extract_strided_slice %233 {offsets = [0, 96], sizes = [8, 32], strides = [1, 1]} : vector<8x128xf32> to vector<8x32xf32>
    %249 = arith.negf %248 : vector<8x32xf32>
    %250 = math.exp %249 : vector<8x32xf32>
    %cst_82 = arith.constant 1.000000e+00 : f32
    %251 = vector.broadcast %cst_82 : f32 to vector<8x32xf32>
    %252 = arith.addf %251, %250 : vector<8x32xf32>
    %253 = arith.divf %251, %252 : vector<8x32xf32>
    %254 = arith.mulf %245, %168 : vector<8x32xf32>
    %255 = arith.mulf %239, %247 : vector<8x32xf32>
    %256 = arith.addf %254, %255 : vector<8x32xf32>
    %257 = math.tanh %256 : vector<8x32xf32>
    %258 = arith.mulf %253, %257 : vector<8x32xf32>
    %259 = tpu.concatenate %258, %199 in 1 : vector<8x32xf32>, vector<8x32xf32> -> vector<8x64xf32>
    %c0_83 = arith.constant 0 : index
    %c0_84 = arith.constant 0 : index
    %260 = vector.load %arg8[%c0_83, %c0_84] : memref<64x128xf32, #tpu.memory_space<vmem>>, vector<64x128xf32>
    %cst_85 = arith.constant dense<0.000000e+00> : vector<8x128xf32>
    %261 = tpu.matmul %259, %260, %cst_85 {dimension_numbers = #tpu.dot_dimension_numbers<[1], [0], [0], [1], [0, 0, 1, 1], [], []>} : vector<8x64xf32>, vector<64x128xf32>, vector<8x128xf32> -> vector<8x128xf32>
    %262 = arith.addf %261, %12 : vector<8x128xf32>
    %263 = vector.extract_strided_slice %262 {offsets = [0, 0], sizes = [8, 32], strides = [1, 1]} : vector<8x128xf32> to vector<8x32xf32>
    %264 = arith.negf %263 : vector<8x32xf32>
    %265 = math.exp %264 : vector<8x32xf32>
    %cst_86 = arith.constant 1.000000e+00 : f32
    %266 = vector.broadcast %cst_86 : f32 to vector<8x32xf32>
    %267 = arith.addf %266, %265 : vector<8x32xf32>
    %268 = arith.divf %266, %267 : vector<8x32xf32>
    %269 = vector.extract_strided_slice %262 {offsets = [0, 32], sizes = [8, 32], strides = [1, 1]} : vector<8x128xf32> to vector<8x32xf32>
    %270 = arith.negf %269 : vector<8x32xf32>
    %271 = math.exp %270 : vector<8x32xf32>
    %cst_87 = arith.constant 1.000000e+00 : f32
    %272 = vector.broadcast %cst_87 : f32 to vector<8x32xf32>
    %273 = arith.addf %272, %271 : vector<8x32xf32>
    %274 = arith.divf %272, %273 : vector<8x32xf32>
    %275 = vector.extract_strided_slice %262 {offsets = [0, 64], sizes = [8, 32], strides = [1, 1]} : vector<8x128xf32> to vector<8x32xf32>
    %276 = math.tanh %275 : vector<8x32xf32>
    %277 = vector.extract_strided_slice %262 {offsets = [0, 96], sizes = [8, 32], strides = [1, 1]} : vector<8x128xf32> to vector<8x32xf32>
    %278 = arith.negf %277 : vector<8x32xf32>
    %279 = math.exp %278 : vector<8x32xf32>
    %cst_88 = arith.constant 1.000000e+00 : f32
    %280 = vector.broadcast %cst_88 : f32 to vector<8x32xf32>
    %281 = arith.addf %280, %279 : vector<8x32xf32>
    %282 = arith.divf %280, %281 : vector<8x32xf32>
    %283 = arith.mulf %274, %197 : vector<8x32xf32>
    %284 = arith.mulf %268, %276 : vector<8x32xf32>
    %285 = arith.addf %283, %284 : vector<8x32xf32>
    %286 = math.tanh %285 : vector<8x32xf32>
    %287 = arith.mulf %282, %286 : vector<8x32xf32>
    %c16_89 = arith.constant 16 : index
    %c0_90 = arith.constant 0 : index
    %288 = vector.load %arg16[%c16_89, %c0_90] : memref<64x32xf32, #tpu.memory_space<vmem>>, vector<8x32xf32>
    tpu.vector_store %arg16[%c16_89, %c0_90], %287 {strides = array<i32>} : memref<64x32xf32, #tpu.memory_space<vmem>>, vector<8x32xf32>,
    %c24 = arith.constant 24 : index
    %c0_91 = arith.constant 0 : index
    %289 = vector.load %arg15[%c24, %c0_91] : memref<64x128xf32, #tpu.memory_space<vmem>>, vector<8x128xf32>
    %c0_92 = arith.constant 0 : index
    %c0_93 = arith.constant 0 : index
    %290 = vector.load %arg4[%c0_92, %c0_93] : memref<32x128xf32, #tpu.memory_space<vmem>>, vector<32x128xf32>
    %cst_94 = arith.constant dense<0.000000e+00> : vector<8x128xf32>
    %291 = tpu.matmul %229, %290, %cst_94 {dimension_numbers = #tpu.dot_dimension_numbers<[1], [0], [0], [1], [0, 0, 1, 1], [], []>} : vector<8x32xf32>, vector<32x128xf32>, vector<8x128xf32> -> vector<8x128xf32>
    %292 = arith.addf %289, %291 : vector<8x128xf32>
    %293 = vector.extract_strided_slice %292 {offsets = [0, 0], sizes = [8, 32], strides = [1, 1]} : vector<8x128xf32> to vector<8x32xf32>
    %294 = arith.negf %293 : vector<8x32xf32>
    %295 = math.exp %294 : vector<8x32xf32>
    %cst_95 = arith.constant 1.000000e+00 : f32
    %296 = vector.broadcast %cst_95 : f32 to vector<8x32xf32>
    %297 = arith.addf %296, %295 : vector<8x32xf32>
    %298 = arith.divf %296, %297 : vector<8x32xf32>
    %299 = vector.extract_strided_slice %292 {offsets = [0, 32], sizes = [8, 32], strides = [1, 1]} : vector<8x128xf32> to vector<8x32xf32>
    %300 = arith.negf %299 : vector<8x32xf32>
    %301 = math.exp %300 : vector<8x32xf32>
    %cst_96 = arith.constant 1.000000e+00 : f32
    %302 = vector.broadcast %cst_96 : f32 to vector<8x32xf32>
    %303 = arith.addf %302, %301 : vector<8x32xf32>
    %304 = arith.divf %302, %303 : vector<8x32xf32>
    %305 = vector.extract_strided_slice %292 {offsets = [0, 64], sizes = [8, 32], strides = [1, 1]} : vector<8x128xf32> to vector<8x32xf32>
    %306 = math.tanh %305 : vector<8x32xf32>
    %307 = vector.extract_strided_slice %292 {offsets = [0, 96], sizes = [8, 32], strides = [1, 1]} : vector<8x128xf32> to vector<8x32xf32>
    %308 = arith.negf %307 : vector<8x32xf32>
    %309 = math.exp %308 : vector<8x32xf32>
    %cst_97 = arith.constant 1.000000e+00 : f32
    %310 = vector.broadcast %cst_97 : f32 to vector<8x32xf32>
    %311 = arith.addf %310, %309 : vector<8x32xf32>
    %312 = arith.divf %310, %311 : vector<8x32xf32>
    %313 = arith.mulf %304, %227 : vector<8x32xf32>
    %314 = arith.mulf %298, %306 : vector<8x32xf32>
    %315 = arith.addf %313, %314 : vector<8x32xf32>
    %316 = math.tanh %315 : vector<8x32xf32>
    %317 = arith.mulf %312, %316 : vector<8x32xf32>
    %318 = tpu.concatenate %317, %258 in 1 : vector<8x32xf32>, vector<8x32xf32> -> vector<8x64xf32>
    %c0_98 = arith.constant 0 : index
    %c0_99 = arith.constant 0 : index
    %319 = vector.load %arg6[%c0_98, %c0_99] : memref<64x128xf32, #tpu.memory_space<vmem>>, vector<64x128xf32>
    %cst_100 = arith.constant dense<0.000000e+00> : vector<8x128xf32>
    %320 = tpu.matmul %318, %319, %cst_100 {dimension_numbers = #tpu.dot_dimension_numbers<[1], [0], [0], [1], [0, 0, 1, 1], [], []>} : vector<8x64xf32>, vector<64x128xf32>, vector<8x128xf32> -> vector<8x128xf32>
    %321 = arith.addf %320, %9 : vector<8x128xf32>
    %322 = vector.extract_strided_slice %321 {offsets = [0, 0], sizes = [8, 32], strides = [1, 1]} : vector<8x128xf32> to vector<8x32xf32>
    %323 = arith.negf %322 : vector<8x32xf32>
    %324 = math.exp %323 : vector<8x32xf32>
    %cst_101 = arith.constant 1.000000e+00 : f32
    %325 = vector.broadcast %cst_101 : f32 to vector<8x32xf32>
    %326 = arith.addf %325, %324 : vector<8x32xf32>
    %327 = arith.divf %325, %326 : vector<8x32xf32>
    %328 = vector.extract_strided_slice %321 {offsets = [0, 32], sizes = [8, 32], strides = [1, 1]} : vector<8x128xf32> to vector<8x32xf32>
    %329 = arith.negf %328 : vector<8x32xf32>
    %330 = math.exp %329 : vector<8x32xf32>
    %cst_102 = arith.constant 1.000000e+00 : f32
    %331 = vector.broadcast %cst_102 : f32 to vector<8x32xf32>
    %332 = arith.addf %331, %330 : vector<8x32xf32>
    %333 = arith.divf %331, %332 : vector<8x32xf32>
    %334 = vector.extract_strided_slice %321 {offsets = [0, 64], sizes = [8, 32], strides = [1, 1]} : vector<8x128xf32> to vector<8x32xf32>
    %335 = math.tanh %334 : vector<8x32xf32>
    %336 = vector.extract_strided_slice %321 {offsets = [0, 96], sizes = [8, 32], strides = [1, 1]} : vector<8x128xf32> to vector<8x32xf32>
    %337 = arith.negf %336 : vector<8x32xf32>
    %338 = math.exp %337 : vector<8x32xf32>
    %cst_103 = arith.constant 1.000000e+00 : f32
    %339 = vector.broadcast %cst_103 : f32 to vector<8x32xf32>
    %340 = arith.addf %339, %338 : vector<8x32xf32>
    %341 = arith.divf %339, %340 : vector<8x32xf32>
    %342 = arith.mulf %333, %256 : vector<8x32xf32>
    %343 = arith.mulf %327, %335 : vector<8x32xf32>
    %344 = arith.addf %342, %343 : vector<8x32xf32>
    %345 = math.tanh %344 : vector<8x32xf32>
    %346 = arith.mulf %341, %345 : vector<8x32xf32>
    %347 = tpu.concatenate %346, %287 in 1 : vector<8x32xf32>, vector<8x32xf32> -> vector<8x64xf32>
    %c0_104 = arith.constant 0 : index
    %c0_105 = arith.constant 0 : index
    %348 = vector.load %arg8[%c0_104, %c0_105] : memref<64x128xf32, #tpu.memory_space<vmem>>, vector<64x128xf32>
    %cst_106 = arith.constant dense<0.000000e+00> : vector<8x128xf32>
    %349 = tpu.matmul %347, %348, %cst_106 {dimension_numbers = #tpu.dot_dimension_numbers<[1], [0], [0], [1], [0, 0, 1, 1], [], []>} : vector<8x64xf32>, vector<64x128xf32>, vector<8x128xf32> -> vector<8x128xf32>
    %350 = arith.addf %349, %12 : vector<8x128xf32>
    %351 = vector.extract_strided_slice %350 {offsets = [0, 0], sizes = [8, 32], strides = [1, 1]} : vector<8x128xf32> to vector<8x32xf32>
    %352 = arith.negf %351 : vector<8x32xf32>
    %353 = math.exp %352 : vector<8x32xf32>
    %cst_107 = arith.constant 1.000000e+00 : f32
    %354 = vector.broadcast %cst_107 : f32 to vector<8x32xf32>
    %355 = arith.addf %354, %353 : vector<8x32xf32>
    %356 = arith.divf %354, %355 : vector<8x32xf32>
    %357 = vector.extract_strided_slice %350 {offsets = [0, 32], sizes = [8, 32], strides = [1, 1]} : vector<8x128xf32> to vector<8x32xf32>
    %358 = arith.negf %357 : vector<8x32xf32>
    %359 = math.exp %358 : vector<8x32xf32>
    %cst_108 = arith.constant 1.000000e+00 : f32
    %360 = vector.broadcast %cst_108 : f32 to vector<8x32xf32>
    %361 = arith.addf %360, %359 : vector<8x32xf32>
    %362 = arith.divf %360, %361 : vector<8x32xf32>
    %363 = vector.extract_strided_slice %350 {offsets = [0, 64], sizes = [8, 32], strides = [1, 1]} : vector<8x128xf32> to vector<8x32xf32>
    %364 = math.tanh %363 : vector<8x32xf32>
    %365 = vector.extract_strided_slice %350 {offsets = [0, 96], sizes = [8, 32], strides = [1, 1]} : vector<8x128xf32> to vector<8x32xf32>
    %366 = arith.negf %365 : vector<8x32xf32>
    %367 = math.exp %366 : vector<8x32xf32>
    %cst_109 = arith.constant 1.000000e+00 : f32
    %368 = vector.broadcast %cst_109 : f32 to vector<8x32xf32>
    %369 = arith.addf %368, %367 : vector<8x32xf32>
    %370 = arith.divf %368, %369 : vector<8x32xf32>
    %371 = arith.mulf %362, %285 : vector<8x32xf32>
    %372 = arith.mulf %356, %364 : vector<8x32xf32>
    %373 = arith.addf %371, %372 : vector<8x32xf32>
    %374 = math.tanh %373 : vector<8x32xf32>
    %375 = arith.mulf %370, %374 : vector<8x32xf32>
    %c24_110 = arith.constant 24 : index
    %c0_111 = arith.constant 0 : index
    %376 = vector.load %arg16[%c24_110, %c0_111] : memref<64x32xf32, #tpu.memory_space<vmem>>, vector<8x32xf32>
    tpu.vector_store %arg16[%c24_110, %c0_111], %375 {strides = array<i32>} : memref<64x32xf32, #tpu.memory_space<vmem>>, vector<8x32xf32>,
    %c32 = arith.constant 32 : index
    %c0_112 = arith.constant 0 : index
    %377 = vector.load %arg15[%c32, %c0_112] : memref<64x128xf32, #tpu.memory_space<vmem>>, vector<8x128xf32>
    %c0_113 = arith.constant 0 : index
    %c0_114 = arith.constant 0 : index
    %378 = vector.load %arg4[%c0_113, %c0_114] : memref<32x128xf32, #tpu.memory_space<vmem>>, vector<32x128xf32>
    %cst_115 = arith.constant dense<0.000000e+00> : vector<8x128xf32>
    %379 = tpu.matmul %317, %378, %cst_115 {dimension_numbers = #tpu.dot_dimension_numbers<[1], [0], [0], [1], [0, 0, 1, 1], [], []>} : vector<8x32xf32>, vector<32x128xf32>, vector<8x128xf32> -> vector<8x128xf32>
    %380 = arith.addf %377, %379 : vector<8x128xf32>
    %381 = vector.extract_strided_slice %380 {offsets = [0, 0], sizes = [8, 32], strides = [1, 1]} : vector<8x128xf32> to vector<8x32xf32>
    %382 = arith.negf %381 : vector<8x32xf32>
    %383 = math.exp %382 : vector<8x32xf32>
    %cst_116 = arith.constant 1.000000e+00 : f32
    %384 = vector.broadcast %cst_116 : f32 to vector<8x32xf32>
    %385 = arith.addf %384, %383 : vector<8x32xf32>
    %386 = arith.divf %384, %385 : vector<8x32xf32>
    %387 = vector.extract_strided_slice %380 {offsets = [0, 32], sizes = [8, 32], strides = [1, 1]} : vector<8x128xf32> to vector<8x32xf32>
    %388 = arith.negf %387 : vector<8x32xf32>
    %389 = math.exp %388 : vector<8x32xf32>
    %cst_117 = arith.constant 1.000000e+00 : f32
    %390 = vector.broadcast %cst_117 : f32 to vector<8x32xf32>
    %391 = arith.addf %390, %389 : vector<8x32xf32>
    %392 = arith.divf %390, %391 : vector<8x32xf32>
    %393 = vector.extract_strided_slice %380 {offsets = [0, 64], sizes = [8, 32], strides = [1, 1]} : vector<8x128xf32> to vector<8x32xf32>
    %394 = math.tanh %393 : vector<8x32xf32>
    %395 = vector.extract_strided_slice %380 {offsets = [0, 96], sizes = [8, 32], strides = [1, 1]} : vector<8x128xf32> to vector<8x32xf32>
    %396 = arith.negf %395 : vector<8x32xf32>
    %397 = math.exp %396 : vector<8x32xf32>
    %cst_118 = arith.constant 1.000000e+00 : f32
    %398 = vector.broadcast %cst_118 : f32 to vector<8x32xf32>
    %399 = arith.addf %398, %397 : vector<8x32xf32>
    %400 = arith.divf %398, %399 : vector<8x32xf32>
    %401 = arith.mulf %392, %315 : vector<8x32xf32>
    %402 = arith.mulf %386, %394 : vector<8x32xf32>
    %403 = arith.addf %401, %402 : vector<8x32xf32>
    %404 = math.tanh %403 : vector<8x32xf32>
    %405 = arith.mulf %400, %404 : vector<8x32xf32>
    %406 = tpu.concatenate %405, %346 in 1 : vector<8x32xf32>, vector<8x32xf32> -> vector<8x64xf32>
    %c0_119 = arith.constant 0 : index
    %c0_120 = arith.constant 0 : index
    %407 = vector.load %arg6[%c0_119, %c0_120] : memref<64x128xf32, #tpu.memory_space<vmem>>, vector<64x128xf32>
    %cst_121 = arith.constant dense<0.000000e+00> : vector<8x128xf32>
    %408 = tpu.matmul %406, %407, %cst_121 {dimension_numbers = #tpu.dot_dimension_numbers<[1], [0], [0], [1], [0, 0, 1, 1], [], []>} : vector<8x64xf32>, vector<64x128xf32>, vector<8x128xf32> -> vector<8x128xf32>
    %409 = arith.addf %408, %9 : vector<8x128xf32>
    %410 = vector.extract_strided_slice %409 {offsets = [0, 0], sizes = [8, 32], strides = [1, 1]} : vector<8x128xf32> to vector<8x32xf32>
    %411 = arith.negf %410 : vector<8x32xf32>
    %412 = math.exp %411 : vector<8x32xf32>
    %cst_122 = arith.constant 1.000000e+00 : f32
    %413 = vector.broadcast %cst_122 : f32 to vector<8x32xf32>
    %414 = arith.addf %413, %412 : vector<8x32xf32>
    %415 = arith.divf %413, %414 : vector<8x32xf32>
    %416 = vector.extract_strided_slice %409 {offsets = [0, 32], sizes = [8, 32], strides = [1, 1]} : vector<8x128xf32> to vector<8x32xf32>
    %417 = arith.negf %416 : vector<8x32xf32>
    %418 = math.exp %417 : vector<8x32xf32>
    %cst_123 = arith.constant 1.000000e+00 : f32
    %419 = vector.broadcast %cst_123 : f32 to vector<8x32xf32>
    %420 = arith.addf %419, %418 : vector<8x32xf32>
    %421 = arith.divf %419, %420 : vector<8x32xf32>
    %422 = vector.extract_strided_slice %409 {offsets = [0, 64], sizes = [8, 32], strides = [1, 1]} : vector<8x128xf32> to vector<8x32xf32>
    %423 = math.tanh %422 : vector<8x32xf32>
    %424 = vector.extract_strided_slice %409 {offsets = [0, 96], sizes = [8, 32], strides = [1, 1]} : vector<8x128xf32> to vector<8x32xf32>
    %425 = arith.negf %424 : vector<8x32xf32>
    %426 = math.exp %425 : vector<8x32xf32>
    %cst_124 = arith.constant 1.000000e+00 : f32
    %427 = vector.broadcast %cst_124 : f32 to vector<8x32xf32>
    %428 = arith.addf %427, %426 : vector<8x32xf32>
    %429 = arith.divf %427, %428 : vector<8x32xf32>
    %430 = arith.mulf %421, %344 : vector<8x32xf32>
    %431 = arith.mulf %415, %423 : vector<8x32xf32>
    %432 = arith.addf %430, %431 : vector<8x32xf32>
    %433 = math.tanh %432 : vector<8x32xf32>
    %434 = arith.mulf %429, %433 : vector<8x32xf32>
    %435 = tpu.concatenate %434, %375 in 1 : vector<8x32xf32>, vector<8x32xf32> -> vector<8x64xf32>
    %c0_125 = arith.constant 0 : index
    %c0_126 = arith.constant 0 : index
    %436 = vector.load %arg8[%c0_125, %c0_126] : memref<64x128xf32, #tpu.memory_space<vmem>>, vector<64x128xf32>
    %cst_127 = arith.constant dense<0.000000e+00> : vector<8x128xf32>
    %437 = tpu.matmul %435, %436, %cst_127 {dimension_numbers = #tpu.dot_dimension_numbers<[1], [0], [0], [1], [0, 0, 1, 1], [], []>} : vector<8x64xf32>, vector<64x128xf32>, vector<8x128xf32> -> vector<8x128xf32>
    %438 = arith.addf %437, %12 : vector<8x128xf32>
    %439 = vector.extract_strided_slice %438 {offsets = [0, 0], sizes = [8, 32], strides = [1, 1]} : vector<8x128xf32> to vector<8x32xf32>
    %440 = arith.negf %439 : vector<8x32xf32>
    %441 = math.exp %440 : vector<8x32xf32>
    %cst_128 = arith.constant 1.000000e+00 : f32
    %442 = vector.broadcast %cst_128 : f32 to vector<8x32xf32>
    %443 = arith.addf %442, %441 : vector<8x32xf32>
    %444 = arith.divf %442, %443 : vector<8x32xf32>
    %445 = vector.extract_strided_slice %438 {offsets = [0, 32], sizes = [8, 32], strides = [1, 1]} : vector<8x128xf32> to vector<8x32xf32>
    %446 = arith.negf %445 : vector<8x32xf32>
    %447 = math.exp %446 : vector<8x32xf32>
    %cst_129 = arith.constant 1.000000e+00 : f32
    %448 = vector.broadcast %cst_129 : f32 to vector<8x32xf32>
    %449 = arith.addf %448, %447 : vector<8x32xf32>
    %450 = arith.divf %448, %449 : vector<8x32xf32>
    %451 = vector.extract_strided_slice %438 {offsets = [0, 64], sizes = [8, 32], strides = [1, 1]} : vector<8x128xf32> to vector<8x32xf32>
    %452 = math.tanh %451 : vector<8x32xf32>
    %453 = vector.extract_strided_slice %438 {offsets = [0, 96], sizes = [8, 32], strides = [1, 1]} : vector<8x128xf32> to vector<8x32xf32>
    %454 = arith.negf %453 : vector<8x32xf32>
    %455 = math.exp %454 : vector<8x32xf32>
    %cst_130 = arith.constant 1.000000e+00 : f32
    %456 = vector.broadcast %cst_130 : f32 to vector<8x32xf32>
    %457 = arith.addf %456, %455 : vector<8x32xf32>
    %458 = arith.divf %456, %457 : vector<8x32xf32>
    %459 = arith.mulf %450, %373 : vector<8x32xf32>
    %460 = arith.mulf %444, %452 : vector<8x32xf32>
    %461 = arith.addf %459, %460 : vector<8x32xf32>
    %462 = math.tanh %461 : vector<8x32xf32>
    %463 = arith.mulf %458, %462 : vector<8x32xf32>
    %c32_131 = arith.constant 32 : index
    %c0_132 = arith.constant 0 : index
    %464 = vector.load %arg16[%c32_131, %c0_132] : memref<64x32xf32, #tpu.memory_space<vmem>>, vector<8x32xf32>
    tpu.vector_store %arg16[%c32_131, %c0_132], %463 {strides = array<i32>} : memref<64x32xf32, #tpu.memory_space<vmem>>, vector<8x32xf32>,
    %c40 = arith.constant 40 : index
    %c0_133 = arith.constant 0 : index
    %465 = vector.load %arg15[%c40, %c0_133] : memref<64x128xf32, #tpu.memory_space<vmem>>, vector<8x128xf32>
    %c0_134 = arith.constant 0 : index
    %c0_135 = arith.constant 0 : index
    %466 = vector.load %arg4[%c0_134, %c0_135] : memref<32x128xf32, #tpu.memory_space<vmem>>, vector<32x128xf32>
    %cst_136 = arith.constant dense<0.000000e+00> : vector<8x128xf32>
    %467 = tpu.matmul %405, %466, %cst_136 {dimension_numbers = #tpu.dot_dimension_numbers<[1], [0], [0], [1], [0, 0, 1, 1], [], []>} : vector<8x32xf32>, vector<32x128xf32>, vector<8x128xf32> -> vector<8x128xf32>
    %468 = arith.addf %465, %467 : vector<8x128xf32>
    %469 = vector.extract_strided_slice %468 {offsets = [0, 0], sizes = [8, 32], strides = [1, 1]} : vector<8x128xf32> to vector<8x32xf32>
    %470 = arith.negf %469 : vector<8x32xf32>
    %471 = math.exp %470 : vector<8x32xf32>
    %cst_137 = arith.constant 1.000000e+00 : f32
    %472 = vector.broadcast %cst_137 : f32 to vector<8x32xf32>
    %473 = arith.addf %472, %471 : vector<8x32xf32>
    %474 = arith.divf %472, %473 : vector<8x32xf32>
    %475 = vector.extract_strided_slice %468 {offsets = [0, 32], sizes = [8, 32], strides = [1, 1]} : vector<8x128xf32> to vector<8x32xf32>
    %476 = arith.negf %475 : vector<8x32xf32>
    %477 = math.exp %476 : vector<8x32xf32>
    %cst_138 = arith.constant 1.000000e+00 : f32
    %478 = vector.broadcast %cst_138 : f32 to vector<8x32xf32>
    %479 = arith.addf %478, %477 : vector<8x32xf32>
    %480 = arith.divf %478, %479 : vector<8x32xf32>
    %481 = vector.extract_strided_slice %468 {offsets = [0, 64], sizes = [8, 32], strides = [1, 1]} : vector<8x128xf32> to vector<8x32xf32>
    %482 = math.tanh %481 : vector<8x32xf32>
    %483 = vector.extract_strided_slice %468 {offsets = [0, 96], sizes = [8, 32], strides = [1, 1]} : vector<8x128xf32> to vector<8x32xf32>
    %484 = arith.negf %483 : vector<8x32xf32>
    %485 = math.exp %484 : vector<8x32xf32>
    %cst_139 = arith.constant 1.000000e+00 : f32
    %486 = vector.broadcast %cst_139 : f32 to vector<8x32xf32>
    %487 = arith.addf %486, %485 : vector<8x32xf32>
    %488 = arith.divf %486, %487 : vector<8x32xf32>
    %489 = arith.mulf %480, %403 : vector<8x32xf32>
    %490 = arith.mulf %474, %482 : vector<8x32xf32>
    %491 = arith.addf %489, %490 : vector<8x32xf32>
    %492 = math.tanh %491 : vector<8x32xf32>
    %493 = arith.mulf %488, %492 : vector<8x32xf32>
    %494 = tpu.concatenate %493, %434 in 1 : vector<8x32xf32>, vector<8x32xf32> -> vector<8x64xf32>
    %c0_140 = arith.constant 0 : index
    %c0_141 = arith.constant 0 : index
    %495 = vector.load %arg6[%c0_140, %c0_141] : memref<64x128xf32, #tpu.memory_space<vmem>>, vector<64x128xf32>
    %cst_142 = arith.constant dense<0.000000e+00> : vector<8x128xf32>
    %496 = tpu.matmul %494, %495, %cst_142 {dimension_numbers = #tpu.dot_dimension_numbers<[1], [0], [0], [1], [0, 0, 1, 1], [], []>} : vector<8x64xf32>, vector<64x128xf32>, vector<8x128xf32> -> vector<8x128xf32>
    %497 = arith.addf %496, %9 : vector<8x128xf32>
    %498 = vector.extract_strided_slice %497 {offsets = [0, 0], sizes = [8, 32], strides = [1, 1]} : vector<8x128xf32> to vector<8x32xf32>
    %499 = arith.negf %498 : vector<8x32xf32>
    %500 = math.exp %499 : vector<8x32xf32>
    %cst_143 = arith.constant 1.000000e+00 : f32
    %501 = vector.broadcast %cst_143 : f32 to vector<8x32xf32>
    %502 = arith.addf %501, %500 : vector<8x32xf32>
    %503 = arith.divf %501, %502 : vector<8x32xf32>
    %504 = vector.extract_strided_slice %497 {offsets = [0, 32], sizes = [8, 32], strides = [1, 1]} : vector<8x128xf32> to vector<8x32xf32>
    %505 = arith.negf %504 : vector<8x32xf32>
    %506 = math.exp %505 : vector<8x32xf32>
    %cst_144 = arith.constant 1.000000e+00 : f32
    %507 = vector.broadcast %cst_144 : f32 to vector<8x32xf32>
    %508 = arith.addf %507, %506 : vector<8x32xf32>
    %509 = arith.divf %507, %508 : vector<8x32xf32>
    %510 = vector.extract_strided_slice %497 {offsets = [0, 64], sizes = [8, 32], strides = [1, 1]} : vector<8x128xf32> to vector<8x32xf32>
    %511 = math.tanh %510 : vector<8x32xf32>
    %512 = vector.extract_strided_slice %497 {offsets = [0, 96], sizes = [8, 32], strides = [1, 1]} : vector<8x128xf32> to vector<8x32xf32>
    %513 = arith.negf %512 : vector<8x32xf32>
    %514 = math.exp %513 : vector<8x32xf32>
    %cst_145 = arith.constant 1.000000e+00 : f32
    %515 = vector.broadcast %cst_145 : f32 to vector<8x32xf32>
    %516 = arith.addf %515, %514 : vector<8x32xf32>
    %517 = arith.divf %515, %516 : vector<8x32xf32>
    %518 = arith.mulf %509, %432 : vector<8x32xf32>
    %519 = arith.mulf %503, %511 : vector<8x32xf32>
    %520 = arith.addf %518, %519 : vector<8x32xf32>
    %521 = math.tanh %520 : vector<8x32xf32>
    %522 = arith.mulf %517, %521 : vector<8x32xf32>
    %523 = tpu.concatenate %522, %463 in 1 : vector<8x32xf32>, vector<8x32xf32> -> vector<8x64xf32>
    %c0_146 = arith.constant 0 : index
    %c0_147 = arith.constant 0 : index
    %524 = vector.load %arg8[%c0_146, %c0_147] : memref<64x128xf32, #tpu.memory_space<vmem>>, vector<64x128xf32>
    %cst_148 = arith.constant dense<0.000000e+00> : vector<8x128xf32>
    %525 = tpu.matmul %523, %524, %cst_148 {dimension_numbers = #tpu.dot_dimension_numbers<[1], [0], [0], [1], [0, 0, 1, 1], [], []>} : vector<8x64xf32>, vector<64x128xf32>, vector<8x128xf32> -> vector<8x128xf32>
    %526 = arith.addf %525, %12 : vector<8x128xf32>
    %527 = vector.extract_strided_slice %526 {offsets = [0, 0], sizes = [8, 32], strides = [1, 1]} : vector<8x128xf32> to vector<8x32xf32>
    %528 = arith.negf %527 : vector<8x32xf32>
    %529 = math.exp %528 : vector<8x32xf32>
    %cst_149 = arith.constant 1.000000e+00 : f32
    %530 = vector.broadcast %cst_149 : f32 to vector<8x32xf32>
    %531 = arith.addf %530, %529 : vector<8x32xf32>
    %532 = arith.divf %530, %531 : vector<8x32xf32>
    %533 = vector.extract_strided_slice %526 {offsets = [0, 32], sizes = [8, 32], strides = [1, 1]} : vector<8x128xf32> to vector<8x32xf32>
    %534 = arith.negf %533 : vector<8x32xf32>
    %535 = math.exp %534 : vector<8x32xf32>
    %cst_150 = arith.constant 1.000000e+00 : f32
    %536 = vector.broadcast %cst_150 : f32 to vector<8x32xf32>
    %537 = arith.addf %536, %535 : vector<8x32xf32>
    %538 = arith.divf %536, %537 : vector<8x32xf32>
    %539 = vector.extract_strided_slice %526 {offsets = [0, 64], sizes = [8, 32], strides = [1, 1]} : vector<8x128xf32> to vector<8x32xf32>
    %540 = math.tanh %539 : vector<8x32xf32>
    %541 = vector.extract_strided_slice %526 {offsets = [0, 96], sizes = [8, 32], strides = [1, 1]} : vector<8x128xf32> to vector<8x32xf32>
    %542 = arith.negf %541 : vector<8x32xf32>
    %543 = math.exp %542 : vector<8x32xf32>
    %cst_151 = arith.constant 1.000000e+00 : f32
    %544 = vector.broadcast %cst_151 : f32 to vector<8x32xf32>
    %545 = arith.addf %544, %543 : vector<8x32xf32>
    %546 = arith.divf %544, %545 : vector<8x32xf32>
    %547 = arith.mulf %538, %461 : vector<8x32xf32>
    %548 = arith.mulf %532, %540 : vector<8x32xf32>
    %549 = arith.addf %547, %548 : vector<8x32xf32>
    %550 = math.tanh %549 : vector<8x32xf32>
    %551 = arith.mulf %546, %550 : vector<8x32xf32>
    %c40_152 = arith.constant 40 : index
    %c0_153 = arith.constant 0 : index
    %552 = vector.load %arg16[%c40_152, %c0_153] : memref<64x32xf32, #tpu.memory_space<vmem>>, vector<8x32xf32>
    tpu.vector_store %arg16[%c40_152, %c0_153], %551 {strides = array<i32>} : memref<64x32xf32, #tpu.memory_space<vmem>>, vector<8x32xf32>,
    %c48 = arith.constant 48 : index
    %c0_154 = arith.constant 0 : index
    %553 = vector.load %arg15[%c48, %c0_154] : memref<64x128xf32, #tpu.memory_space<vmem>>, vector<8x128xf32>
    %c0_155 = arith.constant 0 : index
    %c0_156 = arith.constant 0 : index
    %554 = vector.load %arg4[%c0_155, %c0_156] : memref<32x128xf32, #tpu.memory_space<vmem>>, vector<32x128xf32>
    %cst_157 = arith.constant dense<0.000000e+00> : vector<8x128xf32>
    %555 = tpu.matmul %493, %554, %cst_157 {dimension_numbers = #tpu.dot_dimension_numbers<[1], [0], [0], [1], [0, 0, 1, 1], [], []>} : vector<8x32xf32>, vector<32x128xf32>, vector<8x128xf32> -> vector<8x128xf32>
    %556 = arith.addf %553, %555 : vector<8x128xf32>
    %557 = vector.extract_strided_slice %556 {offsets = [0, 0], sizes = [8, 32], strides = [1, 1]} : vector<8x128xf32> to vector<8x32xf32>
    %558 = arith.negf %557 : vector<8x32xf32>
    %559 = math.exp %558 : vector<8x32xf32>
    %cst_158 = arith.constant 1.000000e+00 : f32
    %560 = vector.broadcast %cst_158 : f32 to vector<8x32xf32>
    %561 = arith.addf %560, %559 : vector<8x32xf32>
    %562 = arith.divf %560, %561 : vector<8x32xf32>
    %563 = vector.extract_strided_slice %556 {offsets = [0, 32], sizes = [8, 32], strides = [1, 1]} : vector<8x128xf32> to vector<8x32xf32>
    %564 = arith.negf %563 : vector<8x32xf32>
    %565 = math.exp %564 : vector<8x32xf32>
    %cst_159 = arith.constant 1.000000e+00 : f32
    %566 = vector.broadcast %cst_159 : f32 to vector<8x32xf32>
    %567 = arith.addf %566, %565 : vector<8x32xf32>
    %568 = arith.divf %566, %567 : vector<8x32xf32>
    %569 = vector.extract_strided_slice %556 {offsets = [0, 64], sizes = [8, 32], strides = [1, 1]} : vector<8x128xf32> to vector<8x32xf32>
    %570 = math.tanh %569 : vector<8x32xf32>
    %571 = vector.extract_strided_slice %556 {offsets = [0, 96], sizes = [8, 32], strides = [1, 1]} : vector<8x128xf32> to vector<8x32xf32>
    %572 = arith.negf %571 : vector<8x32xf32>
    %573 = math.exp %572 : vector<8x32xf32>
    %cst_160 = arith.constant 1.000000e+00 : f32
    %574 = vector.broadcast %cst_160 : f32 to vector<8x32xf32>
    %575 = arith.addf %574, %573 : vector<8x32xf32>
    %576 = arith.divf %574, %575 : vector<8x32xf32>
    %577 = arith.mulf %568, %491 : vector<8x32xf32>
    %578 = arith.mulf %562, %570 : vector<8x32xf32>
    %579 = arith.addf %577, %578 : vector<8x32xf32>
    %580 = math.tanh %579 : vector<8x32xf32>
    %581 = arith.mulf %576, %580 : vector<8x32xf32>
    %582 = tpu.concatenate %581, %522 in 1 : vector<8x32xf32>, vector<8x32xf32> -> vector<8x64xf32>
    %c0_161 = arith.constant 0 : index
    %c0_162 = arith.constant 0 : index
    %583 = vector.load %arg6[%c0_161, %c0_162] : memref<64x128xf32, #tpu.memory_space<vmem>>, vector<64x128xf32>
    %cst_163 = arith.constant dense<0.000000e+00> : vector<8x128xf32>
    %584 = tpu.matmul %582, %583, %cst_163 {dimension_numbers = #tpu.dot_dimension_numbers<[1], [0], [0], [1], [0, 0, 1, 1], [], []>} : vector<8x64xf32>, vector<64x128xf32>, vector<8x128xf32> -> vector<8x128xf32>
    %585 = arith.addf %584, %9 : vector<8x128xf32>
    %586 = vector.extract_strided_slice %585 {offsets = [0, 0], sizes = [8, 32], strides = [1, 1]} : vector<8x128xf32> to vector<8x32xf32>
    %587 = arith.negf %586 : vector<8x32xf32>
    %588 = math.exp %587 : vector<8x32xf32>
    %cst_164 = arith.constant 1.000000e+00 : f32
    %589 = vector.broadcast %cst_164 : f32 to vector<8x32xf32>
    %590 = arith.addf %589, %588 : vector<8x32xf32>
    %591 = arith.divf %589, %590 : vector<8x32xf32>
    %592 = vector.extract_strided_slice %585 {offsets = [0, 32], sizes = [8, 32], strides = [1, 1]} : vector<8x128xf32> to vector<8x32xf32>
    %593 = arith.negf %592 : vector<8x32xf32>
    %594 = math.exp %593 : vector<8x32xf32>
    %cst_165 = arith.constant 1.000000e+00 : f32
    %595 = vector.broadcast %cst_165 : f32 to vector<8x32xf32>
    %596 = arith.addf %595, %594 : vector<8x32xf32>
    %597 = arith.divf %595, %596 : vector<8x32xf32>
    %598 = vector.extract_strided_slice %585 {offsets = [0, 64], sizes = [8, 32], strides = [1, 1]} : vector<8x128xf32> to vector<8x32xf32>
    %599 = math.tanh %598 : vector<8x32xf32>
    %600 = vector.extract_strided_slice %585 {offsets = [0, 96], sizes = [8, 32], strides = [1, 1]} : vector<8x128xf32> to vector<8x32xf32>
    %601 = arith.negf %600 : vector<8x32xf32>
    %602 = math.exp %601 : vector<8x32xf32>
    %cst_166 = arith.constant 1.000000e+00 : f32
    %603 = vector.broadcast %cst_166 : f32 to vector<8x32xf32>
    %604 = arith.addf %603, %602 : vector<8x32xf32>
    %605 = arith.divf %603, %604 : vector<8x32xf32>
    %606 = arith.mulf %597, %520 : vector<8x32xf32>
    %607 = arith.mulf %591, %599 : vector<8x32xf32>
    %608 = arith.addf %606, %607 : vector<8x32xf32>
    %609 = math.tanh %608 : vector<8x32xf32>
    %610 = arith.mulf %605, %609 : vector<8x32xf32>
    %611 = tpu.concatenate %610, %551 in 1 : vector<8x32xf32>, vector<8x32xf32> -> vector<8x64xf32>
    %c0_167 = arith.constant 0 : index
    %c0_168 = arith.constant 0 : index
    %612 = vector.load %arg8[%c0_167, %c0_168] : memref<64x128xf32, #tpu.memory_space<vmem>>, vector<64x128xf32>
    %cst_169 = arith.constant dense<0.000000e+00> : vector<8x128xf32>
    %613 = tpu.matmul %611, %612, %cst_169 {dimension_numbers = #tpu.dot_dimension_numbers<[1], [0], [0], [1], [0, 0, 1, 1], [], []>} : vector<8x64xf32>, vector<64x128xf32>, vector<8x128xf32> -> vector<8x128xf32>
    %614 = arith.addf %613, %12 : vector<8x128xf32>
    %615 = vector.extract_strided_slice %614 {offsets = [0, 0], sizes = [8, 32], strides = [1, 1]} : vector<8x128xf32> to vector<8x32xf32>
    %616 = arith.negf %615 : vector<8x32xf32>
    %617 = math.exp %616 : vector<8x32xf32>
    %cst_170 = arith.constant 1.000000e+00 : f32
    %618 = vector.broadcast %cst_170 : f32 to vector<8x32xf32>
    %619 = arith.addf %618, %617 : vector<8x32xf32>
    %620 = arith.divf %618, %619 : vector<8x32xf32>
    %621 = vector.extract_strided_slice %614 {offsets = [0, 32], sizes = [8, 32], strides = [1, 1]} : vector<8x128xf32> to vector<8x32xf32>
    %622 = arith.negf %621 : vector<8x32xf32>
    %623 = math.exp %622 : vector<8x32xf32>
    %cst_171 = arith.constant 1.000000e+00 : f32
    %624 = vector.broadcast %cst_171 : f32 to vector<8x32xf32>
    %625 = arith.addf %624, %623 : vector<8x32xf32>
    %626 = arith.divf %624, %625 : vector<8x32xf32>
    %627 = vector.extract_strided_slice %614 {offsets = [0, 64], sizes = [8, 32], strides = [1, 1]} : vector<8x128xf32> to vector<8x32xf32>
    %628 = math.tanh %627 : vector<8x32xf32>
    %629 = vector.extract_strided_slice %614 {offsets = [0, 96], sizes = [8, 32], strides = [1, 1]} : vector<8x128xf32> to vector<8x32xf32>
    %630 = arith.negf %629 : vector<8x32xf32>
    %631 = math.exp %630 : vector<8x32xf32>
    %cst_172 = arith.constant 1.000000e+00 : f32
    %632 = vector.broadcast %cst_172 : f32 to vector<8x32xf32>
    %633 = arith.addf %632, %631 : vector<8x32xf32>
    %634 = arith.divf %632, %633 : vector<8x32xf32>
    %635 = arith.mulf %626, %549 : vector<8x32xf32>
    %636 = arith.mulf %620, %628 : vector<8x32xf32>
    %637 = arith.addf %635, %636 : vector<8x32xf32>
    %638 = math.tanh %637 : vector<8x32xf32>
    %639 = arith.mulf %634, %638 : vector<8x32xf32>
    %c48_173 = arith.constant 48 : index
    %c0_174 = arith.constant 0 : index
    %640 = vector.load %arg16[%c48_173, %c0_174] : memref<64x32xf32, #tpu.memory_space<vmem>>, vector<8x32xf32>
    tpu.vector_store %arg16[%c48_173, %c0_174], %639 {strides = array<i32>} : memref<64x32xf32, #tpu.memory_space<vmem>>, vector<8x32xf32>,
    %c56 = arith.constant 56 : index
    %c0_175 = arith.constant 0 : index
    %641 = vector.load %arg15[%c56, %c0_175] : memref<64x128xf32, #tpu.memory_space<vmem>>, vector<8x128xf32>
    %c0_176 = arith.constant 0 : index
    %c0_177 = arith.constant 0 : index
    %642 = vector.load %arg4[%c0_176, %c0_177] : memref<32x128xf32, #tpu.memory_space<vmem>>, vector<32x128xf32>
    %cst_178 = arith.constant dense<0.000000e+00> : vector<8x128xf32>
    %643 = tpu.matmul %581, %642, %cst_178 {dimension_numbers = #tpu.dot_dimension_numbers<[1], [0], [0], [1], [0, 0, 1, 1], [], []>} : vector<8x32xf32>, vector<32x128xf32>, vector<8x128xf32> -> vector<8x128xf32>
    %644 = arith.addf %641, %643 : vector<8x128xf32>
    %645 = vector.extract_strided_slice %644 {offsets = [0, 0], sizes = [8, 32], strides = [1, 1]} : vector<8x128xf32> to vector<8x32xf32>
    %646 = arith.negf %645 : vector<8x32xf32>
    %647 = math.exp %646 : vector<8x32xf32>
    %cst_179 = arith.constant 1.000000e+00 : f32
    %648 = vector.broadcast %cst_179 : f32 to vector<8x32xf32>
    %649 = arith.addf %648, %647 : vector<8x32xf32>
    %650 = arith.divf %648, %649 : vector<8x32xf32>
    %651 = vector.extract_strided_slice %644 {offsets = [0, 32], sizes = [8, 32], strides = [1, 1]} : vector<8x128xf32> to vector<8x32xf32>
    %652 = arith.negf %651 : vector<8x32xf32>
    %653 = math.exp %652 : vector<8x32xf32>
    %cst_180 = arith.constant 1.000000e+00 : f32
    %654 = vector.broadcast %cst_180 : f32 to vector<8x32xf32>
    %655 = arith.addf %654, %653 : vector<8x32xf32>
    %656 = arith.divf %654, %655 : vector<8x32xf32>
    %657 = vector.extract_strided_slice %644 {offsets = [0, 64], sizes = [8, 32], strides = [1, 1]} : vector<8x128xf32> to vector<8x32xf32>
    %658 = math.tanh %657 : vector<8x32xf32>
    %659 = vector.extract_strided_slice %644 {offsets = [0, 96], sizes = [8, 32], strides = [1, 1]} : vector<8x128xf32> to vector<8x32xf32>
    %660 = arith.negf %659 : vector<8x32xf32>
    %661 = math.exp %660 : vector<8x32xf32>
    %cst_181 = arith.constant 1.000000e+00 : f32
    %662 = vector.broadcast %cst_181 : f32 to vector<8x32xf32>
    %663 = arith.addf %662, %661 : vector<8x32xf32>
    %664 = arith.divf %662, %663 : vector<8x32xf32>
    %665 = arith.mulf %656, %579 : vector<8x32xf32>
    %666 = arith.mulf %650, %658 : vector<8x32xf32>
    %667 = arith.addf %665, %666 : vector<8x32xf32>
    %668 = math.tanh %667 : vector<8x32xf32>
    %669 = arith.mulf %664, %668 : vector<8x32xf32>
    %670 = tpu.concatenate %669, %610 in 1 : vector<8x32xf32>, vector<8x32xf32> -> vector<8x64xf32>
    %c0_182 = arith.constant 0 : index
    %c0_183 = arith.constant 0 : index
    %671 = vector.load %arg6[%c0_182, %c0_183] : memref<64x128xf32, #tpu.memory_space<vmem>>, vector<64x128xf32>
    %cst_184 = arith.constant dense<0.000000e+00> : vector<8x128xf32>
    %672 = tpu.matmul %670, %671, %cst_184 {dimension_numbers = #tpu.dot_dimension_numbers<[1], [0], [0], [1], [0, 0, 1, 1], [], []>} : vector<8x64xf32>, vector<64x128xf32>, vector<8x128xf32> -> vector<8x128xf32>
    %673 = arith.addf %672, %9 : vector<8x128xf32>
    %674 = vector.extract_strided_slice %673 {offsets = [0, 0], sizes = [8, 32], strides = [1, 1]} : vector<8x128xf32> to vector<8x32xf32>
    %675 = arith.negf %674 : vector<8x32xf32>
    %676 = math.exp %675 : vector<8x32xf32>
    %cst_185 = arith.constant 1.000000e+00 : f32
    %677 = vector.broadcast %cst_185 : f32 to vector<8x32xf32>
    %678 = arith.addf %677, %676 : vector<8x32xf32>
    %679 = arith.divf %677, %678 : vector<8x32xf32>
    %680 = vector.extract_strided_slice %673 {offsets = [0, 32], sizes = [8, 32], strides = [1, 1]} : vector<8x128xf32> to vector<8x32xf32>
    %681 = arith.negf %680 : vector<8x32xf32>
    %682 = math.exp %681 : vector<8x32xf32>
    %cst_186 = arith.constant 1.000000e+00 : f32
    %683 = vector.broadcast %cst_186 : f32 to vector<8x32xf32>
    %684 = arith.addf %683, %682 : vector<8x32xf32>
    %685 = arith.divf %683, %684 : vector<8x32xf32>
    %686 = vector.extract_strided_slice %673 {offsets = [0, 64], sizes = [8, 32], strides = [1, 1]} : vector<8x128xf32> to vector<8x32xf32>
    %687 = math.tanh %686 : vector<8x32xf32>
    %688 = vector.extract_strided_slice %673 {offsets = [0, 96], sizes = [8, 32], strides = [1, 1]} : vector<8x128xf32> to vector<8x32xf32>
    %689 = arith.negf %688 : vector<8x32xf32>
    %690 = math.exp %689 : vector<8x32xf32>
    %cst_187 = arith.constant 1.000000e+00 : f32
    %691 = vector.broadcast %cst_187 : f32 to vector<8x32xf32>
    %692 = arith.addf %691, %690 : vector<8x32xf32>
    %693 = arith.divf %691, %692 : vector<8x32xf32>
    %694 = arith.mulf %685, %608 : vector<8x32xf32>
    %695 = arith.mulf %679, %687 : vector<8x32xf32>
    %696 = arith.addf %694, %695 : vector<8x32xf32>
    %697 = math.tanh %696 : vector<8x32xf32>
    %698 = arith.mulf %693, %697 : vector<8x32xf32>
    %699 = tpu.concatenate %698, %639 in 1 : vector<8x32xf32>, vector<8x32xf32> -> vector<8x64xf32>
    %c0_188 = arith.constant 0 : index
    %c0_189 = arith.constant 0 : index
    %700 = vector.load %arg8[%c0_188, %c0_189] : memref<64x128xf32, #tpu.memory_space<vmem>>, vector<64x128xf32>
    %cst_190 = arith.constant dense<0.000000e+00> : vector<8x128xf32>
    %701 = tpu.matmul %699, %700, %cst_190 {dimension_numbers = #tpu.dot_dimension_numbers<[1], [0], [0], [1], [0, 0, 1, 1], [], []>} : vector<8x64xf32>, vector<64x128xf32>, vector<8x128xf32> -> vector<8x128xf32>
    %702 = arith.addf %701, %12 : vector<8x128xf32>
    %703 = vector.extract_strided_slice %702 {offsets = [0, 0], sizes = [8, 32], strides = [1, 1]} : vector<8x128xf32> to vector<8x32xf32>
    %704 = arith.negf %703 : vector<8x32xf32>
    %705 = math.exp %704 : vector<8x32xf32>
    %cst_191 = arith.constant 1.000000e+00 : f32
    %706 = vector.broadcast %cst_191 : f32 to vector<8x32xf32>
    %707 = arith.addf %706, %705 : vector<8x32xf32>
    %708 = arith.divf %706, %707 : vector<8x32xf32>
    %709 = vector.extract_strided_slice %702 {offsets = [0, 32], sizes = [8, 32], strides = [1, 1]} : vector<8x128xf32> to vector<8x32xf32>
    %710 = arith.negf %709 : vector<8x32xf32>
    %711 = math.exp %710 : vector<8x32xf32>
    %cst_192 = arith.constant 1.000000e+00 : f32
    %712 = vector.broadcast %cst_192 : f32 to vector<8x32xf32>
    %713 = arith.addf %712, %711 : vector<8x32xf32>
    %714 = arith.divf %712, %713 : vector<8x32xf32>
    %715 = vector.extract_strided_slice %702 {offsets = [0, 64], sizes = [8, 32], strides = [1, 1]} : vector<8x128xf32> to vector<8x32xf32>
    %716 = math.tanh %715 : vector<8x32xf32>
    %717 = vector.extract_strided_slice %702 {offsets = [0, 96], sizes = [8, 32], strides = [1, 1]} : vector<8x128xf32> to vector<8x32xf32>
    %718 = arith.negf %717 : vector<8x32xf32>
    %719 = math.exp %718 : vector<8x32xf32>
    %cst_193 = arith.constant 1.000000e+00 : f32
    %720 = vector.broadcast %cst_193 : f32 to vector<8x32xf32>
    %721 = arith.addf %720, %719 : vector<8x32xf32>
    %722 = arith.divf %720, %721 : vector<8x32xf32>
    %723 = arith.mulf %714, %637 : vector<8x32xf32>
    %724 = arith.mulf %708, %716 : vector<8x32xf32>
    %725 = arith.addf %723, %724 : vector<8x32xf32>
    %726 = math.tanh %725 : vector<8x32xf32>
    %727 = arith.mulf %722, %726 : vector<8x32xf32>
    %c56_194 = arith.constant 56 : index
    %c0_195 = arith.constant 0 : index
    %728 = vector.load %arg16[%c56_194, %c0_195] : memref<64x32xf32, #tpu.memory_space<vmem>>, vector<8x32xf32>
    tpu.vector_store %arg16[%c56_194, %c0_195], %727 {strides = array<i32>} : memref<64x32xf32, #tpu.memory_space<vmem>>, vector<8x32xf32>,
    %c0_196 = arith.constant 0 : index
    %c0_197 = arith.constant 0 : index
    %c0_198 = arith.constant 0 : index
    %729 = vector.load %arg13[%c0_196, %c0_197, %c0_198] : memref<3x8x32xf32, #tpu.memory_space<vmem>>, vector<1x8x32xf32>
    %730 = vector.shape_cast %729 : vector<1x8x32xf32> to vector<8x32xf32>
    %731 = vector.shape_cast %669 : vector<8x32xf32> to vector<1x8x32xf32>
    tpu.vector_store %arg13[%c0_196, %c0_197, %c0_198], %731 {strides = array<i32>} : memref<3x8x32xf32, #tpu.memory_space<vmem>>, vector<1x8x32xf32>,
    %c1_199 = arith.constant 1 : index
    %c0_200 = arith.constant 0 : index
    %c0_201 = arith.constant 0 : index
    %732 = vector.load %arg13[%c1_199, %c0_200, %c0_201] : memref<3x8x32xf32, #tpu.memory_space<vmem>>, vector<1x8x32xf32>
    %733 = vector.shape_cast %732 : vector<1x8x32xf32> to vector<8x32xf32>
    %734 = vector.shape_cast %698 : vector<8x32xf32> to vector<1x8x32xf32>
    tpu.vector_store %arg13[%c1_199, %c0_200, %c0_201], %734 {strides = array<i32>} : memref<3x8x32xf32, #tpu.memory_space<vmem>>, vector<1x8x32xf32>,
    %c2_202 = arith.constant 2 : index
    %c0_203 = arith.constant 0 : index
    %c0_204 = arith.constant 0 : index
    %735 = vector.load %arg13[%c2_202, %c0_203, %c0_204] : memref<3x8x32xf32, #tpu.memory_space<vmem>>, vector<1x8x32xf32>
    %736 = vector.shape_cast %735 : vector<1x8x32xf32> to vector<8x32xf32>
    %737 = vector.shape_cast %727 : vector<8x32xf32> to vector<1x8x32xf32>
    tpu.vector_store %arg13[%c2_202, %c0_203, %c0_204], %737 {strides = array<i32>} : memref<3x8x32xf32, #tpu.memory_space<vmem>>, vector<1x8x32xf32>,
    %c0_205 = arith.constant 0 : index
    %c0_206 = arith.constant 0 : index
    %c0_207 = arith.constant 0 : index
    %738 = vector.load %arg14[%c0_205, %c0_206, %c0_207] : memref<3x8x32xf32, #tpu.memory_space<vmem>>, vector<1x8x32xf32>
    %739 = vector.shape_cast %738 : vector<1x8x32xf32> to vector<8x32xf32>
    %740 = vector.shape_cast %667 : vector<8x32xf32> to vector<1x8x32xf32>
    tpu.vector_store %arg14[%c0_205, %c0_206, %c0_207], %740 {strides = array<i32>} : memref<3x8x32xf32, #tpu.memory_space<vmem>>, vector<1x8x32xf32>,
    %c1_208 = arith.constant 1 : index
    %c0_209 = arith.constant 0 : index
    %c0_210 = arith.constant 0 : index
    %741 = vector.load %arg14[%c1_208, %c0_209, %c0_210] : memref<3x8x32xf32, #tpu.memory_space<vmem>>, vector<1x8x32xf32>
    %742 = vector.shape_cast %741 : vector<1x8x32xf32> to vector<8x32xf32>
    %743 = vector.shape_cast %696 : vector<8x32xf32> to vector<1x8x32xf32>
    tpu.vector_store %arg14[%c1_208, %c0_209, %c0_210], %743 {strides = array<i32>} : memref<3x8x32xf32, #tpu.memory_space<vmem>>, vector<1x8x32xf32>,
    %c2_211 = arith.constant 2 : index
    %c0_212 = arith.constant 0 : index
    %c0_213 = arith.constant 0 : index
    %744 = vector.load %arg14[%c2_211, %c0_212, %c0_213] : memref<3x8x32xf32, #tpu.memory_space<vmem>>, vector<1x8x32xf32>
    %745 = vector.shape_cast %744 : vector<1x8x32xf32> to vector<8x32xf32>
    %746 = vector.shape_cast %725 : vector<8x32xf32> to vector<1x8x32xf32>
    tpu.vector_store %arg14[%c2_211, %c0_212, %c0_213], %746 {strides = array<i32>} : memref<3x8x32xf32, #tpu.memory_space<vmem>>, vector<1x8x32xf32>,
    %c0_214 = arith.constant 0 : index
    %c0_215 = arith.constant 0 : index
    %747 = vector.load %arg16[%c0_214, %c0_215] : memref<64x32xf32, #tpu.memory_space<vmem>>, vector<64x32xf32>
    %c0_216 = arith.constant 0 : index
    %c0_217 = arith.constant 0 : index
    %748 = vector.load %arg10[%c0_216, %c0_217] : memref<32x128xf32, #tpu.memory_space<vmem>>, vector<32x128xf32>
    %cst_218 = arith.constant dense<0.000000e+00> : vector<64x128xf32>
    %749 = tpu.matmul %747, %748, %cst_218 {dimension_numbers = #tpu.dot_dimension_numbers<[1], [0], [0], [1], [0, 0, 1, 1], [], []>} : vector<64x32xf32>, vector<32x128xf32>, vector<64x128xf32> -> vector<64x128xf32>
    %c0_219 = arith.constant 0 : index
    %c0_220 = arith.constant 0 : index
    %750 = vector.load %arg11[%c0_219, %c0_220] : memref<1x128xf32, #tpu.memory_space<vmem>>, vector<1x128xf32>
    %751 = vector.broadcast %750 : vector<1x128xf32> to vector<64x128xf32>
    %752 = arith.addf %749, %751 : vector<64x128xf32>
    %cst_221 = arith.constant 1.000000e+00 : f32
    %753 = vector.broadcast %cst_221 : f32 to vector<64x128xf32>
    %754 = arith.mulf %752, %753 : vector<64x128xf32>
    %cst_222 = arith.constant dense<0xFF800000> : vector<64xf32>
    %755 = vector.multi_reduction <maximumf>, %754, %cst_222 [1] : vector<64x128xf32> to vector<64xf32>
    %756 = vector.shape_cast %755 : vector<64xf32> to vector<64x1xf32>
    %757 = vector.broadcast %756 : vector<64x1xf32> to vector<64x128xf32>
    %758 = arith.subf %754, %757 : vector<64x128xf32>
    %759 = math.exp %758 : vector<64x128xf32>
    %cst_223 = arith.constant dense<0.000000e+00> : vector<64xf32>
    %760 = vector.multi_reduction <add>, %759, %cst_223 [1] : vector<64x128xf32> to vector<64xf32>
    %761 = vector.shape_cast %760 : vector<64xf32> to vector<64x1xf32>
    %762 = math.log %761 : vector<64x1xf32>
    %763 = arith.addf %756, %762 : vector<64x1xf32>
    %764 = vector.broadcast %763 : vector<64x1xf32> to vector<64x128xf32>
    %765 = arith.subf %754, %764 : vector<64x128xf32>
    %c0_224 = arith.constant 0 : index
    %c0_225 = arith.constant 0 : index
    %766 = vector.load %arg12[%c0_224, %c0_225] : memref<64x128xf32, #tpu.memory_space<vmem>>, vector<64x128xf32>
    tpu.vector_store %arg12[%c0_224, %c0_225], %765 {strides = array<i32>} : memref<64x128xf32, #tpu.memory_space<vmem>>, vector<64x128xf32>,
    return
  }
}

</mosaic_0001>

<llo_original>
// kernel: tpu_custom_call.1
$region0: #{tpu_custom_call.1}
  #allocation0 [shape = 'u32[]', space=smem, size = 0x4, offset = 0x4, fixed_abs, tag = 'smem constant byte address 0x4 - core index']
  #allocation1 [shape = 'u32[72,128]{1,0:T(1,128)}', space=vmem, size = 0x9000, scoped, tag = 'internal scratch']
  #allocation2 [shape = 'f32[64,128]{1,0:T(8,128)}', space=vmem, size = 0x8000, scoped, tag = 'scratch operand']
  #allocation3 [shape = 'f32[64,32]{1,0:T(8,128)}', space=vmem, size = 0x8000, scoped, tag = 'scratch operand']
  %s0 = inlined_call_operand.vmem [shape: f32[64,16], index: 0, kind: input, shape index: {}]
  %s1 = inlined_call_operand.hbm [shape: f32[3,8,32], index: 1, kind: input, shape index: {}]
  %s2 = inlined_call_operand.hbm [shape: f32[3,8,32], index: 2, kind: input, shape index: {}]
  %s3 = inlined_call_operand.vmem [shape: f32[16,128], index: 3, kind: input, shape index: {}]
  %s4 = inlined_call_operand.hbm [shape: f32[32,128], index: 4, kind: input, shape index: {}]
  %s5 = inlined_call_operand.vmem [shape: f32[1,128], index: 5, kind: input, shape index: {}]
  %s6 = inlined_call_operand.vmem [shape: f32[64,128], index: 6, kind: input, shape index: {}]
  %s7 = inlined_call_operand.vmem [shape: f32[1,128], index: 7, kind: input, shape index: {}]
  %s8 = inlined_call_operand.hbm [shape: f32[64,128], index: 8, kind: input, shape index: {}]
  %s9 = inlined_call_operand.vmem [shape: f32[1,128], index: 9, kind: input, shape index: {}]
  %s10 = inlined_call_operand.hbm [shape: f32[32,128], index: 10, kind: input, shape index: {}]
  %s11 = inlined_call_operand.vmem [shape: f32[1,128], index: 11, kind: input, shape index: {}]
  %s12 = inlined_call_operand.hbm [shape: f32[64,128], index: 12, kind: output, shape index: {0}]
  %s13 = inlined_call_operand.hbm [shape: f32[3,8,32], index: 13, kind: output, shape index: {1}]
  %s14 = inlined_call_operand.hbm [shape: f32[3,8,32], index: 14, kind: output, shape index: {2}]
  %15 = xla_tuple %s12, %s13, %s14
  %s16 = sld [smem:[#allocation0]]
  $region94: #{tpu_custom_call.1} parent=0
    _
  %s18 = ssub.s32 1, %s16
  %s19 = scalar_select 0, %s18, %s16
  $region1: #{tpu_custom_call.1} parent=0
    #allocation4 [shape = 'u8[12288]{0}', space=vmem, size = 0x3000, scoped, tag = 'input window, operand 1, single buffered']
    #allocation5 [shape = 's32[1]{0}', space=sflag, size = 0x4, scoped, tag = 'scoped memory for tpu_custom_call.1']
    #allocation6 [shape = 's32[1]{0}', space=sflag, size = 0x4, scoped, tag = 'scoped memory for tpu_custom_call.1']
    #allocation7 [shape = 'u8[12288]{0}', space=vmem, size = 0x3000, scoped, tag = 'input window, operand 2, single buffered']
    #allocation8 [shape = 's32[1]{0}', space=sflag, size = 0x4, scoped, tag = 'scoped memory for tpu_custom_call.1']
    #allocation9 [shape = 'u8[16384]{0}', space=vmem, size = 0x4000, scoped, tag = 'input window, operand 4, single buffered']
    #allocation10 [shape = 'u8[32768]{0}', space=vmem, size = 0x8000, scoped, tag = 'input window, operand 8, single buffered']
    #allocation11 [shape = 's32[1]{0}', space=sflag, size = 0x4, scoped, tag = 'scoped memory for tpu_custom_call.1']
    #allocation12 [shape = 'u8[16384]{0}', space=vmem, size = 0x4000, scoped, tag = 'input window, operand 10, single buffered']
    #allocation13 [shape = 'u8[32768]{0}', space=vmem, size = 0x8000, scoped, tag = 'output window, operand 0, single buffered']
    #allocation14 [shape = 'u8[12288]{0}', space=vmem, size = 0x3000, scoped, tag = 'output window, operand 1, single buffered']
    #allocation15 [shape = 's32[1]{0}', space=sflag, size = 0x4, scoped, tag = 'scoped memory for tpu_custom_call.1']
    #allocation16 [shape = 'u8[12288]{0}', space=vmem, size = 0x3000, scoped, tag = 'output window, operand 2, single buffered']
    %20 = vsyncpa [#allocation5], 0
    %21 = vsyncpa [#allocation8], 0
    %22 = vsyncpa [#allocation11], 0
    %23 = vsyncpa [#allocation6], 0
    %24 = vsyncpa [#allocation15], 0
    // Predicated region
    $region2: #{tpu_custom_call.1} parent=1 // pred_check
      _
    $region3: #{tpu_custom_call.1} parent=1 // pred_check_branch
      %26 = sbr.rel (0) target = $region5
    $region4: #{tpu_custom_call.1} parent=1 // pred_region
      _
    $region5: #{tpu_custom_call.1} parent=1 // pred_fallthru
      _
    // Predicated region
    $region6: #{tpu_custom_call.1} parent=1 // pred_check
      _
    $region7: #{tpu_custom_call.1} parent=1 // pred_check_branch
      %28 = sbr.rel (0) target = $region9
    $region8: #{tpu_custom_call.1} parent=1 // pred_region
      %30 = vsyncadd [#allocation5], 0
      %s31 = sshll.u32 %s1, 4
      %s32 = int_to_ptr.hbm [resolvable:$true] %s31
      %s33 = sshll.u32 [#allocation4], 4
      %s34 = int_to_ptr.vmem [resolvable:$true] %s33
      %39 = dma.hbm_to_vmem [thread:$0]  %s32, 384, %s34, [#allocation5], 128, 128, 8
    $region9: #{tpu_custom_call.1} parent=1 // pred_fallthru
      _
    // Predicated region
    $region10: #{tpu_custom_call.1} parent=1 // pred_check
      _
    $region11: #{tpu_custom_call.1} parent=1 // pred_check_branch
      %41 = sbr.rel (0) target = $region13
    $region12: #{tpu_custom_call.1} parent=1 // pred_region
      %43 = vsyncadd [#allocation8], 0
      %s44 = sshll.u32 %s2, 4
      %s45 = int_to_ptr.hbm [resolvable:$true] %s44
      %s46 = sshll.u32 [#allocation7], 4
      %s47 = int_to_ptr.vmem [resolvable:$true] %s46
      %52 = dma.hbm_to_vmem [thread:$0]  %s45, 384, %s47, [#allocation8], 128, 128, 8
    $region13: #{tpu_custom_call.1} parent=1 // pred_fallthru
      _
    // Predicated region
    $region14: #{tpu_custom_call.1} parent=1 // pred_check
      _
    $region15: #{tpu_custom_call.1} parent=1 // pred_check_branch
      %54 = sbr.rel (0) target = $region17
    $region16: #{tpu_custom_call.1} parent=1 // pred_region
      _
    $region17: #{tpu_custom_call.1} parent=1 // pred_fallthru
      _
    // Predicated region
    $region18: #{tpu_custom_call.1} parent=1 // pred_check
      _
    $region19: #{tpu_custom_call.1} parent=1 // pred_check_branch
      %56 = sbr.rel (0) target = $region21
    $region20: #{tpu_custom_call.1} parent=1 // pred_region
      %58 = vsyncadd [#allocation8], 0
      %s59 = sshll.u32 %s4, 4
      %s60 = int_to_ptr.hbm [resolvable:$true] %s59
      %s61 = sshll.u32 [#allocation9], 4
      %s62 = int_to_ptr.vmem [resolvable:$true] %s61
      %67 = dma.hbm_to_vmem [thread:$0]  %s60, 512, %s62, [#allocation8], 128, 128, 8
    $region21: #{tpu_custom_call.1} parent=1 // pred_fallthru
      _
    // Predicated region
    $region22: #{tpu_custom_call.1} parent=1 // pred_check
      _
    $region23: #{tpu_custom_call.1} parent=1 // pred_check_branch
      %69 = sbr.rel (0) target = $region25
    $region24: #{tpu_custom_call.1} parent=1 // pred_region
      _
    $region25: #{tpu_custom_call.1} parent=1 // pred_fallthru
      _
    // Predicated region
    $region26: #{tpu_custom_call.1} parent=1 // pred_check
      _
    $region27: #{tpu_custom_call.1} parent=1 // pred_check_branch
      %71 = sbr.rel (0) target = $region29
    $region28: #{tpu_custom_call.1} parent=1 // pred_region
      _
    $region29: #{tpu_custom_call.1} parent=1 // pred_fallthru
      _
    // Predicated region
    $region30: #{tpu_custom_call.1} parent=1 // pred_check
      _
    $region31: #{tpu_custom_call.1} parent=1 // pred_check_branch
      %73 = sbr.rel (0) target = $region33
    $region32: #{tpu_custom_call.1} parent=1 // pred_region
      _
    $region33: #{tpu_custom_call.1} parent=1 // pred_fallthru
      _
    // Predicated region
    $region34: #{tpu_custom_call.1} parent=1 // pred_check
      _
    $region35: #{tpu_custom_call.1} parent=1 // pred_check_branch
      %75 = sbr.rel (0) target = $region37
    $region36: #{tpu_custom_call.1} parent=1 // pred_region
      %77 = vsyncadd [#allocation11], 0
      %s78 = sshll.u32 %s8, 4
      %s79 = int_to_ptr.hbm [resolvable:$true] %s78
      %s80 = sshll.u32 [#allocation10], 4
      %s81 = int_to_ptr.vmem [resolvable:$true] %s80
      %86 = dma.hbm_to_vmem [thread:$0]  %s79, 1024, %s81, [#allocation11], 128, 128, 8
    $region37: #{tpu_custom_call.1} parent=1 // pred_fallthru
      _
    // Predicated region
    $region38: #{tpu_custom_call.1} parent=1 // pred_check
      _
    $region39: #{tpu_custom_call.1} parent=1 // pred_check_branch
      %88 = sbr.rel (0) target = $region41
    $region40: #{tpu_custom_call.1} parent=1 // pred_region
      _
    $region41: #{tpu_custom_call.1} parent=1 // pred_fallthru
      _
    // Predicated region
    $region42: #{tpu_custom_call.1} parent=1 // pred_check
      _
    $region43: #{tpu_custom_call.1} parent=1 // pred_check_branch
      %90 = sbr.rel (0) target = $region45
    $region44: #{tpu_custom_call.1} parent=1 // pred_region
      %92 = vsyncadd [#allocation11], 0
      %s93 = sshll.u32 %s10, 4
      %s94 = int_to_ptr.hbm [resolvable:$true] %s93
      %s95 = sshll.u32 [#allocation12], 4
      %s96 = int_to_ptr.vmem [resolvable:$true] %s95
      %101 = dma.hbm_to_vmem [thread:$0]  %s94, 512, %s96, [#allocation11], 128, 128, 8
    $region45: #{tpu_custom_call.1} parent=1 // pred_fallthru
      _
    // Predicated region
    $region46: #{tpu_custom_call.1} parent=1 // pred_check
      _
    $region47: #{tpu_custom_call.1} parent=1 // pred_check_branch
      %103 = sbr.rel (0) target = $region49
    $region48: #{tpu_custom_call.1} parent=1 // pred_region
      _
    $region49: #{tpu_custom_call.1} parent=1 // pred_fallthru
      _
    // Predicated region
    $region50: #{tpu_custom_call.1} parent=1 // pred_check
      _
    $region51: #{tpu_custom_call.1} parent=1 // pred_check_branch
      %105 = sbr.rel (0) target = $region53
    $region52: #{tpu_custom_call.1} parent=1 // pred_region
      %107 = dma.done [#allocation5], 384
    $region53: #{tpu_custom_call.1} parent=1 // pred_fallthru
      _
    // Predicated region
    $region54: #{tpu_custom_call.1} parent=1 // pred_check
      _
    $region55: #{tpu_custom_call.1} parent=1 // pred_check_branch
      %109 = sbr.rel (0) target = $region57
    $region56: #{tpu_custom_call.1} parent=1 // pred_region
      %111 = dma.done [#allocation8], 384
    $region57: #{tpu_custom_call.1} parent=1 // pred_fallthru
      _
    // Predicated region
    $region58: #{tpu_custom_call.1} parent=1 // pred_check
      _
    $region59: #{tpu_custom_call.1} parent=1 // pred_check_branch
      %113 = sbr.rel (0) target = $region61
    $region60: #{tpu_custom_call.1} parent=1 // pred_region
      %115 = dma.done [#allocation8], 512
    $region61: #{tpu_custom_call.1} parent=1 // pred_fallthru
      _
    // Predicated region
    $region62: #{tpu_custom_call.1} parent=1 // pred_check
      _
    $region63: #{tpu_custom_call.1} parent=1 // pred_check_branch
      %117 = sbr.rel (0) target = $region65
    $region64: #{tpu_custom_call.1} parent=1 // pred_region
      %119 = dma.done [#allocation11], 1024
    $region65: #{tpu_custom_call.1} parent=1 // pred_fallthru
      _
    // Predicated region
    $region66: #{tpu_custom_call.1} parent=1 // pred_check
      _
    $region67: #{tpu_custom_call.1} parent=1 // pred_check_branch
      %121 = sbr.rel (0) target = $region69
    $region68: #{tpu_custom_call.1} parent=1 // pred_region
      %123 = dma.done [#allocation11], 512
    $region69: #{tpu_custom_call.1} parent=1 // pred_fallthru
      _
    %v124 = vld [vmem:[%s0] sm:$0xff]
    %v125 = vld [vmem:[%s0 + $0x8] sm:$0xff]
    %v126 = vld [vmem:[%s0 + $0x10] sm:$0xff]
    %v127 = vld [vmem:[%s0 + $0x18] sm:$0xff]
    %v128 = vld [vmem:[%s0 + $0x20] sm:$0xff]
    %v129 = vld [vmem:[%s0 + $0x28] sm:$0xff]
    %v130 = vld [vmem:[%s0 + $0x30] sm:$0xff]
    %v131 = vld [vmem:[%s0 + $0x38] sm:$0xff]
    %v132 = vld [vmem:[%s3] sm:$0xff]
    %v133 = vld [vmem:[%s3 + $0x8] sm:$0xff]
    %v134 = vld [vmem:[%s5] sm:$0x1]
    %v136 = vperm.slane %v134, 0
    %vm138 = vcmask 130048
    %v140 = vsel %vm138, %v124, 0
    %v143 = vsel %vm138, %v125, 0
    %v146 = vsel %vm138, %v126, 0
    %v149 = vsel %vm138, %v127, 0
    %v152 = vsel %vm138, %v128, 0
    %v155 = vsel %vm138, %v129, 0
    %v158 = vsel %vm138, %v130, 0
    %v161 = vsel %vm138, %v131, 0
    %163 = vmatpush.msra.mxu0 0.0
    %164 = vmatpush.msra.mxu0 0.0
    %165 = vmatpush.msra.mxu0 0.0
    %166 = vmatpush.msra.mxu0 0.0
    %167 = vmatpush.msra.mxu0 0.0
    %168 = vmatpush.msra.mxu0 0.0
    %169 = vmatpush.msra.mxu0 0.0
    %170 = vmatpush.msra.mxu0 0.0
    %171 = vmatpush.msra.mxu0 0.0
    %172 = vmatpush.msra.mxu0 0.0
    %173 = vmatpush.msra.mxu0 0.0
    %174 = vmatpush.msra.mxu0 0.0
    %175 = vmatpush.msra.mxu0 0.0
    %176 = vmatpush.msra.mxu0 0.0
    %177 = vmatpush.msra.mxu0 %v133
    %178 = vmatpush.msra.mxu0 %v132
    %179 = vmatmul.f32.gmra.mxu0 %v140
    %v180 = vpop.f32.mrf.mxu0
    %v181 = vadd.f32 %v136, %v180
    %182 = vmatmul.f32.gmra.mxu0 %v143
    %v183 = vpop.f32.mrf.mxu0
    %v184 = vadd.f32 %v136, %v183
    %185 = vmatmul.f32.gmra.mxu0 %v146
    %v186 = vpop.f32.mrf.mxu0
    %v187 = vadd.f32 %v136, %v186
    %188 = vmatmul.f32.gmra.mxu0 %v149
    %v189 = vpop.f32.mrf.mxu0
    %v190 = vadd.f32 %v136, %v189
    %191 = vmatmul.f32.gmra.mxu0 %v152
    %v192 = vpop.f32.mrf.mxu0
    %v193 = vadd.f32 %v136, %v192
    %194 = vmatmul.f32.gmra.mxu0 %v155
    %v195 = vpop.f32.mrf.mxu0
    %v196 = vadd.f32 %v136, %v195
    %197 = vmatmul.f32.gmra.mxu0 %v158
    %v198 = vpop.f32.mrf.mxu0
    %v199 = vadd.f32 %v136, %v198
    %200 = vmatmul.f32.gmra.mxu0 %v161
    %v201 = vpop.f32.mrf.mxu0
    %v202 = vadd.f32 %v136, %v201
    %203 = vdwg.mxu0
    %204 = vst [vmem:[#allocation2] sm:$0xff] %v181
    %205 = vst [vmem:[#allocation2 + $0x8] sm:$0xff] %v184
    %206 = vst [vmem:[#allocation2 + $0x10] sm:$0xff] %v187
    %207 = vst [vmem:[#allocation2 + $0x18] sm:$0xff] %v190
    %208 = vst [vmem:[#allocation2 + $0x20] sm:$0xff] %v193
    %209 = vst [vmem:[#allocation2 + $0x28] sm:$0xff] %v196
    %210 = vst [vmem:[#allocation2 + $0x30] sm:$0xff] %v199
    %211 = vst [vmem:[#allocation2 + $0x38] sm:$0xff] %v202
    %v212 = vld [vmem:[%s7] sm:$0x1]
    %v214 = vperm.slane %v212, 0
    %v216 = vld [vmem:[%s9] sm:$0x1]
    %v218 = vperm.slane %v216, 0
    %v220 = vld [vmem:[#allocation4] sm:$0xff]
    %s221 = scalar_lea.vmem [#allocation4], 8
    %v222 = vld [vmem:[%s221] sm:$0xff]
    %s223 = scalar_lea.vmem [#allocation4], 16
    %v224 = vld [vmem:[%s223] sm:$0xff]
    %v225 = vld [vmem:[#allocation7] sm:$0xff]
    %s226 = scalar_lea.vmem [#allocation7], 8
    %v227 = vld [vmem:[%s226] sm:$0xff]
    %s228 = scalar_lea.vmem [#allocation7], 16
    %v229 = vld [vmem:[%s228] sm:$0xff]
    %v230 = vld [vmem:[#allocation2] sm:$0xff]
    %v231 = vld [vmem:[#allocation9] sm:$0xff]
    %v232 = vld [vmem:[#allocation9 + $0x8] sm:$0xff]
    %v233 = vld [vmem:[#allocation9 + $0x10] sm:$0xff]
    %v234 = vld [vmem:[#allocation9 + $0x18] sm:$0xff]
    %vm235 = vcmask 261120
    %v237 = vsel %vm235, %v220, 0
    %239 = vmatpush.msra.mxu0 0.0
    %240 = vmatpush.msra.mxu0 0.0
    %241 = vmatpush.msra.mxu0 0.0
    %242 = vmatpush.msra.mxu0 0.0
    %243 = vmatpush.msra.mxu0 0.0
    %244 = vmatpush.msra.mxu0 0.0
    %245 = vmatpush.msra.mxu0 0.0
    %246 = vmatpush.msra.mxu0 0.0
    %247 = vmatpush.msra.mxu0 0.0
    %248 = vmatpush.msra.mxu0 0.0
    %249 = vmatpush.msra.mxu0 0.0
    %250 = vmatpush.msra.mxu0 0.0
    %251 = vmatpush.msra.mxu0 %v234
    %252 = vmatpush.msra.mxu0 %v233
    %253 = vmatpush.msra.mxu0 %v232
    %254 = vmatpush.msra.mxu0 %v231
    %255 = vmatmul.f32.gmra.mxu0 %v237
    %v256 = vpop.f32.mrf.mxu0
    %v257 = vadd.f32 0.0, %v256
    %258 = vdwg.mxu0
    %v259 = vadd.f32 %v230, %v257
    %v260 = vxor.u32 %v259, 2147483648
    %v261 = vmul.f32 %v260, 1.442695
    %v262 = vpow.pop %v261
    %v263 = vadd.f32 %v262, 1.0
    %v264 = vrcp.pop %v263
    %v265 = vmul.f32 %v263, %v264
    %v266 = vsub.f32 1.0, %v265
    %v267 = vmul.f32 %v264, %v266
    %v268 = vadd.f32 %v264, %v267
    %vm269 = vweird.f32 %v263
    %vm270 = vweird.f32 %v264
    %vm271 = vmor %vm269, %vm270
    %v272 = vsel %vm271, %v264, %v268
    %v273 = vand.u32 2147483647, %v263
    %vm274 = vcmp.eq.f32.partialorder %v273, 8.507059e+37
    %v275 = vand.u32 %v263, 2147483648
    %v276 = vor.u32 1.1754944e-38, %v275
    %v277 = vsel %vm274, %v276, %v272
    %v278 = vmul.f32 1.0, %v277
    %v279 = vtanh.pop %v259
    %281 = vrot.lane.b32.xlu0 %v225, 32
    %v282 = vpop.permute.xlu0 %281
    %v284 = vmul.f32 %v278, %v282
    %286 = vrot.lane.b32.xlu0 %v279, 64
    %v287 = vpop.permute.xlu0 %286
    %v289 = vmul.f32 %v278, %v287
    %291 = vrot.lane.b32.xlu0 %v289, 32
    %v292 = vpop.permute.xlu0 %291
    %v294 = vadd.f32 %v284, %v292
    %v295 = vtanh.pop %v294
    %297 = vrot.lane.b32.xlu0 %v295, 64
    %v298 = vpop.permute.xlu0 %297
    %v300 = vmul.f32 %v278, %v298
    %302 = vrot.lane.b32.xlu0 %v300, 32
    %v303 = vpop.permute.xlu0 %302
    %306 = vrot.lane.b32.xlu0 %v222, 32
    %v307 = vpop.permute.xlu0 %306
    %v309 = vsel %vm235, %v303, %v307
    %v310 = vld [vmem:[%s6] sm:$0xff]
    %v311 = vld [vmem:[%s6 + $0x8] sm:$0xff]
    %v312 = vld [vmem:[%s6 + $0x10] sm:$0xff]
    %v313 = vld [vmem:[%s6 + $0x18] sm:$0xff]
    %v314 = vld [vmem:[%s6 + $0x20] sm:$0xff]
    %v315 = vld [vmem:[%s6 + $0x28] sm:$0xff]
    %v316 = vld [vmem:[%s6 + $0x30] sm:$0xff]
    %v317 = vld [vmem:[%s6 + $0x38] sm:$0xff]
    %vm318 = vcmask 523264
    %v320 = vsel %vm318, %v309, 0
    %322 = vmatpush.msra.mxu0 0.0
    %323 = vmatpush.msra.mxu0 0.0
    %324 = vmatpush.msra.mxu0 0.0
    %325 = vmatpush.msra.mxu0 0.0
    %326 = vmatpush.msra.mxu0 0.0
    %327 = vmatpush.msra.mxu0 0.0
    %328 = vmatpush.msra.mxu0 0.0
    %329 = vmatpush.msra.mxu0 0.0
    %330 = vmatpush.msra.mxu0 %v317
    %331 = vmatpush.msra.mxu0 %v316
    %332 = vmatpush.msra.mxu0 %v315
    %333 = vmatpush.msra.mxu0 %v314
    %334 = vmatpush.msra.mxu0 %v313
    %335 = vmatpush.msra.mxu0 %v312
    %336 = vmatpush.msra.mxu0 %v311
    %337 = vmatpush.msra.mxu0 %v310
    %338 = vmatmul.f32.gmra.mxu0 %v320
    %v339 = vpop.f32.mrf.mxu0
    %v340 = vadd.f32 %v214, %v339
    %341 = vdwg.mxu0
    %v342 = vxor.u32 %v340, 2147483648
    %v343 = vmul.f32 %v342, 1.442695
    %v344 = vpow.pop %v343
    %v345 = vadd.f32 %v344, 1.0
    %v346 = vrcp.pop %v345
    %v347 = vmul.f32 %v345, %v346
    %v348 = vsub.f32 1.0, %v347
    %v349 = vmul.f32 %v346, %v348
    %v350 = vadd.f32 %v346, %v349
    %vm351 = vweird.f32 %v345
    %vm352 = vweird.f32 %v346
    %vm353 = vmor %vm351, %vm352
    %v354 = vsel %vm353, %v346, %v350
    %v355 = vand.u32 2147483647, %v345
    %vm356 = vcmp.eq.f32.partialorder %v355, 8.507059e+37
    %v357 = vand.u32 %v345, 2147483648
    %v358 = vor.u32 1.1754944e-38, %v357
    %v359 = vsel %vm356, %v358, %v354
    %v360 = vmul.f32 1.0, %v359
    %v361 = vtanh.pop %v340
    %363 = vrot.lane.b32.xlu0 %v227, 32
    %v364 = vpop.permute.xlu0 %363
    %v366 = vmul.f32 %v360, %v364
    %368 = vrot.lane.b32.xlu0 %v361, 64
    %v369 = vpop.permute.xlu0 %368
    %v371 = vmul.f32 %v360, %v369
    %373 = vrot.lane.b32.xlu0 %v371, 32
    %v374 = vpop.permute.xlu0 %373
    %v376 = vadd.f32 %v366, %v374
    %v377 = vtanh.pop %v376
    %379 = vrot.lane.b32.xlu0 %v377, 64
    %v380 = vpop.permute.xlu0 %379
    %v382 = vmul.f32 %v360, %v380
    %384 = vrot.lane.b32.xlu0 %v382, 32
    %v385 = vpop.permute.xlu0 %384
    %388 = vrot.lane.b32.xlu0 %v224, 32
    %v389 = vpop.permute.xlu0 %388
    %v391 = vsel %vm235, %v385, %v389
    %v392 = vld [vmem:[#allocation10] sm:$0xff]
    %v393 = vld [vmem:[#allocation10 + $0x8] sm:$0xff]
    %v394 = vld [vmem:[#allocation10 + $0x10] sm:$0xff]
    %v395 = vld [vmem:[#allocation10 + $0x18] sm:$0xff]
    %v396 = vld [vmem:[#allocation10 + $0x20] sm:$0xff]
    %v397 = vld [vmem:[#allocation10 + $0x28] sm:$0xff]
    %v398 = vld [vmem:[#allocation10 + $0x30] sm:$0xff]
    %v399 = vld [vmem:[#allocation10 + $0x38] sm:$0xff]
    %v401 = vsel %vm318, %v391, 0
    %403 = vmatpush.msra.mxu0 0.0
    %404 = vmatpush.msra.mxu0 0.0
    %405 = vmatpush.msra.mxu0 0.0
    %406 = vmatpush.msra.mxu0 0.0
    %407 = vmatpush.msra.mxu0 0.0
    %408 = vmatpush.msra.mxu0 0.0
    %409 = vmatpush.msra.mxu0 0.0
    %410 = vmatpush.msra.mxu0 0.0
    %411 = vmatpush.msra.mxu0 %v399
    %412 = vmatpush.msra.mxu0 %v398
    %413 = vmatpush.msra.mxu0 %v397
    %414 = vmatpush.msra.mxu0 %v396
    %415 = vmatpush.msra.mxu0 %v395
    %416 = vmatpush.msra.mxu0 %v394
    %417 = vmatpush.msra.mxu0 %v393
    %418 = vmatpush.msra.mxu0 %v392
    %419 = vmatmul.f32.gmra.mxu0 %v401
    %v420 = vpop.f32.mrf.mxu0
    %v421 = vadd.f32 %v218, %v420
    %422 = vdwg.mxu0
    %v423 = vxor.u32 %v421, 2147483648
    %v424 = vmul.f32 %v423, 1.442695
    %v425 = vpow.pop %v424
    %v426 = vadd.f32 %v425, 1.0
    %v427 = vrcp.pop %v426
    %v428 = vmul.f32 %v426, %v427
    %v429 = vsub.f32 1.0, %v428
    %v430 = vmul.f32 %v427, %v429
    %v431 = vadd.f32 %v427, %v430
    %vm432 = vweird.f32 %v426
    %vm433 = vweird.f32 %v427
    %vm434 = vmor %vm432, %vm433
    %v435 = vsel %vm434, %v427, %v431
    %v436 = vand.u32 2147483647, %v426
    %vm437 = vcmp.eq.f32.partialorder %v436, 8.507059e+37
    %v438 = vand.u32 %v426, 2147483648
    %v439 = vor.u32 1.1754944e-38, %v438
    %v440 = vsel %vm437, %v439, %v435
    %v441 = vmul.f32 1.0, %v440
    %v442 = vtanh.pop %v421
    %444 = vrot.lane.b32.xlu0 %v229, 32
    %v445 = vpop.permute.xlu0 %444
    %v447 = vmul.f32 %v441, %v445
    %449 = vrot.lane.b32.xlu0 %v442, 64
    %v450 = vpop.permute.xlu0 %449
    %v452 = vmul.f32 %v441, %v450
    %454 = vrot.lane.b32.xlu0 %v452, 32
    %v455 = vpop.permute.xlu0 %454
    %v457 = vadd.f32 %v447, %v455
    %v458 = vtanh.pop %v457
    %460 = vrot.lane.b32.xlu0 %v458, 64
    %v461 = vpop.permute.xlu0 %460
    %v463 = vmul.f32 %v441, %v461
    %465 = vrot.lane.b32.xlu0 %v463, 32
    %v466 = vpop.permute.xlu0 %465
    %468 = vst.msk [vmem:[#allocation3] sm:$0xff] %vm235, %v466
    %v469 = vld [vmem:[#allocation2 + $0x8] sm:$0xff]
    %v470 = vld [vmem:[#allocation9] sm:$0xff]
    %v471 = vld [vmem:[#allocation9 + $0x8] sm:$0xff]
    %v472 = vld [vmem:[#allocation9 + $0x10] sm:$0xff]
    %v473 = vld [vmem:[#allocation9 + $0x18] sm:$0xff]
    %v474 = vsel %vm235, %v303, 0
    %476 = vmatpush.msra.mxu0 0.0
    %477 = vmatpush.msra.mxu0 0.0
    %478 = vmatpush.msra.mxu0 0.0
    %479 = vmatpush.msra.mxu0 0.0
    %480 = vmatpush.msra.mxu0 0.0
    %481 = vmatpush.msra.mxu0 0.0
    %482 = vmatpush.msra.mxu0 0.0
    %483 = vmatpush.msra.mxu0 0.0
    %484 = vmatpush.msra.mxu0 0.0
    %485 = vmatpush.msra.mxu0 0.0
    %486 = vmatpush.msra.mxu0 0.0
    %487 = vmatpush.msra.mxu0 0.0
    %488 = vmatpush.msra.mxu0 %v473
    %489 = vmatpush.msra.mxu0 %v472
    %490 = vmatpush.msra.mxu0 %v471
    %491 = vmatpush.msra.mxu0 %v470
    %492 = vmatmul.f32.gmra.mxu0 %v474
    %v493 = vpop.f32.mrf.mxu0
    %v494 = vadd.f32 0.0, %v493
    %495 = vdwg.mxu0
    %v496 = vadd.f32 %v469, %v494
    %v497 = vxor.u32 %v496, 2147483648
    %v498 = vmul.f32 %v497, 1.442695
    %v499 = vpow.pop %v498
    %v500 = vadd.f32 %v499, 1.0
    %v501 = vrcp.pop %v500
    %v502 = vmul.f32 %v500, %v501
    %v503 = vsub.f32 1.0, %v502
    %v504 = vmul.f32 %v501, %v503
    %v505 = vadd.f32 %v501, %v504
    %vm506 = vweird.f32 %v500
    %vm507 = vweird.f32 %v501
    %vm508 = vmor %vm506, %vm507
    %v509 = vsel %vm508, %v501, %v505
    %v510 = vand.u32 2147483647, %v500
    %vm511 = vcmp.eq.f32.partialorder %v510, 8.507059e+37
    %v512 = vand.u32 %v500, 2147483648
    %v513 = vor.u32 1.1754944e-38, %v512
    %v514 = vsel %vm511, %v513, %v509
    %v515 = vmul.f32 1.0, %v514
    %v516 = vtanh.pop %v496
    %v517 = vmul.f32 %v515, %v294
    %519 = vrot.lane.b32.xlu0 %v516, 64
    %v520 = vpop.permute.xlu0 %519
    %v522 = vmul.f32 %v515, %v520
    %524 = vrot.lane.b32.xlu0 %v522, 32
    %v525 = vpop.permute.xlu0 %524
    %v527 = vadd.f32 %v517, %v525
    %v528 = vtanh.pop %v527
    %530 = vrot.lane.b32.xlu0 %v528, 64
    %v531 = vpop.permute.xlu0 %530
    %v533 = vmul.f32 %v515, %v531
    %535 = vrot.lane.b32.xlu0 %v533, 32
    %v536 = vpop.permute.xlu0 %535
    %538 = vrot.lane.b32.xlu0 %v382, 64
    %v539 = vpop.permute.xlu0 %538
    %v541 = vsel %vm235, %v536, %v539
    %v542 = vld [vmem:[%s6] sm:$0xff]
    %v543 = vld [vmem:[%s6 + $0x8] sm:$0xff]
    %v544 = vld [vmem:[%s6 + $0x10] sm:$0xff]
    %v545 = vld [vmem:[%s6 + $0x18] sm:$0xff]
    %v546 = vld [vmem:[%s6 + $0x20] sm:$0xff]
    %v547 = vld [vmem:[%s6 + $0x28] sm:$0xff]
    %v548 = vld [vmem:[%s6 + $0x30] sm:$0xff]
    %v549 = vld [vmem:[%s6 + $0x38] sm:$0xff]
    %v551 = vsel %vm318, %v541, 0
    %553 = vmatpush.msra.mxu0 0.0
    %554 = vmatpush.msra.mxu0 0.0
    %555 = vmatpush.msra.mxu0 0.0
    %556 = vmatpush.msra.mxu0 0.0
    %557 = vmatpush.msra.mxu0 0.0
    %558 = vmatpush.msra.mxu0 0.0
    %559 = vmatpush.msra.mxu0 0.0
    %560 = vmatpush.msra.mxu0 0.0
    %561 = vmatpush.msra.mxu0 %v549
    %562 = vmatpush.msra.mxu0 %v548
    %563 = vmatpush.msra.mxu0 %v547
    %564 = vmatpush.msra.mxu0 %v546
    %565 = vmatpush.msra.mxu0 %v545
    %566 = vmatpush.msra.mxu0 %v544
    %567 = vmatpush.msra.mxu0 %v543
    %568 = vmatpush.msra.mxu0 %v542
    %569 = vmatmul.f32.gmra.mxu0 %v551
    %v570 = vpop.f32.mrf.mxu0
    %v571 = vadd.f32 %v214, %v570
    %572 = vdwg.mxu0
    %v573 = vxor.u32 %v571, 2147483648
    %v574 = vmul.f32 %v573, 1.442695
    %v575 = vpow.pop %v574
    %v576 = vadd.f32 %v575, 1.0
    %v577 = vrcp.pop %v576
    %v578 = vmul.f32 %v576, %v577
    %v579 = vsub.f32 1.0, %v578
    %v580 = vmul.f32 %v577, %v579
    %v581 = vadd.f32 %v577, %v580
    %vm582 = vweird.f32 %v576
    %vm583 = vweird.f32 %v577
    %vm584 = vmor %vm582, %vm583
    %v585 = vsel %vm584, %v577, %v581
    %v586 = vand.u32 2147483647, %v576
    %vm587 = vcmp.eq.f32.partialorder %v586, 8.507059e+37
    %v588 = vand.u32 %v576, 2147483648
    %v589 = vor.u32 1.1754944e-38, %v588
    %v590 = vsel %vm587, %v589, %v585
    %v591 = vmul.f32 1.0, %v590
    %v592 = vtanh.pop %v571
    %v593 = vmul.f32 %v591, %v376
    %595 = vrot.lane.b32.xlu0 %v592, 64
    %v596 = vpop.permute.xlu0 %595
    %v598 = vmul.f32 %v591, %v596
    %600 = vrot.lane.b32.xlu0 %v598, 32
    %v601 = vpop.permute.xlu0 %600
    %v603 = vadd.f32 %v593, %v601
    %v604 = vtanh.pop %v603
    %606 = vrot.lane.b32.xlu0 %v604, 64
    %v607 = vpop.permute.xlu0 %606
    %v609 = vmul.f32 %v591, %v607
    %611 = vrot.lane.b32.xlu0 %v609, 32
    %v612 = vpop.permute.xlu0 %611
    %614 = vrot.lane.b32.xlu0 %v463, 64
    %v615 = vpop.permute.xlu0 %614
    %v617 = vsel %vm235, %v612, %v615
    %v618 = vld [vmem:[#allocation10] sm:$0xff]
    %v619 = vld [vmem:[#allocation10 + $0x8] sm:$0xff]
    %v620 = vld [vmem:[#allocation10 + $0x10] sm:$0xff]
    %v621 = vld [vmem:[#allocation10 + $0x18] sm:$0xff]
    %v622 = vld [vmem:[#allocation10 + $0x20] sm:$0xff]
    %v623 = vld [vmem:[#allocation10 + $0x28] sm:$0xff]
    %v624 = vld [vmem:[#allocation10 + $0x30] sm:$0xff]
    %v625 = vld [vmem:[#allocation10 + $0x38] sm:$0xff]
    %v627 = vsel %vm318, %v617, 0
    %629 = vmatpush.msra.mxu0 0.0
    %630 = vmatpush.msra.mxu0 0.0
    %631 = vmatpush.msra.mxu0 0.0
    %632 = vmatpush.msra.mxu0 0.0
    %633 = vmatpush.msra.mxu0 0.0
    %634 = vmatpush.msra.mxu0 0.0
    %635 = vmatpush.msra.mxu0 0.0
    %636 = vmatpush.msra.mxu0 0.0
    %637 = vmatpush.msra.mxu0 %v625
    %638 = vmatpush.msra.mxu0 %v624
    %639 = vmatpush.msra.mxu0 %v623
    %640 = vmatpush.msra.mxu0 %v622
    %641 = vmatpush.msra.mxu0 %v621
    %642 = vmatpush.msra.mxu0 %v620
    %643 = vmatpush.msra.mxu0 %v619
    %644 = vmatpush.msra.mxu0 %v618
    %645 = vmatmul.f32.gmra.mxu0 %v627
    %v646 = vpop.f32.mrf.mxu0
    %v647 = vadd.f32 %v218, %v646
    %648 = vdwg.mxu0
    %v649 = vxor.u32 %v647, 2147483648
    %v650 = vmul.f32 %v649, 1.442695
    %v651 = vpow.pop %v650
    %v652 = vadd.f32 %v651, 1.0
    %v653 = vrcp.pop %v652
    %v654 = vmul.f32 %v652, %v653
    %v655 = vsub.f32 1.0, %v654
    %v656 = vmul.f32 %v653, %v655
    %v657 = vadd.f32 %v653, %v656
    %vm658 = vweird.f32 %v652
    %vm659 = vweird.f32 %v653
    %vm660 = vmor %vm658, %vm659
    %v661 = vsel %vm660, %v653, %v657
    %v662 = vand.u32 2147483647, %v652
    %vm663 = vcmp.eq.f32.partialorder %v662, 8.507059e+37
    %v664 = vand.u32 %v652, 2147483648
    %v665 = vor.u32 1.1754944e-38, %v664
    %v666 = vsel %vm663, %v665, %v661
    %v667 = vmul.f32 1.0, %v666
    %v668 = vtanh.pop %v647
    %v669 = vmul.f32 %v667, %v457
    %671 = vrot.lane.b32.xlu0 %v668, 64
    %v672 = vpop.permute.xlu0 %671
    %v674 = vmul.f32 %v667, %v672
    %676 = vrot.lane.b32.xlu0 %v674, 32
    %v677 = vpop.permute.xlu0 %676
    %v679 = vadd.f32 %v669, %v677
    %v680 = vtanh.pop %v679
    %682 = vrot.lane.b32.xlu0 %v680, 64
    %v683 = vpop.permute.xlu0 %682
    %v685 = vmul.f32 %v667, %v683
    %687 = vrot.lane.b32.xlu0 %v685, 32
    %v688 = vpop.permute.xlu0 %687
    %690 = vst.msk [vmem:[#allocation3 + $0x8] sm:$0xff] %vm235, %v688
    %v691 = vld [vmem:[#allocation2 + $0x10] sm:$0xff]
    %v692 = vld [vmem:[#allocation9] sm:$0xff]
    %v693 = vld [vmem:[#allocation9 + $0x8] sm:$0xff]
    %v694 = vld [vmem:[#allocation9 + $0x10] sm:$0xff]
    %v695 = vld [vmem:[#allocation9 + $0x18] sm:$0xff]
    %v696 = vsel %vm235, %v536, 0
    %698 = vmatpush.msra.mxu0 0.0
    %699 = vmatpush.msra.mxu0 0.0
    %700 = vmatpush.msra.mxu0 0.0
    %701 = vmatpush.msra.mxu0 0.0
    %702 = vmatpush.msra.mxu0 0.0
    %703 = vmatpush.msra.mxu0 0.0
    %704 = vmatpush.msra.mxu0 0.0
    %705 = vmatpush.msra.mxu0 0.0
    %706 = vmatpush.msra.mxu0 0.0
    %707 = vmatpush.msra.mxu0 0.0
    %708 = vmatpush.msra.mxu0 0.0
    %709 = vmatpush.msra.mxu0 0.0
    %710 = vmatpush.msra.mxu0 %v695
    %711 = vmatpush.msra.mxu0 %v694
    %712 = vmatpush.msra.mxu0 %v693
    %713 = vmatpush.msra.mxu0 %v692
    %714 = vmatmul.f32.gmra.mxu0 %v696
    %v715 = vpop.f32.mrf.mxu0
    %v716 = vadd.f32 0.0, %v715
    %717 = vdwg.mxu0
    %v718 = vadd.f32 %v691, %v716
    %v719 = vxor.u32 %v718, 2147483648
    %v720 = vmul.f32 %v719, 1.442695
    %v721 = vpow.pop %v720
    %v722 = vadd.f32 %v721, 1.0
    %v723 = vrcp.pop %v722
    %v724 = vmul.f32 %v722, %v723
    %v725 = vsub.f32 1.0, %v724
    %v726 = vmul.f32 %v723, %v725
    %v727 = vadd.f32 %v723, %v726
    %vm728 = vweird.f32 %v722
    %vm729 = vweird.f32 %v723
    %vm730 = vmor %vm728, %vm729
    %v731 = vsel %vm730, %v723, %v727
    %v732 = vand.u32 2147483647, %v722
    %vm733 = vcmp.eq.f32.partialorder %v732, 8.507059e+37
    %v734 = vand.u32 %v722, 2147483648
    %v735 = vor.u32 1.1754944e-38, %v734
    %v736 = vsel %vm733, %v735, %v731
    %v737 = vmul.f32 1.0, %v736
    %v738 = vtanh.pop %v718
    %v739 = vmul.f32 %v737, %v527
    %741 = vrot.lane.b32.xlu0 %v738, 64
    %v742 = vpop.permute.xlu0 %741
    %v744 = vmul.f32 %v737, %v742
    %746 = vrot.lane.b32.xlu0 %v744, 32
    %v747 = vpop.permute.xlu0 %746
    %v749 = vadd.f32 %v739, %v747
    %v750 = vtanh.pop %v749
    %752 = vrot.lane.b32.xlu0 %v750, 64
    %v753 = vpop.permute.xlu0 %752
    %v755 = vmul.f32 %v737, %v753
    %757 = vrot.lane.b32.xlu0 %v755, 32
    %v758 = vpop.permute.xlu0 %757
    %760 = vrot.lane.b32.xlu0 %v609, 64
    %v761 = vpop.permute.xlu0 %760
    %v763 = vsel %vm235, %v758, %v761
    %v764 = vld [vmem:[%s6] sm:$0xff]
    %v765 = vld [vmem:[%s6 + $0x8] sm:$0xff]
    %v766 = vld [vmem:[%s6 + $0x10] sm:$0xff]
    %v767 = vld [vmem:[%s6 + $0x18] sm:$0xff]
    %v768 = vld [vmem:[%s6 + $0x20] sm:$0xff]
    %v769 = vld [vmem:[%s6 + $0x28] sm:$0xff]
    %v770 = vld [vmem:[%s6 + $0x30] sm:$0xff]
    %v771 = vld [vmem:[%s6 + $0x38] sm:$0xff]
    %v773 = vsel %vm318, %v763, 0
    %775 = vmatpush.msra.mxu0 0.0
    %776 = vmatpush.msra.mxu0 0.0
    %777 = vmatpush.msra.mxu0 0.0
    %778 = vmatpush.msra.mxu0 0.0
    %779 = vmatpush.msra.mxu0 0.0
    %780 = vmatpush.msra.mxu0 0.0
    %781 = vmatpush.msra.mxu0 0.0
    %782 = vmatpush.msra.mxu0 0.0
    %783 = vmatpush.msra.mxu0 %v771
    %784 = vmatpush.msra.mxu0 %v770
    %785 = vmatpush.msra.mxu0 %v769
    %786 = vmatpush.msra.mxu0 %v768
    %787 = vmatpush.msra.mxu0 %v767
    %788 = vmatpush.msra.mxu0 %v766
    %789 = vmatpush.msra.mxu0 %v765
    %790 = vmatpush.msra.mxu0 %v764
    %791 = vmatmul.f32.gmra.mxu0 %v773
    %v792 = vpop.f32.mrf.mxu0
    %v793 = vadd.f32 %v214, %v792
    %794 = vdwg.mxu0
    %v795 = vxor.u32 %v793, 2147483648
    %v796 = vmul.f32 %v795, 1.442695
    %v797 = vpow.pop %v796
    %v798 = vadd.f32 %v797, 1.0
    %v799 = vrcp.pop %v798
    %v800 = vmul.f32 %v798, %v799
    %v801 = vsub.f32 1.0, %v800
    %v802 = vmul.f32 %v799, %v801
    %v803 = vadd.f32 %v799, %v802
    %vm804 = vweird.f32 %v798
    %vm805 = vweird.f32 %v799
    %vm806 = vmor %vm804, %vm805
    %v807 = vsel %vm806, %v799, %v803
    %v808 = vand.u32 2147483647, %v798
    %vm809 = vcmp.eq.f32.partialorder %v808, 8.507059e+37
    %v810 = vand.u32 %v798, 2147483648
    %v811 = vor.u32 1.1754944e-38, %v810
    %v812 = vsel %vm809, %v811, %v807
    %v813 = vmul.f32 1.0, %v812
    %v814 = vtanh.pop %v793
    %v815 = vmul.f32 %v813, %v603
    %817 = vrot.lane.b32.xlu0 %v814, 64
    %v818 = vpop.permute.xlu0 %817
    %v820 = vmul.f32 %v813, %v818
    %822 = vrot.lane.b32.xlu0 %v820, 32
    %v823 = vpop.permute.xlu0 %822
    %v825 = vadd.f32 %v815, %v823
    %v826 = vtanh.pop %v825
    %828 = vrot.lane.b32.xlu0 %v826, 64
    %v829 = vpop.permute.xlu0 %828
    %v831 = vmul.f32 %v813, %v829
    %833 = vrot.lane.b32.xlu0 %v831, 32
    %v834 = vpop.permute.xlu0 %833
    %836 = vrot.lane.b32.xlu0 %v685, 64
    %v837 = vpop.permute.xlu0 %836
    %v839 = vsel %vm235, %v834, %v837
    %v840 = vld [vmem:[#allocation10] sm:$0xff]
    %v841 = vld [vmem:[#allocation10 + $0x8] sm:$0xff]
    %v842 = vld [vmem:[#allocation10 + $0x10] sm:$0xff]
    %v843 = vld [vmem:[#allocation10 + $0x18] sm:$0xff]
    %v844 = vld [vmem:[#allocation10 + $0x20] sm:$0xff]
    %v845 = vld [vmem:[#allocation10 + $0x28] sm:$0xff]
    %v846 = vld [vmem:[#allocation10 + $0x30] sm:$0xff]
    %v847 = vld [vmem:[#allocation10 + $0x38] sm:$0xff]
    %v849 = vsel %vm318, %v839, 0
    %851 = vmatpush.msra.mxu0 0.0
    %852 = vmatpush.msra.mxu0 0.0
    %853 = vmatpush.msra.mxu0 0.0
    %854 = vmatpush.msra.mxu0 0.0
    %855 = vmatpush.msra.mxu0 0.0
    %856 = vmatpush.msra.mxu0 0.0
    %857 = vmatpush.msra.mxu0 0.0
    %858 = vmatpush.msra.mxu0 0.0
    %859 = vmatpush.msra.mxu0 %v847
    %860 = vmatpush.msra.mxu0 %v846
    %861 = vmatpush.msra.mxu0 %v845
    %862 = vmatpush.msra.mxu0 %v844
    %863 = vmatpush.msra.mxu0 %v843
    %864 = vmatpush.msra.mxu0 %v842
    %865 = vmatpush.msra.mxu0 %v841
    %866 = vmatpush.msra.mxu0 %v840
    %867 = vmatmul.f32.gmra.mxu0 %v849
    %v868 = vpop.f32.mrf.mxu0
    %v869 = vadd.f32 %v218, %v868
    %870 = vdwg.mxu0
    %v871 = vxor.u32 %v869, 2147483648
    %v872 = vmul.f32 %v871, 1.442695
    %v873 = vpow.pop %v872
    %v874 = vadd.f32 %v873, 1.0
    %v875 = vrcp.pop %v874
    %v876 = vmul.f32 %v874, %v875
    %v877 = vsub.f32 1.0, %v876
    %v878 = vmul.f32 %v875, %v877
    %v879 = vadd.f32 %v875, %v878
    %vm880 = vweird.f32 %v874
    %vm881 = vweird.f32 %v875
    %vm882 = vmor %vm880, %vm881
    %v883 = vsel %vm882, %v875, %v879
    %v884 = vand.u32 2147483647, %v874
    %vm885 = vcmp.eq.f32.partialorder %v884, 8.507059e+37
    %v886 = vand.u32 %v874, 2147483648
    %v887 = vor.u32 1.1754944e-38, %v886
    %v888 = vsel %vm885, %v887, %v883
    %v889 = vmul.f32 1.0, %v888
    %v890 = vtanh.pop %v869
    %v891 = vmul.f32 %v889, %v679
    %893 = vrot.lane.b32.xlu0 %v890, 64
    %v894 = vpop.permute.xlu0 %893
    %v896 = vmul.f32 %v889, %v894
    %898 = vrot.lane.b32.xlu0 %v896, 32
    %v899 = vpop.permute.xlu0 %898
    %v901 = vadd.f32 %v891, %v899
    %v902 = vtanh.pop %v901
    %904 = vrot.lane.b32.xlu0 %v902, 64
    %v905 = vpop.permute.xlu0 %904
    %v907 = vmul.f32 %v889, %v905
    %909 = vrot.lane.b32.xlu0 %v907, 32
    %v910 = vpop.permute.xlu0 %909
    %912 = vst.msk [vmem:[#allocation3 + $0x10] sm:$0xff] %vm235, %v910
    %v913 = vld [vmem:[#allocation2 + $0x18] sm:$0xff]
    %v914 = vld [vmem:[#allocation9] sm:$0xff]
    %v915 = vld [vmem:[#allocation9 + $0x8] sm:$0xff]
    %v916 = vld [vmem:[#allocation9 + $0x10] sm:$0xff]
    %v917 = vld [vmem:[#allocation9 + $0x18] sm:$0xff]
    %v918 = vsel %vm235, %v758, 0
    %920 = vmatpush.msra.mxu0 0.0
    %921 = vmatpush.msra.mxu0 0.0
    %922 = vmatpush.msra.mxu0 0.0
    %923 = vmatpush.msra.mxu0 0.0
    %924 = vmatpush.msra.mxu0 0.0
    %925 = vmatpush.msra.mxu0 0.0
    %926 = vmatpush.msra.mxu0 0.0
    %927 = vmatpush.msra.mxu0 0.0
    %928 = vmatpush.msra.mxu0 0.0
    %929 = vmatpush.msra.mxu0 0.0
    %930 = vmatpush.msra.mxu0 0.0
    %931 = vmatpush.msra.mxu0 0.0
    %932 = vmatpush.msra.mxu0 %v917
    %933 = vmatpush.msra.mxu0 %v916
    %934 = vmatpush.msra.mxu0 %v915
    %935 = vmatpush.msra.mxu0 %v914
    %936 = vmatmul.f32.gmra.mxu0 %v918
    %v937 = vpop.f32.mrf.mxu0
    %v938 = vadd.f32 0.0, %v937
    %939 = vdwg.mxu0
    %v940 = vadd.f32 %v913, %v938
    %v941 = vxor.u32 %v940, 2147483648
    %v942 = vmul.f32 %v941, 1.442695
    %v943 = vpow.pop %v942
    %v944 = vadd.f32 %v943, 1.0
    %v945 = vrcp.pop %v944
    %v946 = vmul.f32 %v944, %v945
    %v947 = vsub.f32 1.0, %v946
    %v948 = vmul.f32 %v945, %v947
    %v949 = vadd.f32 %v945, %v948
    %vm950 = vweird.f32 %v944
    %vm951 = vweird.f32 %v945
    %vm952 = vmor %vm950, %vm951
    %v953 = vsel %vm952, %v945, %v949
    %v954 = vand.u32 2147483647, %v944
    %vm955 = vcmp.eq.f32.partialorder %v954, 8.507059e+37
    %v956 = vand.u32 %v944, 2147483648
    %v957 = vor.u32 1.1754944e-38, %v956
    %v958 = vsel %vm955, %v957, %v953
    %v959 = vmul.f32 1.0, %v958
    %v960 = vtanh.pop %v940
    %v961 = vmul.f32 %v959, %v749
    %963 = vrot.lane.b32.xlu0 %v960, 64
    %v964 = vpop.permute.xlu0 %963
    %v966 = vmul.f32 %v959, %v964
    %968 = vrot.lane.b32.xlu0 %v966, 32
    %v969 = vpop.permute.xlu0 %968
    %v971 = vadd.f32 %v961, %v969
    %v972 = vtanh.pop %v971
    %974 = vrot.lane.b32.xlu0 %v972, 64
    %v975 = vpop.permute.xlu0 %974
    %v977 = vmul.f32 %v959, %v975
    %979 = vrot.lane.b32.xlu0 %v977, 32
    %v980 = vpop.permute.xlu0 %979
    %982 = vrot.lane.b32.xlu0 %v831, 64
    %v983 = vpop.permute.xlu0 %982
    %v985 = vsel %vm235, %v980, %v983
    %v986 = vld [vmem:[%s6] sm:$0xff]
    %v987 = vld [vmem:[%s6 + $0x8] sm:$0xff]
    %v988 = vld [vmem:[%s6 + $0x10] sm:$0xff]
    %v989 = vld [vmem:[%s6 + $0x18] sm:$0xff]
    %v990 = vld [vmem:[%s6 + $0x20] sm:$0xff]
    %v991 = vld [vmem:[%s6 + $0x28] sm:$0xff]
    %v992 = vld [vmem:[%s6 + $0x30] sm:$0xff]
    %v993 = vld [vmem:[%s6 + $0x38] sm:$0xff]
    %v995 = vsel %vm318, %v985, 0
    %997 = vmatpush.msra.mxu0 0.0
    %998 = vmatpush.msra.mxu0 0.0
    %999 = vmatpush.msra.mxu0 0.0
    %1000 = vmatpush.msra.mxu0 0.0
    %1001 = vmatpush.msra.mxu0 0.0
    %1002 = vmatpush.msra.mxu0 0.0
    %1003 = vmatpush.msra.mxu0 0.0
    %1004 = vmatpush.msra.mxu0 0.0
    %1005 = vmatpush.msra.mxu0 %v993
    %1006 = vmatpush.msra.mxu0 %v992
    %1007 = vmatpush.msra.mxu0 %v991
    %1008 = vmatpush.msra.mxu0 %v990
    %1009 = vmatpush.msra.mxu0 %v989
    %1010 = vmatpush.msra.mxu0 %v988
    %1011 = vmatpush.msra.mxu0 %v987
    %1012 = vmatpush.msra.mxu0 %v986
    %1013 = vmatmul.f32.gmra.mxu0 %v995
    %v1014 = vpop.f32.mrf.mxu0
    %v1015 = vadd.f32 %v214, %v1014
    %1016 = vdwg.mxu0
    %v1017 = vxor.u32 %v1015, 2147483648
    %v1018 = vmul.f32 %v1017, 1.442695
    %v1019 = vpow.pop %v1018
    %v1020 = vadd.f32 %v1019, 1.0
    %v1021 = vrcp.pop %v1020
    %v1022 = vmul.f32 %v1020, %v1021
    %v1023 = vsub.f32 1.0, %v1022
    %v1024 = vmul.f32 %v1021, %v1023
    %v1025 = vadd.f32 %v1021, %v1024
    %vm1026 = vweird.f32 %v1020
    %vm1027 = vweird.f32 %v1021
    %vm1028 = vmor %vm1026, %vm1027
    %v1029 = vsel %vm1028, %v1021, %v1025
    %v1030 = vand.u32 2147483647, %v1020
    %vm1031 = vcmp.eq.f32.partialorder %v1030, 8.507059e+37
    %v1032 = vand.u32 %v1020, 2147483648
    %v1033 = vor.u32 1.1754944e-38, %v1032
    %v1034 = vsel %vm1031, %v1033, %v1029
    %v1035 = vmul.f32 1.0, %v1034
    %v1036 = vtanh.pop %v1015
    %v1037 = vmul.f32 %v1035, %v825
    %1039 = vrot.lane.b32.xlu0 %v1036, 64
    %v1040 = vpop.permute.xlu0 %1039
    %v1042 = vmul.f32 %v1035, %v1040
    %1044 = vrot.lane.b32.xlu0 %v1042, 32
    %v1045 = vpop.permute.xlu0 %1044
    %v1047 = vadd.f32 %v1037, %v1045
    %v1048 = vtanh.pop %v1047
    %1050 = vrot.lane.b32.xlu0 %v1048, 64
    %v1051 = vpop.permute.xlu0 %1050
    %v1053 = vmul.f32 %v1035, %v1051
    %1055 = vrot.lane.b32.xlu0 %v1053, 32
    %v1056 = vpop.permute.xlu0 %1055
    %1058 = vrot.lane.b32.xlu0 %v907, 64
    %v1059 = vpop.permute.xlu0 %1058
    %v1061 = vsel %vm235, %v1056, %v1059
    %v1062 = vld [vmem:[#allocation10] sm:$0xff]
    %v1063 = vld [vmem:[#allocation10 + $0x8] sm:$0xff]
    %v1064 = vld [vmem:[#allocation10 + $0x10] sm:$0xff]
    %v1065 = vld [vmem:[#allocation10 + $0x18] sm:$0xff]
    %v1066 = vld [vmem:[#allocation10 + $0x20] sm:$0xff]
    %v1067 = vld [vmem:[#allocation10 + $0x28] sm:$0xff]
    %v1068 = vld [vmem:[#allocation10 + $0x30] sm:$0xff]
    %v1069 = vld [vmem:[#allocation10 + $0x38] sm:$0xff]
    %v1071 = vsel %vm318, %v1061, 0
    %1073 = vmatpush.msra.mxu0 0.0
    %1074 = vmatpush.msra.mxu0 0.0
    %1075 = vmatpush.msra.mxu0 0.0
    %1076 = vmatpush.msra.mxu0 0.0
    %1077 = vmatpush.msra.mxu0 0.0
    %1078 = vmatpush.msra.mxu0 0.0
    %1079 = vmatpush.msra.mxu0 0.0
    %1080 = vmatpush.msra.mxu0 0.0
    %1081 = vmatpush.msra.mxu0 %v1069
    %1082 = vmatpush.msra.mxu0 %v1068
    %1083 = vmatpush.msra.mxu0 %v1067
    %1084 = vmatpush.msra.mxu0 %v1066
    %1085 = vmatpush.msra.mxu0 %v1065
    %1086 = vmatpush.msra.mxu0 %v1064
    %1087 = vmatpush.msra.mxu0 %v1063
    %1088 = vmatpush.msra.mxu0 %v1062
    %1089 = vmatmul.f32.gmra.mxu0 %v1071
    %v1090 = vpop.f32.mrf.mxu0
    %v1091 = vadd.f32 %v218, %v1090
    %1092 = vdwg.mxu0
    %v1093 = vxor.u32 %v1091, 2147483648
    %v1094 = vmul.f32 %v1093, 1.442695
    %v1095 = vpow.pop %v1094
    %v1096 = vadd.f32 %v1095, 1.0
    %v1097 = vrcp.pop %v1096
    %v1098 = vmul.f32 %v1096, %v1097
    %v1099 = vsub.f32 1.0, %v1098
    %v1100 = vmul.f32 %v1097, %v1099
    %v1101 = vadd.f32 %v1097, %v1100
    %vm1102 = vweird.f32 %v1096
    %vm1103 = vweird.f32 %v1097
    %vm1104 = vmor %vm1102, %vm1103
    %v1105 = vsel %vm1104, %v1097, %v1101
    %v1106 = vand.u32 2147483647, %v1096
    %vm1107 = vcmp.eq.f32.partialorder %v1106, 8.507059e+37
    %v1108 = vand.u32 %v1096, 2147483648
    %v1109 = vor.u32 1.1754944e-38, %v1108
    %v1110 = vsel %vm1107, %v1109, %v1105
    %v1111 = vmul.f32 1.0, %v1110
    %v1112 = vtanh.pop %v1091
    %v1113 = vmul.f32 %v1111, %v901
    %1115 = vrot.lane.b32.xlu0 %v1112, 64
    %v1116 = vpop.permute.xlu0 %1115
    %v1118 = vmul.f32 %v1111, %v1116
    %1120 = vrot.lane.b32.xlu0 %v1118, 32
    %v1121 = vpop.permute.xlu0 %1120
    %v1123 = vadd.f32 %v1113, %v1121
    %v1124 = vtanh.pop %v1123
    %1126 = vrot.lane.b32.xlu0 %v1124, 64
    %v1127 = vpop.permute.xlu0 %1126
    %v1129 = vmul.f32 %v1111, %v1127
    %1131 = vrot.lane.b32.xlu0 %v1129, 32
    %v1132 = vpop.permute.xlu0 %1131
    %1134 = vst.msk [vmem:[#allocation3 + $0x18] sm:$0xff] %vm235, %v1132
    %v1135 = vld [vmem:[#allocation2 + $0x20] sm:$0xff]
    %v1136 = vld [vmem:[#allocation9] sm:$0xff]
    %v1137 = vld [vmem:[#allocation9 + $0x8] sm:$0xff]
    %v1138 = vld [vmem:[#allocation9 + $0x10] sm:$0xff]
    %v1139 = vld [vmem:[#allocation9 + $0x18] sm:$0xff]
    %v1140 = vsel %vm235, %v980, 0
    %1142 = vmatpush.msra.mxu0 0.0
    %1143 = vmatpush.msra.mxu0 0.0
    %1144 = vmatpush.msra.mxu0 0.0
    %1145 = vmatpush.msra.mxu0 0.0
    %1146 = vmatpush.msra.mxu0 0.0
    %1147 = vmatpush.msra.mxu0 0.0
    %1148 = vmatpush.msra.mxu0 0.0
    %1149 = vmatpush.msra.mxu0 0.0
    %1150 = vmatpush.msra.mxu0 0.0
    %1151 = vmatpush.msra.mxu0 0.0
    %1152 = vmatpush.msra.mxu0 0.0
    %1153 = vmatpush.msra.mxu0 0.0
    %1154 = vmatpush.msra.mxu0 %v1139
    %1155 = vmatpush.msra.mxu0 %v1138
    %1156 = vmatpush.msra.mxu0 %v1137
    %1157 = vmatpush.msra.mxu0 %v1136
    %1158 = vmatmul.f32.gmra.mxu0 %v1140
    %v1159 = vpop.f32.mrf.mxu0
    %v1160 = vadd.f32 0.0, %v1159
    %1161 = vdwg.mxu0
    %v1162 = vadd.f32 %v1135, %v1160
    %v1163 = vxor.u32 %v1162, 2147483648
    %v1164 = vmul.f32 %v1163, 1.442695
    %v1165 = vpow.pop %v1164
    %v1166 = vadd.f32 %v1165, 1.0
    %v1167 = vrcp.pop %v1166
    %v1168 = vmul.f32 %v1166, %v1167
    %v1169 = vsub.f32 1.0, %v1168
    %v1170 = vmul.f32 %v1167, %v1169
    %v1171 = vadd.f32 %v1167, %v1170
    %vm1172 = vweird.f32 %v1166
    %vm1173 = vweird.f32 %v1167
    %vm1174 = vmor %vm1172, %vm1173
    %v1175 = vsel %vm1174, %v1167, %v1171
    %v1176 = vand.u32 2147483647, %v1166
    %vm1177 = vcmp.eq.f32.partialorder %v1176, 8.507059e+37
    %v1178 = vand.u32 %v1166, 2147483648
    %v1179 = vor.u32 1.1754944e-38, %v1178
    %v1180 = vsel %vm1177, %v1179, %v1175
    %v1181 = vmul.f32 1.0, %v1180
    %v1182 = vtanh.pop %v1162
    %v1183 = vmul.f32 %v1181, %v971
    %1185 = vrot.lane.b32.xlu0 %v1182, 64
    %v1186 = vpop.permute.xlu0 %1185
    %v1188 = vmul.f32 %v1181, %v1186
    %1190 = vrot.lane.b32.xlu0 %v1188, 32
    %v1191 = vpop.permute.xlu0 %1190
    %v1193 = vadd.f32 %v1183, %v1191
    %v1194 = vtanh.pop %v1193
    %1196 = vrot.lane.b32.xlu0 %v1194, 64
    %v1197 = vpop.permute.xlu0 %1196
    %v1199 = vmul.f32 %v1181, %v1197
    %1201 = vrot.lane.b32.xlu0 %v1199, 32
    %v1202 = vpop.permute.xlu0 %1201
    %1204 = vrot.lane.b32.xlu0 %v1053, 64
    %v1205 = vpop.permute.xlu0 %1204
    %v1207 = vsel %vm235, %v1202, %v1205
    %v1208 = vld [vmem:[%s6] sm:$0xff]
    %v1209 = vld [vmem:[%s6 + $0x8] sm:$0xff]
    %v1210 = vld [vmem:[%s6 + $0x10] sm:$0xff]
    %v1211 = vld [vmem:[%s6 + $0x18] sm:$0xff]
    %v1212 = vld [vmem:[%s6 + $0x20] sm:$0xff]
    %v1213 = vld [vmem:[%s6 + $0x28] sm:$0xff]
    %v1214 = vld [vmem:[%s6 + $0x30] sm:$0xff]
    %v1215 = vld [vmem:[%s6 + $0x38] sm:$0xff]
    %v1217 = vsel %vm318, %v1207, 0
    %1219 = vmatpush.msra.mxu0 0.0
    %1220 = vmatpush.msra.mxu0 0.0
    %1221 = vmatpush.msra.mxu0 0.0
    %1222 = vmatpush.msra.mxu0 0.0
    %1223 = vmatpush.msra.mxu0 0.0
    %1224 = vmatpush.msra.mxu0 0.0
    %1225 = vmatpush.msra.mxu0 0.0
    %1226 = vmatpush.msra.mxu0 0.0
    %1227 = vmatpush.msra.mxu0 %v1215
    %1228 = vmatpush.msra.mxu0 %v1214
    %1229 = vmatpush.msra.mxu0 %v1213
    %1230 = vmatpush.msra.mxu0 %v1212
    %1231 = vmatpush.msra.mxu0 %v1211
    %1232 = vmatpush.msra.mxu0 %v1210
    %1233 = vmatpush.msra.mxu0 %v1209
    %1234 = vmatpush.msra.mxu0 %v1208
    %1235 = vmatmul.f32.gmra.mxu0 %v1217
    %v1236 = vpop.f32.mrf.mxu0
    %v1237 = vadd.f32 %v214, %v1236
    %1238 = vdwg.mxu0
    %v1239 = vxor.u32 %v1237, 2147483648
    %v1240 = vmul.f32 %v1239, 1.442695
    %v1241 = vpow.pop %v1240
    %v1242 = vadd.f32 %v1241, 1.0
    %v1243 = vrcp.pop %v1242
    %v1244 = vmul.f32 %v1242, %v1243
    %v1245 = vsub.f32 1.0, %v1244
    %v1246 = vmul.f32 %v1243, %v1245
    %v1247 = vadd.f32 %v1243, %v1246
    %vm1248 = vweird.f32 %v1242
    %vm1249 = vweird.f32 %v1243
    %vm1250 = vmor %vm1248, %vm1249
    %v1251 = vsel %vm1250, %v1243, %v1247
    %v1252 = vand.u32 2147483647, %v1242
    %vm1253 = vcmp.eq.f32.partialorder %v1252, 8.507059e+37
    %v1254 = vand.u32 %v1242, 2147483648
    %v1255 = vor.u32 1.1754944e-38, %v1254
    %v1256 = vsel %vm1253, %v1255, %v1251
    %v1257 = vmul.f32 1.0, %v1256
    %v1258 = vtanh.pop %v1237
    %v1259 = vmul.f32 %v1257, %v1047
    %1261 = vrot.lane.b32.xlu0 %v1258, 64
    %v1262 = vpop.permute.xlu0 %1261
    %v1264 = vmul.f32 %v1257, %v1262
    %1266 = vrot.lane.b32.xlu0 %v1264, 32
    %v1267 = vpop.permute.xlu0 %1266
    %v1269 = vadd.f32 %v1259, %v1267
    %v1270 = vtanh.pop %v1269
    %1272 = vrot.lane.b32.xlu0 %v1270, 64
    %v1273 = vpop.permute.xlu0 %1272
    %v1275 = vmul.f32 %v1257, %v1273
    %1277 = vrot.lane.b32.xlu0 %v1275, 32
    %v1278 = vpop.permute.xlu0 %1277
    %1280 = vrot.lane.b32.xlu0 %v1129, 64
    %v1281 = vpop.permute.xlu0 %1280
    %v1283 = vsel %vm235, %v1278, %v1281
    %v1284 = vld [vmem:[#allocation10] sm:$0xff]
    %v1285 = vld [vmem:[#allocation10 + $0x8] sm:$0xff]
    %v1286 = vld [vmem:[#allocation10 + $0x10] sm:$0xff]
    %v1287 = vld [vmem:[#allocation10 + $0x18] sm:$0xff]
    %v1288 = vld [vmem:[#allocation10 + $0x20] sm:$0xff]
    %v1289 = vld [vmem:[#allocation10 + $0x28] sm:$0xff]
    %v1290 = vld [vmem:[#allocation10 + $0x30] sm:$0xff]
    %v1291 = vld [vmem:[#allocation10 + $0x38] sm:$0xff]
    %v1293 = vsel %vm318, %v1283, 0
    %1295 = vmatpush.msra.mxu0 0.0
    %1296 = vmatpush.msra.mxu0 0.0
    %1297 = vmatpush.msra.mxu0 0.0
    %1298 = vmatpush.msra.mxu0 0.0
    %1299 = vmatpush.msra.mxu0 0.0
    %1300 = vmatpush.msra.mxu0 0.0
    %1301 = vmatpush.msra.mxu0 0.0
    %1302 = vmatpush.msra.mxu0 0.0
    %1303 = vmatpush.msra.mxu0 %v1291
    %1304 = vmatpush.msra.mxu0 %v1290
    %1305 = vmatpush.msra.mxu0 %v1289
    %1306 = vmatpush.msra.mxu0 %v1288
    %1307 = vmatpush.msra.mxu0 %v1287
    %1308 = vmatpush.msra.mxu0 %v1286
    %1309 = vmatpush.msra.mxu0 %v1285
    %1310 = vmatpush.msra.mxu0 %v1284
    %1311 = vmatmul.f32.gmra.mxu0 %v1293
    %v1312 = vpop.f32.mrf.mxu0
    %v1313 = vadd.f32 %v218, %v1312
    %1314 = vdwg.mxu0
    %v1315 = vxor.u32 %v1313, 2147483648
    %v1316 = vmul.f32 %v1315, 1.442695
    %v1317 = vpow.pop %v1316
    %v1318 = vadd.f32 %v1317, 1.0
    %v1319 = vrcp.pop %v1318
    %v1320 = vmul.f32 %v1318, %v1319
    %v1321 = vsub.f32 1.0, %v1320
    %v1322 = vmul.f32 %v1319, %v1321
    %v1323 = vadd.f32 %v1319, %v1322
    %vm1324 = vweird.f32 %v1318
    %vm1325 = vweird.f32 %v1319
    %vm1326 = vmor %vm1324, %vm1325
    %v1327 = vsel %vm1326, %v1319, %v1323
    %v1328 = vand.u32 2147483647, %v1318
    %vm1329 = vcmp.eq.f32.partialorder %v1328, 8.507059e+37
    %v1330 = vand.u32 %v1318, 2147483648
    %v1331 = vor.u32 1.1754944e-38, %v1330
    %v1332 = vsel %vm1329, %v1331, %v1327
    %v1333 = vmul.f32 1.0, %v1332
    %v1334 = vtanh.pop %v1313
    %v1335 = vmul.f32 %v1333, %v1123
    %1337 = vrot.lane.b32.xlu0 %v1334, 64
    %v1338 = vpop.permute.xlu0 %1337
    %v1340 = vmul.f32 %v1333, %v1338
    %1342 = vrot.lane.b32.xlu0 %v1340, 32
    %v1343 = vpop.permute.xlu0 %1342
    %v1345 = vadd.f32 %v1335, %v1343
    %v1346 = vtanh.pop %v1345
    %1348 = vrot.lane.b32.xlu0 %v1346, 64
    %v1349 = vpop.permute.xlu0 %1348
    %v1351 = vmul.f32 %v1333, %v1349
    %1353 = vrot.lane.b32.xlu0 %v1351, 32
    %v1354 = vpop.permute.xlu0 %1353
    %1356 = vst.msk [vmem:[#allocation3 + $0x20] sm:$0xff] %vm235, %v1354
    %v1357 = vld [vmem:[#allocation2 + $0x28] sm:$0xff]
    %v1358 = vld [vmem:[#allocation9] sm:$0xff]
    %v1359 = vld [vmem:[#allocation9 + $0x8] sm:$0xff]
    %v1360 = vld [vmem:[#allocation9 + $0x10] sm:$0xff]
    %v1361 = vld [vmem:[#allocation9 + $0x18] sm:$0xff]
    %v1362 = vsel %vm235, %v1202, 0
    %1364 = vmatpush.msra.mxu0 0.0
    %1365 = vmatpush.msra.mxu0 0.0
    %1366 = vmatpush.msra.mxu0 0.0
    %1367 = vmatpush.msra.mxu0 0.0
    %1368 = vmatpush.msra.mxu0 0.0
    %1369 = vmatpush.msra.mxu0 0.0
    %1370 = vmatpush.msra.mxu0 0.0
    %1371 = vmatpush.msra.mxu0 0.0
    %1372 = vmatpush.msra.mxu0 0.0
    %1373 = vmatpush.msra.mxu0 0.0
    %1374 = vmatpush.msra.mxu0 0.0
    %1375 = vmatpush.msra.mxu0 0.0
    %1376 = vmatpush.msra.mxu0 %v1361
    %1377 = vmatpush.msra.mxu0 %v1360
    %1378 = vmatpush.msra.mxu0 %v1359
    %1379 = vmatpush.msra.mxu0 %v1358
    %1380 = vmatmul.f32.gmra.mxu0 %v1362
    %v1381 = vpop.f32.mrf.mxu0
    %v1382 = vadd.f32 0.0, %v1381
    %1383 = vdwg.mxu0
    %v1384 = vadd.f32 %v1357, %v1382
    %v1385 = vxor.u32 %v1384, 2147483648
    %v1386 = vmul.f32 %v1385, 1.442695
    %v1387 = vpow.pop %v1386
    %v1388 = vadd.f32 %v1387, 1.0
    %v1389 = vrcp.pop %v1388
    %v1390 = vmul.f32 %v1388, %v1389
    %v1391 = vsub.f32 1.0, %v1390
    %v1392 = vmul.f32 %v1389, %v1391
    %v1393 = vadd.f32 %v1389, %v1392
    %vm1394 = vweird.f32 %v1388
    %vm1395 = vweird.f32 %v1389
    %vm1396 = vmor %vm1394, %vm1395
    %v1397 = vsel %vm1396, %v1389, %v1393
    %v1398 = vand.u32 2147483647, %v1388
    %vm1399 = vcmp.eq.f32.partialorder %v1398, 8.507059e+37
    %v1400 = vand.u32 %v1388, 2147483648
    %v1401 = vor.u32 1.1754944e-38, %v1400
    %v1402 = vsel %vm1399, %v1401, %v1397
    %v1403 = vmul.f32 1.0, %v1402
    %v1404 = vtanh.pop %v1384
    %v1405 = vmul.f32 %v1403, %v1193
    %1407 = vrot.lane.b32.xlu0 %v1404, 64
    %v1408 = vpop.permute.xlu0 %1407
    %v1410 = vmul.f32 %v1403, %v1408
    %1412 = vrot.lane.b32.xlu0 %v1410, 32
    %v1413 = vpop.permute.xlu0 %1412
    %v1415 = vadd.f32 %v1405, %v1413
    %v1416 = vtanh.pop %v1415
    %1418 = vrot.lane.b32.xlu0 %v1416, 64
    %v1419 = vpop.permute.xlu0 %1418
    %v1421 = vmul.f32 %v1403, %v1419
    %1423 = vrot.lane.b32.xlu0 %v1421, 32
    %v1424 = vpop.permute.xlu0 %1423
    %1426 = vrot.lane.b32.xlu0 %v1275, 64
    %v1427 = vpop.permute.xlu0 %1426
    %v1429 = vsel %vm235, %v1424, %v1427
    %v1430 = vld [vmem:[%s6] sm:$0xff]
    %v1431 = vld [vmem:[%s6 + $0x8] sm:$0xff]
    %v1432 = vld [vmem:[%s6 + $0x10] sm:$0xff]
    %v1433 = vld [vmem:[%s6 + $0x18] sm:$0xff]
    %v1434 = vld [vmem:[%s6 + $0x20] sm:$0xff]
    %v1435 = vld [vmem:[%s6 + $0x28] sm:$0xff]
    %v1436 = vld [vmem:[%s6 + $0x30] sm:$0xff]
    %v1437 = vld [vmem:[%s6 + $0x38] sm:$0xff]
    %v1439 = vsel %vm318, %v1429, 0
    %1441 = vmatpush.msra.mxu0 0.0
    %1442 = vmatpush.msra.mxu0 0.0
    %1443 = vmatpush.msra.mxu0 0.0
    %1444 = vmatpush.msra.mxu0 0.0
    %1445 = vmatpush.msra.mxu0 0.0
    %1446 = vmatpush.msra.mxu0 0.0
    %1447 = vmatpush.msra.mxu0 0.0
    %1448 = vmatpush.msra.mxu0 0.0
    %1449 = vmatpush.msra.mxu0 %v1437
    %1450 = vmatpush.msra.mxu0 %v1436
    %1451 = vmatpush.msra.mxu0 %v1435
    %1452 = vmatpush.msra.mxu0 %v1434
    %1453 = vmatpush.msra.mxu0 %v1433
    %1454 = vmatpush.msra.mxu0 %v1432
    %1455 = vmatpush.msra.mxu0 %v1431
    %1456 = vmatpush.msra.mxu0 %v1430
    %1457 = vmatmul.f32.gmra.mxu0 %v1439
    %v1458 = vpop.f32.mrf.mxu0
    %v1459 = vadd.f32 %v214, %v1458
    %1460 = vdwg.mxu0
    %v1461 = vxor.u32 %v1459, 2147483648
    %v1462 = vmul.f32 %v1461, 1.442695
    %v1463 = vpow.pop %v1462
    %v1464 = vadd.f32 %v1463, 1.0
    %v1465 = vrcp.pop %v1464
    %v1466 = vmul.f32 %v1464, %v1465
    %v1467 = vsub.f32 1.0, %v1466
    %v1468 = vmul.f32 %v1465, %v1467
    %v1469 = vadd.f32 %v1465, %v1468
    %vm1470 = vweird.f32 %v1464
    %vm1471 = vweird.f32 %v1465
    %vm1472 = vmor %vm1470, %vm1471
    %v1473 = vsel %vm1472, %v1465, %v1469
    %v1474 = vand.u32 2147483647, %v1464
    %vm1475 = vcmp.eq.f32.partialorder %v1474, 8.507059e+37
    %v1476 = vand.u32 %v1464, 2147483648
    %v1477 = vor.u32 1.1754944e-38, %v1476
    %v1478 = vsel %vm1475, %v1477, %v1473
    %v1479 = vmul.f32 1.0, %v1478
    %v1480 = vtanh.pop %v1459
    %v1481 = vmul.f32 %v1479, %v1269
    %1483 = vrot.lane.b32.xlu0 %v1480, 64
    %v1484 = vpop.permute.xlu0 %1483
    %v1486 = vmul.f32 %v1479, %v1484
    %1488 = vrot.lane.b32.xlu0 %v1486, 32
    %v1489 = vpop.permute.xlu0 %1488
    %v1491 = vadd.f32 %v1481, %v1489
    %v1492 = vtanh.pop %v1491
    %1494 = vrot.lane.b32.xlu0 %v1492, 64
    %v1495 = vpop.permute.xlu0 %1494
    %v1497 = vmul.f32 %v1479, %v1495
    %1499 = vrot.lane.b32.xlu0 %v1497, 32
    %v1500 = vpop.permute.xlu0 %1499
    %1502 = vrot.lane.b32.xlu0 %v1351, 64
    %v1503 = vpop.permute.xlu0 %1502
    %v1505 = vsel %vm235, %v1500, %v1503
    %v1506 = vld [vmem:[#allocation10] sm:$0xff]
    %v1507 = vld [vmem:[#allocation10 + $0x8] sm:$0xff]
    %v1508 = vld [vmem:[#allocation10 + $0x10] sm:$0xff]
    %v1509 = vld [vmem:[#allocation10 + $0x18] sm:$0xff]
    %v1510 = vld [vmem:[#allocation10 + $0x20] sm:$0xff]
    %v1511 = vld [vmem:[#allocation10 + $0x28] sm:$0xff]
    %v1512 = vld [vmem:[#allocation10 + $0x30] sm:$0xff]
    %v1513 = vld [vmem:[#allocation10 + $0x38] sm:$0xff]
    %v1515 = vsel %vm318, %v1505, 0
    %1517 = vmatpush.msra.mxu0 0.0
    %1518 = vmatpush.msra.mxu0 0.0
    %1519 = vmatpush.msra.mxu0 0.0
    %1520 = vmatpush.msra.mxu0 0.0
    %1521 = vmatpush.msra.mxu0 0.0
    %1522 = vmatpush.msra.mxu0 0.0
    %1523 = vmatpush.msra.mxu0 0.0
    %1524 = vmatpush.msra.mxu0 0.0
    %1525 = vmatpush.msra.mxu0 %v1513
    %1526 = vmatpush.msra.mxu0 %v1512
    %1527 = vmatpush.msra.mxu0 %v1511
    %1528 = vmatpush.msra.mxu0 %v1510
    %1529 = vmatpush.msra.mxu0 %v1509
    %1530 = vmatpush.msra.mxu0 %v1508
    %1531 = vmatpush.msra.mxu0 %v1507
    %1532 = vmatpush.msra.mxu0 %v1506
    %1533 = vmatmul.f32.gmra.mxu0 %v1515
    %v1534 = vpop.f32.mrf.mxu0
    %v1535 = vadd.f32 %v218, %v1534
    %1536 = vdwg.mxu0
    %v1537 = vxor.u32 %v1535, 2147483648
    %v1538 = vmul.f32 %v1537, 1.442695
    %v1539 = vpow.pop %v1538
    %v1540 = vadd.f32 %v1539, 1.0
    %v1541 = vrcp.pop %v1540
    %v1542 = vmul.f32 %v1540, %v1541
    %v1543 = vsub.f32 1.0, %v1542
    %v1544 = vmul.f32 %v1541, %v1543
    %v1545 = vadd.f32 %v1541, %v1544
    %vm1546 = vweird.f32 %v1540
    %vm1547 = vweird.f32 %v1541
    %vm1548 = vmor %vm1546, %vm1547
    %v1549 = vsel %vm1548, %v1541, %v1545
    %v1550 = vand.u32 2147483647, %v1540
    %vm1551 = vcmp.eq.f32.partialorder %v1550, 8.507059e+37
    %v1552 = vand.u32 %v1540, 2147483648
    %v1553 = vor.u32 1.1754944e-38, %v1552
    %v1554 = vsel %vm1551, %v1553, %v1549
    %v1555 = vmul.f32 1.0, %v1554
    %v1556 = vtanh.pop %v1535
    %v1557 = vmul.f32 %v1555, %v1345
    %1559 = vrot.lane.b32.xlu0 %v1556, 64
    %v1560 = vpop.permute.xlu0 %1559
    %v1562 = vmul.f32 %v1555, %v1560
    %1564 = vrot.lane.b32.xlu0 %v1562, 32
    %v1565 = vpop.permute.xlu0 %1564
    %v1567 = vadd.f32 %v1557, %v1565
    %v1568 = vtanh.pop %v1567
    %1570 = vrot.lane.b32.xlu0 %v1568, 64
    %v1571 = vpop.permute.xlu0 %1570
    %v1573 = vmul.f32 %v1555, %v1571
    %1575 = vrot.lane.b32.xlu0 %v1573, 32
    %v1576 = vpop.permute.xlu0 %1575
    %1578 = vst.msk [vmem:[#allocation3 + $0x28] sm:$0xff] %vm235, %v1576
    %v1579 = vld [vmem:[#allocation2 + $0x30] sm:$0xff]
    %v1580 = vld [vmem:[#allocation9] sm:$0xff]
    %v1581 = vld [vmem:[#allocation9 + $0x8] sm:$0xff]
    %v1582 = vld [vmem:[#allocation9 + $0x10] sm:$0xff]
    %v1583 = vld [vmem:[#allocation9 + $0x18] sm:$0xff]
    %v1584 = vsel %vm235, %v1424, 0
    %1586 = vmatpush.msra.mxu0 0.0
    %1587 = vmatpush.msra.mxu0 0.0
    %1588 = vmatpush.msra.mxu0 0.0
    %1589 = vmatpush.msra.mxu0 0.0
    %1590 = vmatpush.msra.mxu0 0.0
    %1591 = vmatpush.msra.mxu0 0.0
    %1592 = vmatpush.msra.mxu0 0.0
    %1593 = vmatpush.msra.mxu0 0.0
    %1594 = vmatpush.msra.mxu0 0.0
    %1595 = vmatpush.msra.mxu0 0.0
    %1596 = vmatpush.msra.mxu0 0.0
    %1597 = vmatpush.msra.mxu0 0.0
    %1598 = vmatpush.msra.mxu0 %v1583
    %1599 = vmatpush.msra.mxu0 %v1582
    %1600 = vmatpush.msra.mxu0 %v1581
    %1601 = vmatpush.msra.mxu0 %v1580
    %1602 = vmatmul.f32.gmra.mxu0 %v1584
    %v1603 = vpop.f32.mrf.mxu0
    %v1604 = vadd.f32 0.0, %v1603
    %1605 = vdwg.mxu0
    %v1606 = vadd.f32 %v1579, %v1604
    %v1607 = vxor.u32 %v1606, 2147483648
    %v1608 = vmul.f32 %v1607, 1.442695
    %v1609 = vpow.pop %v1608
    %v1610 = vadd.f32 %v1609, 1.0
    %v1611 = vrcp.pop %v1610
    %v1612 = vmul.f32 %v1610, %v1611
    %v1613 = vsub.f32 1.0, %v1612
    %v1614 = vmul.f32 %v1611, %v1613
    %v1615 = vadd.f32 %v1611, %v1614
    %vm1616 = vweird.f32 %v1610
    %vm1617 = vweird.f32 %v1611
    %vm1618 = vmor %vm1616, %vm1617
    %v1619 = vsel %vm1618, %v1611, %v1615
    %v1620 = vand.u32 2147483647, %v1610
    %vm1621 = vcmp.eq.f32.partialorder %v1620, 8.507059e+37
    %v1622 = vand.u32 %v1610, 2147483648
    %v1623 = vor.u32 1.1754944e-38, %v1622
    %v1624 = vsel %vm1621, %v1623, %v1619
    %v1625 = vmul.f32 1.0, %v1624
    %v1626 = vtanh.pop %v1606
    %v1627 = vmul.f32 %v1625, %v1415
    %1629 = vrot.lane.b32.xlu0 %v1626, 64
    %v1630 = vpop.permute.xlu0 %1629
    %v1632 = vmul.f32 %v1625, %v1630
    %1634 = vrot.lane.b32.xlu0 %v1632, 32
    %v1635 = vpop.permute.xlu0 %1634
    %v1637 = vadd.f32 %v1627, %v1635
    %v1638 = vtanh.pop %v1637
    %1640 = vrot.lane.b32.xlu0 %v1638, 64
    %v1641 = vpop.permute.xlu0 %1640
    %v1643 = vmul.f32 %v1625, %v1641
    %1645 = vrot.lane.b32.xlu0 %v1643, 32
    %v1646 = vpop.permute.xlu0 %1645
    %1648 = vrot.lane.b32.xlu0 %v1497, 64
    %v1649 = vpop.permute.xlu0 %1648
    %v1651 = vsel %vm235, %v1646, %v1649
    %v1652 = vld [vmem:[%s6] sm:$0xff]
    %v1653 = vld [vmem:[%s6 + $0x8] sm:$0xff]
    %v1654 = vld [vmem:[%s6 + $0x10] sm:$0xff]
    %v1655 = vld [vmem:[%s6 + $0x18] sm:$0xff]
    %v1656 = vld [vmem:[%s6 + $0x20] sm:$0xff]
    %v1657 = vld [vmem:[%s6 + $0x28] sm:$0xff]
    %v1658 = vld [vmem:[%s6 + $0x30] sm:$0xff]
    %v1659 = vld [vmem:[%s6 + $0x38] sm:$0xff]
    %v1661 = vsel %vm318, %v1651, 0
    %1663 = vmatpush.msra.mxu0 0.0
    %1664 = vmatpush.msra.mxu0 0.0
    %1665 = vmatpush.msra.mxu0 0.0
    %1666 = vmatpush.msra.mxu0 0.0
    %1667 = vmatpush.msra.mxu0 0.0
    %1668 = vmatpush.msra.mxu0 0.0
    %1669 = vmatpush.msra.mxu0 0.0
    %1670 = vmatpush.msra.mxu0 0.0
    %1671 = vmatpush.msra.mxu0 %v1659
    %1672 = vmatpush.msra.mxu0 %v1658
    %1673 = vmatpush.msra.mxu0 %v1657
    %1674 = vmatpush.msra.mxu0 %v1656
    %1675 = vmatpush.msra.mxu0 %v1655
    %1676 = vmatpush.msra.mxu0 %v1654
    %1677 = vmatpush.msra.mxu0 %v1653
    %1678 = vmatpush.msra.mxu0 %v1652
    %1679 = vmatmul.f32.gmra.mxu0 %v1661
    %v1680 = vpop.f32.mrf.mxu0
    %v1681 = vadd.f32 %v214, %v1680
    %1682 = vdwg.mxu0
    %v1683 = vxor.u32 %v1681, 2147483648
    %v1684 = vmul.f32 %v1683, 1.442695
    %v1685 = vpow.pop %v1684
    %v1686 = vadd.f32 %v1685, 1.0
    %v1687 = vrcp.pop %v1686
    %v1688 = vmul.f32 %v1686, %v1687
    %v1689 = vsub.f32 1.0, %v1688
    %v1690 = vmul.f32 %v1687, %v1689
    %v1691 = vadd.f32 %v1687, %v1690
    %vm1692 = vweird.f32 %v1686
    %vm1693 = vweird.f32 %v1687
    %vm1694 = vmor %vm1692, %vm1693
    %v1695 = vsel %vm1694, %v1687, %v1691
    %v1696 = vand.u32 2147483647, %v1686
    %vm1697 = vcmp.eq.f32.partialorder %v1696, 8.507059e+37
    %v1698 = vand.u32 %v1686, 2147483648
    %v1699 = vor.u32 1.1754944e-38, %v1698
    %v1700 = vsel %vm1697, %v1699, %v1695
    %v1701 = vmul.f32 1.0, %v1700
    %v1702 = vtanh.pop %v1681
    %v1703 = vmul.f32 %v1701, %v1491
    %1705 = vrot.lane.b32.xlu0 %v1702, 64
    %v1706 = vpop.permute.xlu0 %1705
    %v1708 = vmul.f32 %v1701, %v1706
    %1710 = vrot.lane.b32.xlu0 %v1708, 32
    %v1711 = vpop.permute.xlu0 %1710
    %v1713 = vadd.f32 %v1703, %v1711
    %v1714 = vtanh.pop %v1713
    %1716 = vrot.lane.b32.xlu0 %v1714, 64
    %v1717 = vpop.permute.xlu0 %1716
    %v1719 = vmul.f32 %v1701, %v1717
    %1721 = vrot.lane.b32.xlu0 %v1719, 32
    %v1722 = vpop.permute.xlu0 %1721
    %1724 = vrot.lane.b32.xlu0 %v1573, 64
    %v1725 = vpop.permute.xlu0 %1724
    %v1727 = vsel %vm235, %v1722, %v1725
    %v1728 = vld [vmem:[#allocation10] sm:$0xff]
    %v1729 = vld [vmem:[#allocation10 + $0x8] sm:$0xff]
    %v1730 = vld [vmem:[#allocation10 + $0x10] sm:$0xff]
    %v1731 = vld [vmem:[#allocation10 + $0x18] sm:$0xff]
    %v1732 = vld [vmem:[#allocation10 + $0x20] sm:$0xff]
    %v1733 = vld [vmem:[#allocation10 + $0x28] sm:$0xff]
    %v1734 = vld [vmem:[#allocation10 + $0x30] sm:$0xff]
    %v1735 = vld [vmem:[#allocation10 + $0x38] sm:$0xff]
    %v1737 = vsel %vm318, %v1727, 0
    %1739 = vmatpush.msra.mxu0 0.0
    %1740 = vmatpush.msra.mxu0 0.0
    %1741 = vmatpush.msra.mxu0 0.0
    %1742 = vmatpush.msra.mxu0 0.0
    %1743 = vmatpush.msra.mxu0 0.0
    %1744 = vmatpush.msra.mxu0 0.0
    %1745 = vmatpush.msra.mxu0 0.0
    %1746 = vmatpush.msra.mxu0 0.0
    %1747 = vmatpush.msra.mxu0 %v1735
    %1748 = vmatpush.msra.mxu0 %v1734
    %1749 = vmatpush.msra.mxu0 %v1733
    %1750 = vmatpush.msra.mxu0 %v1732
    %1751 = vmatpush.msra.mxu0 %v1731
    %1752 = vmatpush.msra.mxu0 %v1730
    %1753 = vmatpush.msra.mxu0 %v1729
    %1754 = vmatpush.msra.mxu0 %v1728
    %1755 = vmatmul.f32.gmra.mxu0 %v1737
    %v1756 = vpop.f32.mrf.mxu0
    %v1757 = vadd.f32 %v218, %v1756
    %1758 = vdwg.mxu0
    %v1759 = vxor.u32 %v1757, 2147483648
    %v1760 = vmul.f32 %v1759, 1.442695
    %v1761 = vpow.pop %v1760
    %v1762 = vadd.f32 %v1761, 1.0
    %v1763 = vrcp.pop %v1762
    %v1764 = vmul.f32 %v1762, %v1763
    %v1765 = vsub.f32 1.0, %v1764
    %v1766 = vmul.f32 %v1763, %v1765
    %v1767 = vadd.f32 %v1763, %v1766
    %vm1768 = vweird.f32 %v1762
    %vm1769 = vweird.f32 %v1763
    %vm1770 = vmor %vm1768, %vm1769
    %v1771 = vsel %vm1770, %v1763, %v1767
    %v1772 = vand.u32 2147483647, %v1762
    %vm1773 = vcmp.eq.f32.partialorder %v1772, 8.507059e+37
    %v1774 = vand.u32 %v1762, 2147483648
    %v1775 = vor.u32 1.1754944e-38, %v1774
    %v1776 = vsel %vm1773, %v1775, %v1771
    %v1777 = vmul.f32 1.0, %v1776
    %v1778 = vtanh.pop %v1757
    %v1779 = vmul.f32 %v1777, %v1567
    %1781 = vrot.lane.b32.xlu0 %v1778, 64
    %v1782 = vpop.permute.xlu0 %1781
    %v1784 = vmul.f32 %v1777, %v1782
    %1786 = vrot.lane.b32.xlu0 %v1784, 32
    %v1787 = vpop.permute.xlu0 %1786
    %v1789 = vadd.f32 %v1779, %v1787
    %v1790 = vtanh.pop %v1789
    %1792 = vrot.lane.b32.xlu0 %v1790, 64
    %v1793 = vpop.permute.xlu0 %1792
    %v1795 = vmul.f32 %v1777, %v1793
    %1797 = vrot.lane.b32.xlu0 %v1795, 32
    %v1798 = vpop.permute.xlu0 %1797
    %1800 = vst.msk [vmem:[#allocation3 + $0x30] sm:$0xff] %vm235, %v1798
    %v1801 = vld [vmem:[#allocation2 + $0x38] sm:$0xff]
    %v1802 = vld [vmem:[#allocation9] sm:$0xff]
    %v1803 = vld [vmem:[#allocation9 + $0x8] sm:$0xff]
    %v1804 = vld [vmem:[#allocation9 + $0x10] sm:$0xff]
    %v1805 = vld [vmem:[#allocation9 + $0x18] sm:$0xff]
    %v1806 = vsel %vm235, %v1646, 0
    %1808 = vmatpush.msra.mxu0 0.0
    %1809 = vmatpush.msra.mxu0 0.0
    %1810 = vmatpush.msra.mxu0 0.0
    %1811 = vmatpush.msra.mxu0 0.0
    %1812 = vmatpush.msra.mxu0 0.0
    %1813 = vmatpush.msra.mxu0 0.0
    %1814 = vmatpush.msra.mxu0 0.0
    %1815 = vmatpush.msra.mxu0 0.0
    %1816 = vmatpush.msra.mxu0 0.0
    %1817 = vmatpush.msra.mxu0 0.0
    %1818 = vmatpush.msra.mxu0 0.0
    %1819 = vmatpush.msra.mxu0 0.0
    %1820 = vmatpush.msra.mxu0 %v1805
    %1821 = vmatpush.msra.mxu0 %v1804
    %1822 = vmatpush.msra.mxu0 %v1803
    %1823 = vmatpush.msra.mxu0 %v1802
    %1824 = vmatmul.f32.gmra.mxu0 %v1806
    %v1825 = vpop.f32.mrf.mxu0
    %v1826 = vadd.f32 0.0, %v1825
    %1827 = vdwg.mxu0
    %v1828 = vadd.f32 %v1801, %v1826
    %v1829 = vxor.u32 %v1828, 2147483648
    %v1830 = vmul.f32 %v1829, 1.442695
    %v1831 = vpow.pop %v1830
    %v1832 = vadd.f32 %v1831, 1.0
    %v1833 = vrcp.pop %v1832
    %v1834 = vmul.f32 %v1832, %v1833
    %v1835 = vsub.f32 1.0, %v1834
    %v1836 = vmul.f32 %v1833, %v1835
    %v1837 = vadd.f32 %v1833, %v1836
    %vm1838 = vweird.f32 %v1832
    %vm1839 = vweird.f32 %v1833
    %vm1840 = vmor %vm1838, %vm1839
    %v1841 = vsel %vm1840, %v1833, %v1837
    %v1842 = vand.u32 2147483647, %v1832
    %vm1843 = vcmp.eq.f32.partialorder %v1842, 8.507059e+37
    %v1844 = vand.u32 %v1832, 2147483648
    %v1845 = vor.u32 1.1754944e-38, %v1844
    %v1846 = vsel %vm1843, %v1845, %v1841
    %v1847 = vmul.f32 1.0, %v1846
    %v1848 = vtanh.pop %v1828
    %v1849 = vmul.f32 %v1847, %v1637
    %1851 = vrot.lane.b32.xlu0 %v1848, 64
    %v1852 = vpop.permute.xlu0 %1851
    %v1854 = vmul.f32 %v1847, %v1852
    %1856 = vrot.lane.b32.xlu0 %v1854, 32
    %v1857 = vpop.permute.xlu0 %1856
    %v1859 = vadd.f32 %v1849, %v1857
    %v1860 = vtanh.pop %v1859
    %1862 = vrot.lane.b32.xlu0 %v1860, 64
    %v1863 = vpop.permute.xlu0 %1862
    %v1865 = vmul.f32 %v1847, %v1863
    %1867 = vrot.lane.b32.xlu0 %v1865, 32
    %v1868 = vpop.permute.xlu0 %1867
    %1870 = vrot.lane.b32.xlu0 %v1719, 64
    %v1871 = vpop.permute.xlu0 %1870
    %v1873 = vsel %vm235, %v1868, %v1871
    %v1874 = vld [vmem:[%s6] sm:$0xff]
    %v1875 = vld [vmem:[%s6 + $0x8] sm:$0xff]
    %v1876 = vld [vmem:[%s6 + $0x10] sm:$0xff]
    %v1877 = vld [vmem:[%s6 + $0x18] sm:$0xff]
    %v1878 = vld [vmem:[%s6 + $0x20] sm:$0xff]
    %v1879 = vld [vmem:[%s6 + $0x28] sm:$0xff]
    %v1880 = vld [vmem:[%s6 + $0x30] sm:$0xff]
    %v1881 = vld [vmem:[%s6 + $0x38] sm:$0xff]
    %v1883 = vsel %vm318, %v1873, 0
    %1885 = vmatpush.msra.mxu0 0.0
    %1886 = vmatpush.msra.mxu0 0.0
    %1887 = vmatpush.msra.mxu0 0.0
    %1888 = vmatpush.msra.mxu0 0.0
    %1889 = vmatpush.msra.mxu0 0.0
    %1890 = vmatpush.msra.mxu0 0.0
    %1891 = vmatpush.msra.mxu0 0.0
    %1892 = vmatpush.msra.mxu0 0.0
    %1893 = vmatpush.msra.mxu0 %v1881
    %1894 = vmatpush.msra.mxu0 %v1880
    %1895 = vmatpush.msra.mxu0 %v1879
    %1896 = vmatpush.msra.mxu0 %v1878
    %1897 = vmatpush.msra.mxu0 %v1877
    %1898 = vmatpush.msra.mxu0 %v1876
    %1899 = vmatpush.msra.mxu0 %v1875
    %1900 = vmatpush.msra.mxu0 %v1874
    %1901 = vmatmul.f32.gmra.mxu0 %v1883
    %v1902 = vpop.f32.mrf.mxu0
    %v1903 = vadd.f32 %v214, %v1902
    %1904 = vdwg.mxu0
    %v1905 = vxor.u32 %v1903, 2147483648
    %v1906 = vmul.f32 %v1905, 1.442695
    %v1907 = vpow.pop %v1906
    %v1908 = vadd.f32 %v1907, 1.0
    %v1909 = vrcp.pop %v1908
    %v1910 = vmul.f32 %v1908, %v1909
    %v1911 = vsub.f32 1.0, %v1910
    %v1912 = vmul.f32 %v1909, %v1911
    %v1913 = vadd.f32 %v1909, %v1912
    %vm1914 = vweird.f32 %v1908
    %vm1915 = vweird.f32 %v1909
    %vm1916 = vmor %vm1914, %vm1915
    %v1917 = vsel %vm1916, %v1909, %v1913
    %v1918 = vand.u32 2147483647, %v1908
    %vm1919 = vcmp.eq.f32.partialorder %v1918, 8.507059e+37
    %v1920 = vand.u32 %v1908, 2147483648
    %v1921 = vor.u32 1.1754944e-38, %v1920
    %v1922 = vsel %vm1919, %v1921, %v1917
    %v1923 = vmul.f32 1.0, %v1922
    %v1924 = vtanh.pop %v1903
    %v1925 = vmul.f32 %v1923, %v1713
    %1927 = vrot.lane.b32.xlu0 %v1924, 64
    %v1928 = vpop.permute.xlu0 %1927
    %v1930 = vmul.f32 %v1923, %v1928
    %1932 = vrot.lane.b32.xlu0 %v1930, 32
    %v1933 = vpop.permute.xlu0 %1932
    %v1935 = vadd.f32 %v1925, %v1933
    %v1936 = vtanh.pop %v1935
    %1938 = vrot.lane.b32.xlu0 %v1936, 64
    %v1939 = vpop.permute.xlu0 %1938
    %v1941 = vmul.f32 %v1923, %v1939
    %1943 = vrot.lane.b32.xlu0 %v1941, 32
    %v1944 = vpop.permute.xlu0 %1943
    %1946 = vrot.lane.b32.xlu0 %v1795, 64
    %v1947 = vpop.permute.xlu0 %1946
    %v1949 = vsel %vm235, %v1944, %v1947
    %v1950 = vld [vmem:[#allocation10] sm:$0xff]
    %v1951 = vld [vmem:[#allocation10 + $0x8] sm:$0xff]
    %v1952 = vld [vmem:[#allocation10 + $0x10] sm:$0xff]
    %v1953 = vld [vmem:[#allocation10 + $0x18] sm:$0xff]
    %v1954 = vld [vmem:[#allocation10 + $0x20] sm:$0xff]
    %v1955 = vld [vmem:[#allocation10 + $0x28] sm:$0xff]
    %v1956 = vld [vmem:[#allocation10 + $0x30] sm:$0xff]
    %v1957 = vld [vmem:[#allocation10 + $0x38] sm:$0xff]
    %v1959 = vsel %vm318, %v1949, 0
    %1961 = vmatpush.msra.mxu0 0.0
    %1962 = vmatpush.msra.mxu0 0.0
    %1963 = vmatpush.msra.mxu0 0.0
    %1964 = vmatpush.msra.mxu0 0.0
    %1965 = vmatpush.msra.mxu0 0.0
    %1966 = vmatpush.msra.mxu0 0.0
    %1967 = vmatpush.msra.mxu0 0.0
    %1968 = vmatpush.msra.mxu0 0.0
    %1969 = vmatpush.msra.mxu0 %v1957
    %1970 = vmatpush.msra.mxu0 %v1956
    %1971 = vmatpush.msra.mxu0 %v1955
    %1972 = vmatpush.msra.mxu0 %v1954
    %1973 = vmatpush.msra.mxu0 %v1953
    %1974 = vmatpush.msra.mxu0 %v1952
    %1975 = vmatpush.msra.mxu0 %v1951
    %1976 = vmatpush.msra.mxu0 %v1950
    %1977 = vmatmul.f32.gmra.mxu0 %v1959
    %v1978 = vpop.f32.mrf.mxu0
    %v1979 = vadd.f32 %v218, %v1978
    %1980 = vdwg.mxu0
    %v1981 = vxor.u32 %v1979, 2147483648
    %v1982 = vmul.f32 %v1981, 1.442695
    %v1983 = vpow.pop %v1982
    %v1984 = vadd.f32 %v1983, 1.0
    %v1985 = vrcp.pop %v1984
    %v1986 = vmul.f32 %v1984, %v1985
    %v1987 = vsub.f32 1.0, %v1986
    %v1988 = vmul.f32 %v1985, %v1987
    %v1989 = vadd.f32 %v1985, %v1988
    %vm1990 = vweird.f32 %v1984
    %vm1991 = vweird.f32 %v1985
    %vm1992 = vmor %vm1990, %vm1991
    %v1993 = vsel %vm1992, %v1985, %v1989
    %v1994 = vand.u32 2147483647, %v1984
    %vm1995 = vcmp.eq.f32.partialorder %v1994, 8.507059e+37
    %v1996 = vand.u32 %v1984, 2147483648
    %v1997 = vor.u32 1.1754944e-38, %v1996
    %v1998 = vsel %vm1995, %v1997, %v1993
    %v1999 = vmul.f32 1.0, %v1998
    %v2000 = vtanh.pop %v1979
    %v2001 = vmul.f32 %v1999, %v1789
    %2003 = vrot.lane.b32.xlu0 %v2000, 64
    %v2004 = vpop.permute.xlu0 %2003
    %v2006 = vmul.f32 %v1999, %v2004
    %2008 = vrot.lane.b32.xlu0 %v2006, 32
    %v2009 = vpop.permute.xlu0 %2008
    %v2011 = vadd.f32 %v2001, %v2009
    %v2012 = vtanh.pop %v2011
    %2014 = vrot.lane.b32.xlu0 %v2012, 64
    %v2015 = vpop.permute.xlu0 %2014
    %v2017 = vmul.f32 %v1999, %v2015
    %2019 = vrot.lane.b32.xlu0 %v2017, 32
    %v2020 = vpop.permute.xlu0 %2019
    %2022 = vst.msk [vmem:[#allocation3 + $0x38] sm:$0xff] %vm235, %v2020
    %2023 = vst.msk [vmem:[#allocation14] sm:$0xff] %vm235, %v1868
    %s2024 = scalar_lea.vmem [#allocation14], 8
    %2025 = vst.msk [vmem:[%s2024] sm:$0xff] %vm235, %v1944
    %s2026 = scalar_lea.vmem [#allocation14], 16
    %2027 = vst.msk [vmem:[%s2026] sm:$0xff] %vm235, %v2020
    %2029 = vrot.lane.b32.xlu0 %v1859, 96
    %v2030 = vpop.permute.xlu0 %2029
    %2032 = vst.msk [vmem:[#allocation16] sm:$0xff] %vm235, %v2030
    %2034 = vrot.lane.b32.xlu0 %v1935, 96
    %v2035 = vpop.permute.xlu0 %2034
    %s2037 = scalar_lea.vmem [#allocation16], 8
    %2038 = vst.msk [vmem:[%s2037] sm:$0xff] %vm235, %v2035
    %2040 = vrot.lane.b32.xlu0 %v2011, 96
    %v2041 = vpop.permute.xlu0 %2040
    %s2043 = scalar_lea.vmem [#allocation16], 16
    %2044 = vst.msk [vmem:[%s2043] sm:$0xff] %vm235, %v2041
    %v2045 = vld [vmem:[#allocation3] sm:$0xff]
    %v2046 = vld [vmem:[#allocation3 + $0x8] sm:$0xff]
    %v2047 = vld [vmem:[#allocation3 + $0x10] sm:$0xff]
    %v2048 = vld [vmem:[#allocation3 + $0x18] sm:$0xff]
    %v2049 = vld [vmem:[#allocation3 + $0x20] sm:$0xff]
    %v2050 = vld [vmem:[#allocation3 + $0x28] sm:$0xff]
    %v2051 = vld [vmem:[#allocation3 + $0x30] sm:$0xff]
    %v2052 = vld [vmem:[#allocation3 + $0x38] sm:$0xff]
    %v2053 = vld [vmem:[#allocation12] sm:$0xff]
    %v2054 = vld [vmem:[#allocation12 + $0x8] sm:$0xff]
    %v2055 = vld [vmem:[#allocation12 + $0x10] sm:$0xff]
    %v2056 = vld [vmem:[#allocation12 + $0x18] sm:$0xff]
    %v2057 = vld [vmem:[%s11] sm:$0x1]
    %v2059 = vperm.slane %v2057, 0
    %v2062 = vsel %vm235, %v2045, 0
    %v2065 = vsel %vm235, %v2046, 0
    %v2068 = vsel %vm235, %v2047, 0
    %v2071 = vsel %vm235, %v2048, 0
    %v2074 = vsel %vm235, %v2049, 0
    %v2077 = vsel %vm235, %v2050, 0
    %v2080 = vsel %vm235, %v2051, 0
    %v2083 = vsel %vm235, %v2052, 0
    %2085 = vmatpush.msra.mxu0 0.0
    %2086 = vmatpush.msra.mxu0 0.0
    %2087 = vmatpush.msra.mxu0 0.0
    %2088 = vmatpush.msra.mxu0 0.0
    %2089 = vmatpush.msra.mxu0 0.0
    %2090 = vmatpush.msra.mxu0 0.0
    %2091 = vmatpush.msra.mxu0 0.0
    %2092 = vmatpush.msra.mxu0 0.0
    %2093 = vmatpush.msra.mxu0 0.0
    %2094 = vmatpush.msra.mxu0 0.0
    %2095 = vmatpush.msra.mxu0 0.0
    %2096 = vmatpush.msra.mxu0 0.0
    %2097 = vmatpush.msra.mxu0 %v2056
    %2098 = vmatpush.msra.mxu0 %v2055
    %2099 = vmatpush.msra.mxu0 %v2054
    %2100 = vmatpush.msra.mxu0 %v2053
    %2101 = vmatmul.f32.gmra.mxu0 %v2062
    %v2102 = vpop.f32.mrf.mxu0
    %v2103 = vadd.f32 %v2059, %v2102
    %2104 = vmatmul.f32.gmra.mxu0 %v2065
    %v2105 = vpop.f32.mrf.mxu0
    %v2106 = vadd.f32 %v2059, %v2105
    %2107 = vmatmul.f32.gmra.mxu0 %v2068
    %v2108 = vpop.f32.mrf.mxu0
    %v2109 = vadd.f32 %v2059, %v2108
    %2110 = vmatmul.f32.gmra.mxu0 %v2071
    %v2111 = vpop.f32.mrf.mxu0
    %v2112 = vadd.f32 %v2059, %v2111
    %2113 = vmatmul.f32.gmra.mxu0 %v2074
    %v2114 = vpop.f32.mrf.mxu0
    %v2115 = vadd.f32 %v2059, %v2114
    %2116 = vmatmul.f32.gmra.mxu0 %v2077
    %v2117 = vpop.f32.mrf.mxu0
    %v2118 = vadd.f32 %v2059, %v2117
    %2119 = vmatmul.f32.gmra.mxu0 %v2080
    %v2120 = vpop.f32.mrf.mxu0
    %v2121 = vadd.f32 %v2059, %v2120
    %2122 = vmatmul.f32.gmra.mxu0 %v2083
    %v2123 = vpop.f32.mrf.mxu0
    %v2124 = vadd.f32 %v2059, %v2123
    %2125 = vdwg.mxu0
    %2126 = vmax.xlane.f32.xlu0 %v2103
    %v2127 = vpop.xlane.xlu0 %2126
    %2128 = vmax.xlane.f32.xlu0 %v2106
    %v2129 = vpop.xlane.xlu0 %2128
    %2130 = vmax.xlane.f32.xlu0 %v2109
    %v2131 = vpop.xlane.xlu0 %2130
    %2132 = vmax.xlane.f32.xlu0 %v2112
    %v2133 = vpop.xlane.xlu0 %2132
    %2134 = vmax.xlane.f32.xlu0 %v2115
    %v2135 = vpop.xlane.xlu0 %2134
    %2136 = vmax.xlane.f32.xlu0 %v2118
    %v2137 = vpop.xlane.xlu0 %2136
    %2138 = vmax.xlane.f32.xlu0 %v2121
    %v2139 = vpop.xlane.xlu0 %2138
    %2140 = vmax.xlane.f32.xlu0 %v2124
    %v2141 = vpop.xlane.xlu0 %2140
    %v2142 = vsub.f32 %v2103, %v2127
    %v2143 = vsub.f32 %v2106, %v2129
    %v2144 = vsub.f32 %v2109, %v2131
    %v2145 = vsub.f32 %v2112, %v2133
    %v2146 = vsub.f32 %v2115, %v2135
    %v2147 = vsub.f32 %v2118, %v2137
    %v2148 = vsub.f32 %v2121, %v2139
    %v2149 = vsub.f32 %v2124, %v2141
    %v2150 = vmul.f32 %v2142, 1.442695
    %v2151 = vpow.pop %v2150
    %v2152 = vmul.f32 %v2143, 1.442695
    %v2153 = vpow.pop %v2152
    %v2154 = vmul.f32 %v2144, 1.442695
    %v2155 = vpow.pop %v2154
    %v2156 = vmul.f32 %v2145, 1.442695
    %v2157 = vpow.pop %v2156
    %v2158 = vmul.f32 %v2146, 1.442695
    %v2159 = vpow.pop %v2158
    %v2160 = vmul.f32 %v2147, 1.442695
    %v2161 = vpow.pop %v2160
    %v2162 = vmul.f32 %v2148, 1.442695
    %v2163 = vpow.pop %v2162
    %v2164 = vmul.f32 %v2149, 1.442695
    %v2165 = vpow.pop %v2164
    %2166 = vadd.xlane.f32.xlu0 %v2151
    %v2167 = vpop.xlane.xlu0 %2166
    %2168 = vadd.xlane.f32.xlu0 %v2153
    %v2169 = vpop.xlane.xlu0 %2168
    %2170 = vadd.xlane.f32.xlu0 %v2155
    %v2171 = vpop.xlane.xlu0 %2170
    %2172 = vadd.xlane.f32.xlu0 %v2157
    %v2173 = vpop.xlane.xlu0 %2172
    %2174 = vadd.xlane.f32.xlu0 %v2159
    %v2175 = vpop.xlane.xlu0 %2174
    %2176 = vadd.xlane.f32.xlu0 %v2161
    %v2177 = vpop.xlane.xlu0 %2176
    %2178 = vadd.xlane.f32.xlu0 %v2163
    %v2179 = vpop.xlane.xlu0 %2178
    %2180 = vadd.xlane.f32.xlu0 %v2165
    %v2181 = vpop.xlane.xlu0 %2180
    %v2182 = vlog2.pop %v2167
    %v2183 = vmul.f32 %v2182, 0.6931472
    %v2184 = vlog2.pop %v2169
    %v2185 = vmul.f32 %v2184, 0.6931472
    %v2186 = vlog2.pop %v2171
    %v2187 = vmul.f32 %v2186, 0.6931472
    %v2188 = vlog2.pop %v2173
    %v2189 = vmul.f32 %v2188, 0.6931472
    %v2190 = vlog2.pop %v2175
    %v2191 = vmul.f32 %v2190, 0.6931472
    %v2192 = vlog2.pop %v2177
    %v2193 = vmul.f32 %v2192, 0.6931472
    %v2194 = vlog2.pop %v2179
    %v2195 = vmul.f32 %v2194, 0.6931472
    %v2196 = vlog2.pop %v2181
    %v2197 = vmul.f32 %v2196, 0.6931472
    %v2198 = vadd.f32 %v2127, %v2183
    %v2199 = vadd.f32 %v2129, %v2185
    %v2200 = vadd.f32 %v2131, %v2187
    %v2201 = vadd.f32 %v2133, %v2189
    %v2202 = vadd.f32 %v2135, %v2191
    %v2203 = vadd.f32 %v2137, %v2193
    %v2204 = vadd.f32 %v2139, %v2195
    %v2205 = vadd.f32 %v2141, %v2197
    %v2206 = vsub.f32 %v2103, %v2198
    %v2207 = vsub.f32 %v2106, %v2199
    %v2208 = vsub.f32 %v2109, %v2200
    %v2209 = vsub.f32 %v2112, %v2201
    %v2210 = vsub.f32 %v2115, %v2202
    %v2211 = vsub.f32 %v2118, %v2203
    %v2212 = vsub.f32 %v2121, %v2204
    %v2213 = vsub.f32 %v2124, %v2205
    %2214 = vst [vmem:[#allocation13] sm:$0xff] %v2206
    %2215 = vst [vmem:[#allocation13 + $0x8] sm:$0xff] %v2207
    %2216 = vst [vmem:[#allocation13 + $0x10] sm:$0xff] %v2208
    %2217 = vst [vmem:[#allocation13 + $0x18] sm:$0xff] %v2209
    %2218 = vst [vmem:[#allocation13 + $0x20] sm:$0xff] %v2210
    %2219 = vst [vmem:[#allocation13 + $0x28] sm:$0xff] %v2211
    %2220 = vst [vmem:[#allocation13 + $0x30] sm:$0xff] %v2212
    %2221 = vst [vmem:[#allocation13 + $0x38] sm:$0xff] %v2213
    // Predicated region
    $region70: #{tpu_custom_call.1} parent=1 // pred_check
      _
    $region71: #{tpu_custom_call.1} parent=1 // pred_check_branch
      %2223 = sbr.rel (0) target = $region73
    $region72: #{tpu_custom_call.1} parent=1 // pred_region
      %2225 = vsyncadd [#allocation6], 0
      %s2226 = sshll.u32 [#allocation13], 4
      %s2227 = int_to_ptr.vmem [resolvable:$true] %s2226
      %s2228 = sshll.u32 %s12, 4
      %s2229 = int_to_ptr.hbm [resolvable:$true] %s2228
      %2234 = dma.vmem_to_hbm [thread:$0]  %s2227, 1024, %s2229, [#allocation6], 128, 128, 8
    $region73: #{tpu_custom_call.1} parent=1 // pred_fallthru
      _
    // Predicated region
    $region74: #{tpu_custom_call.1} parent=1 // pred_check
      _
    $region75: #{tpu_custom_call.1} parent=1 // pred_check_branch
      %2236 = sbr.rel (0) target = $region77
    $region76: #{tpu_custom_call.1} parent=1 // pred_region
      %2238 = vsyncadd [#allocation15], 0
      %s2239 = sshll.u32 [#allocation14], 4
      %s2240 = int_to_ptr.vmem [resolvable:$true] %s2239
      %s2241 = sshll.u32 %s13, 4
      %s2242 = int_to_ptr.hbm [resolvable:$true] %s2241
      %2247 = dma.vmem_to_hbm [thread:$0]  %s2240, 384, %s2242, [#allocation15], 128, 128, 8
    $region77: #{tpu_custom_call.1} parent=1 // pred_fallthru
      _
    // Predicated region
    $region78: #{tpu_custom_call.1} parent=1 // pred_check
      _
    $region79: #{tpu_custom_call.1} parent=1 // pred_check_branch
      %2249 = sbr.rel (0) target = $region81
    $region80: #{tpu_custom_call.1} parent=1 // pred_region
      %2251 = vsyncadd [#allocation15], 0
      %s2252 = sshll.u32 [#allocation16], 4
      %s2253 = int_to_ptr.vmem [resolvable:$true] %s2252
      %s2254 = sshll.u32 %s14, 4
      %s2255 = int_to_ptr.hbm [resolvable:$true] %s2254
      %2260 = dma.vmem_to_hbm [thread:$0]  %s2253, 384, %s2255, [#allocation15], 128, 128, 8
    $region81: #{tpu_custom_call.1} parent=1 // pred_fallthru
      _
    // Predicated region
    $region82: #{tpu_custom_call.1} parent=1 // pred_check
      _
    $region83: #{tpu_custom_call.1} parent=1 // pred_check_branch
      %2262 = sbr.rel (0) target = $region85
    $region84: #{tpu_custom_call.1} parent=1 // pred_region
      %2264 = dma.done [#allocation6], 1024
    $region85: #{tpu_custom_call.1} parent=1 // pred_fallthru
      _
    // Predicated region
    $region86: #{tpu_custom_call.1} parent=1 // pred_check
      _
    $region87: #{tpu_custom_call.1} parent=1 // pred_check_branch
      %2266 = sbr.rel (0) target = $region89
    $region88: #{tpu_custom_call.1} parent=1 // pred_region
      %2268 = dma.done [#allocation15], 384
    $region89: #{tpu_custom_call.1} parent=1 // pred_fallthru
      _
    // Predicated region
    $region90: #{tpu_custom_call.1} parent=1 // pred_check
      _
    $region91: #{tpu_custom_call.1} parent=1 // pred_check_branch
      %2270 = sbr.rel (0) target = $region93
    $region92: #{tpu_custom_call.1} parent=1 // pred_region
      %2272 = dma.done [#allocation15], 384
    $region93: #{tpu_custom_call.1} parent=1 // pred_fallthru
      _
    %2273 = vsyncpa [#allocation5], 1
    %2274 = vsyncpa [#allocation8], 1
    %2275 = vsyncpa [#allocation11], 1
    %2276 = vsyncpa [#allocation6], 1
    %2277 = vsyncpa [#allocation15], 1

</llo_original>
